<compile_context>
chip_gen: v6e
topology: v6e:2x2x1
jax: 0.10.0
libtpu: 0.0.40
codegen_flags: <defaults>
</compile_context>

<pallas_src>
import numpy as np
import jax
import jax.numpy as jnp
from jax.experimental import pallas as pl
from jax.experimental.pallas import tpu as pltpu

EPS = 1e-5      # InstanceNorm1d default eps
COEFF = 12.0    # Coeff_Sigmoid coefficient


def ldp_kernel(x_ref, dw_ref, pw_ref, gamma_ref, beta_ref, o_ref):
    x = x_ref[0]                      # (C, L) current batch element, f32
    C, L = x.shape
    dw = dw_ref[...]                  # (C, 3)  depthwise Conv1d weights
    pw = pw_ref[...]                  # (C, C)  pointwise Conv1d weights

    # ---- depthwise Conv1d(k=3, stride=1, pad=1, groups=C, bias=False) ----
    # Zero-padded neighbor shifts via zero-column concat (lane shifts on HW);
    # no full-tile iota/compare masks.
    zero_col = jnp.zeros((C, 1), dtype=x.dtype)
    x_lm1 = jnp.concatenate([zero_col, x[:, : L - 1]], axis=1)   # x[:, l-1]
    x_lp1 = jnp.concatenate([x[:, 1:], zero_col], axis=1)        # x[:, l+1]
    y = dw[:, 0:1] * x_lm1 + dw[:, 1:2] * x + dw[:, 2:3] * x_lp1

    # ---- pointwise Conv1d(k=1, bias=False): (C,C) @ (C,L) on the MXU ----
    # bf16 operands, f32 accumulation (InstanceNorm renormalizes afterwards).
    z = jnp.dot(pw.astype(jnp.bfloat16), y.astype(jnp.bfloat16),
                preferred_element_type=jnp.float32)

    # ---- InstanceNorm1d(affine=True): per-(n,c) stats over L, biased var ----
    # One-pass statistics: var = E[z^2] - mean^2 (single sweep over z).
    inv_l = 1.0 / L
    mean = jnp.sum(z, axis=1, keepdims=True) * inv_l
    ex2 = jnp.sum(z * z, axis=1, keepdims=True) * inv_l
    var = jnp.maximum(ex2 - mean * mean, 0.0)
    zn = (z - mean) * jax.lax.rsqrt(var + EPS)
    zn = zn * gamma_ref[...] + beta_ref[...]

    # ---- Coeff_Sigmoid then exp ----
    w = jnp.exp(jax.nn.sigmoid(zn) * COEFF)

    # ---- avg_pool1d(x*w,2,2) / avg_pool1d(w,2,2): the 1/2 factors cancel ----
    # Pair-sum on the VPU (reshape + sum over a size-2 minor axis).
    xw = x * w
    num = jnp.sum(xw.reshape(C, L // 2, 2), axis=-1)    # (C, L//2)
    den = jnp.sum(w.reshape(C, L // 2, 2), axis=-1)     # (C, L//2), >= 2 always
    o_ref[0] = (num * pl.reciprocal(den, approx=True)).astype(o_ref.dtype)


def ldp_forward(x, dw, pw, gamma, beta):
    N, C, L = x.shape
    assert L % 2 == 0, "avg_pool1d(kernel=2, stride=2) requires even L"
    Lo = L // 2
    return pl.pallas_call(
        ldp_kernel,
        out_shape=jax.ShapeDtypeStruct((N, C, Lo), x.dtype),
        grid_spec=pltpu.PrefetchScalarGridSpec(
            num_scalar_prefetch=0,
            grid=(N,),
            in_specs=[
                pl.BlockSpec((1, C, L), lambda n: (n, 0, 0)),   # x: one batch element
                pl.BlockSpec((C, 3), lambda n: (0, 0)),         # depthwise weights
                pl.BlockSpec((C, C), lambda n: (0, 0)),         # pointwise weights
                pl.BlockSpec((C, 1), lambda n: (0, 0)),         # InstanceNorm gamma
                pl.BlockSpec((C, 1), lambda n: (0, 0)),         # InstanceNorm beta
            ],
            out_specs=pl.BlockSpec((1, C, Lo), lambda n: (n, 0, 0)),
        ),
        compiler_params=pltpu.CompilerParams(dimension_semantics=("parallel",)),
    )(x, dw, pw, gamma, beta)


def ldp_reference(x, dw, pw, gamma, beta, mxu_bf16=True):
    """Plain-JAX reference mirroring the PyTorch forward, for verification.

    mxu_bf16=True mirrors the kernel's bf16-operand / f32-accumulate pointwise
    conv; set False for the exact f32 PyTorch semantics.
    """
    xp = jnp.pad(x, ((0, 0), (0, 0), (1, 1)))
    y = (dw[None, :, 0:1] * xp[:, :, 0:-2]
         + dw[None, :, 1:2] * xp[:, :, 1:-1]
         + dw[None, :, 2:3] * xp[:, :, 2:])
    if mxu_bf16:
        pw_c = pw.astype(jnp.bfloat16).astype(jnp.float32)
        y_c = y.astype(jnp.bfloat16).astype(jnp.float32)
    else:
        pw_c, y_c = pw, y
    z = jnp.einsum("oc,ncl->nol", pw_c, y_c)
    mean = z.mean(axis=2, keepdims=True)
    var = ((z - mean) ** 2).mean(axis=2, keepdims=True)
    zn = (z - mean) / jnp.sqrt(var + EPS)
    zn = zn * gamma[None] + beta[None]
    w = jnp.exp(jax.nn.sigmoid(zn) * COEFF)
    xw = x * w
    num = xw.reshape(xw.shape[0], xw.shape[1], -1, 2).sum(-1)
    den = w.reshape(w.shape[0], w.shape[1], -1, 2).sum(-1)
    return num / den


if __name__ == "__main__":
    # Small shapes consistent with Conv1d (N, channels, length); L chosen so
    # the pooled output width L//2 = 128 is lane-dense.
    N, C, L = 2, 8, 256
    key = jax.random.PRNGKey(0)
    k1, k2, k3, k4, k5 = jax.random.split(key, 5)

    x = jax.random.normal(k1, (N, C, L), jnp.float32)
    # Parameter shapes follow the module __init__:
    #   depthwise Conv1d weight (C, 1, 3) -> stored as (C, 3)
    #   pointwise Conv1d weight (C, C, 1) -> stored as (C, C)
    #   InstanceNorm1d gamma/beta (C,)    -> stored as (C, 1)
    # NOTE: __init__ zero-fills the pointwise weight (degenerate forward); we use
    # a small deterministic random init instead so the full compute path runs.
    dw = 0.5 * jax.random.normal(k2, (C, 3), jnp.float32)
    pw = 0.3 * jax.random.normal(k3, (C, C), jnp.float32)
    gamma = 1.0 + 0.1 * jax.random.normal(k4, (C, 1), jnp.float32)
    beta = 0.1 * jax.random.normal(k5, (C, 1), jnp.float32)

    out = jax.block_until_ready(ldp_forward(x, dw, pw, gamma, beta))
    ref = ldp_reference(x, dw, pw, gamma, beta)

    assert out.shape == (N, C, L // 2)
    # Tolerance covers bf16 MXU operand rounding (mirrored in the reference),
    # the one-pass variance, and the approximate (EUP) reciprocal.
    np.testing.assert_allclose(np.asarray(out), np.asarray(ref), rtol=5e-3, atol=5e-3)
    print("KERNEL_OK")
</pallas_src>

<mosaic_0001>
module attributes {stable_mosaic.version = 11 : i64} {
  func.func @ldp_kernel(%arg0: i32, %arg1: memref<1x8x256xf32, #tpu.memory_space<vmem>>, %arg2: memref<8x3xf32, #tpu.memory_space<vmem>>, %arg3: memref<8x8xf32, #tpu.memory_space<vmem>>, %arg4: memref<8x1xf32, #tpu.memory_space<vmem>>, %arg5: memref<8x1xf32, #tpu.memory_space<vmem>>, %arg6: memref<1x8x128xf32, #tpu.memory_space<vmem>>) attributes {dimension_semantics = [#tpu.dimension_semantics<parallel>], iteration_bounds = array<i64: 2>, scalar_prefetch = 0 : i64, scratch_operands = 0 : i64, tpu.core_type = #tpu.core_type<tc>, window_params = [{transform_indices = @transform_0, window_bounds = array<i64: 1, 8, 256>}, {pipeline_mode = #tpu.pipeline_mode<synchronous>, transform_indices = @transform_1, window_bounds = array<i64: 8, 3>}, {pipeline_mode = #tpu.pipeline_mode<synchronous>, transform_indices = @transform_2, window_bounds = array<i64: 8, 8>}, {pipeline_mode = #tpu.pipeline_mode<synchronous>, transform_indices = @transform_3, window_bounds = array<i64: 8, 1>}, {pipeline_mode = #tpu.pipeline_mode<synchronous>, transform_indices = @transform_4, window_bounds = array<i64: 8, 1>}, {transform_indices = @transform_5, window_bounds = array<i64: 1, 8, 128>}]} {
    %c0 = arith.constant 0 : index
    %c0_0 = arith.constant 0 : index
    %c0_1 = arith.constant 0 : index
    %0 = vector.load %arg1[%c0, %c0_0, %c0_1] : memref<1x8x256xf32, #tpu.memory_space<vmem>>, vector<1x8x256xf32>
    %1 = vector.shape_cast %0 : vector<1x8x256xf32> to vector<8x256xf32>
    %c0_2 = arith.constant 0 : index
    %c0_3 = arith.constant 0 : index
    %2 = vector.load %arg2[%c0_2, %c0_3] : memref<8x3xf32, #tpu.memory_space<vmem>>, vector<8x3xf32>
    %c0_4 = arith.constant 0 : index
    %c0_5 = arith.constant 0 : index
    %3 = vector.load %arg3[%c0_4, %c0_5] : memref<8x8xf32, #tpu.memory_space<vmem>>, vector<8x8xf32>
    %cst = arith.constant 0.000000e+00 : f32
    %4 = vector.broadcast %cst : f32 to vector<8x1xf32>
    %5 = vector.extract_strided_slice %1 {offsets = [0, 0], sizes = [8, 255], strides = [1, 1]} : vector<8x256xf32> to vector<8x255xf32>
    %6 = tpu.concatenate %4, %5 in 1 : vector<8x1xf32>, vector<8x255xf32> -> vector<8x256xf32>
    %7 = vector.extract_strided_slice %1 {offsets = [0, 1], sizes = [8, 255], strides = [1, 1]} : vector<8x256xf32> to vector<8x255xf32>
    %8 = tpu.concatenate %7, %4 in 1 : vector<8x255xf32>, vector<8x1xf32> -> vector<8x256xf32>
    %9 = vector.extract_strided_slice %2 {offsets = [0, 0], sizes = [8, 1], strides = [1, 1]} : vector<8x3xf32> to vector<8x1xf32>
    %10 = vector.broadcast %9 : vector<8x1xf32> to vector<8x256xf32>
    %11 = arith.mulf %10, %6 : vector<8x256xf32>
    %12 = vector.extract_strided_slice %2 {offsets = [0, 1], sizes = [8, 1], strides = [1, 1]} : vector<8x3xf32> to vector<8x1xf32>
    %13 = vector.broadcast %12 : vector<8x1xf32> to vector<8x256xf32>
    %14 = arith.mulf %13, %1 : vector<8x256xf32>
    %15 = arith.addf %11, %14 : vector<8x256xf32>
    %16 = vector.extract_strided_slice %2 {offsets = [0, 2], sizes = [8, 1], strides = [1, 1]} : vector<8x3xf32> to vector<8x1xf32>
    %17 = vector.broadcast %16 : vector<8x1xf32> to vector<8x256xf32>
    %18 = arith.mulf %17, %8 : vector<8x256xf32>
    %19 = arith.addf %15, %18 : vector<8x256xf32>
    %20 = arith.truncf %3 : vector<8x8xf32> to vector<8x8xbf16>
    %21 = arith.truncf %19 : vector<8x256xf32> to vector<8x256xbf16>
    %cst_6 = arith.constant dense<0.000000e+00> : vector<8x256xf32>
    %22 = tpu.matmul %20, %21, %cst_6 {dimension_numbers = #tpu.dot_dimension_numbers<[1], [0], [0], [1], [0, 0, 1, 1], [], []>} : vector<8x8xbf16>, vector<8x256xbf16>, vector<8x256xf32> -> vector<8x256xf32>
    %cst_7 = arith.constant dense<0.000000e+00> : vector<8xf32>
    %23 = vector.multi_reduction <add>, %22, %cst_7 [1] : vector<8x256xf32> to vector<8xf32>
    %24 = vector.shape_cast %23 : vector<8xf32> to vector<8x1xf32>
    %cst_8 = arith.constant 3.906250e-03 : f32
    %25 = vector.broadcast %cst_8 : f32 to vector<8x1xf32>
    %26 = arith.mulf %24, %25 : vector<8x1xf32>
    %27 = arith.mulf %22, %22 : vector<8x256xf32>
    %cst_9 = arith.constant dense<0.000000e+00> : vector<8xf32>
    %28 = vector.multi_reduction <add>, %27, %cst_9 [1] : vector<8x256xf32> to vector<8xf32>
    %29 = vector.shape_cast %28 : vector<8xf32> to vector<8x1xf32>
    %cst_10 = arith.constant 3.906250e-03 : f32
    %30 = vector.broadcast %cst_10 : f32 to vector<8x1xf32>
    %31 = arith.mulf %29, %30 : vector<8x1xf32>
    %32 = arith.mulf %26, %26 : vector<8x1xf32>
    %33 = arith.subf %31, %32 : vector<8x1xf32>
    %cst_11 = arith.constant 0.000000e+00 : f32
    %34 = vector.broadcast %cst_11 : f32 to vector<8x1xf32>
    %35 = arith.maximumf %33, %34 : vector<8x1xf32>
    %36 = vector.broadcast %26 : vector<8x1xf32> to vector<8x256xf32>
    %37 = arith.subf %22, %36 : vector<8x256xf32>
    %cst_12 = arith.constant 9.99999974E-6 : f32
    %38 = vector.broadcast %cst_12 : f32 to vector<8x1xf32>
    %39 = arith.addf %35, %38 : vector<8x1xf32>
    %40 = math.rsqrt %39 : vector<8x1xf32>
    %41 = vector.broadcast %40 : vector<8x1xf32> to vector<8x256xf32>
    %42 = arith.mulf %37, %41 : vector<8x256xf32>
    %c0_13 = arith.constant 0 : index
    %c0_14 = arith.constant 0 : index
    %43 = vector.load %arg4[%c0_13, %c0_14] : memref<8x1xf32, #tpu.memory_space<vmem>>, vector<8x1xf32>
    %44 = vector.broadcast %43 : vector<8x1xf32> to vector<8x256xf32>
    %45 = arith.mulf %42, %44 : vector<8x256xf32>
    %c0_15 = arith.constant 0 : index
    %c0_16 = arith.constant 0 : index
    %46 = vector.load %arg5[%c0_15, %c0_16] : memref<8x1xf32, #tpu.memory_space<vmem>>, vector<8x1xf32>
    %47 = vector.broadcast %46 : vector<8x1xf32> to vector<8x256xf32>
    %48 = arith.addf %45, %47 : vector<8x256xf32>
    %49 = arith.negf %48 : vector<8x256xf32>
    %50 = math.exp %49 : vector<8x256xf32>
    %cst_17 = arith.constant 1.000000e+00 : f32
    %51 = vector.broadcast %cst_17 : f32 to vector<8x256xf32>
    %52 = arith.addf %51, %50 : vector<8x256xf32>
    %53 = arith.divf %51, %52 : vector<8x256xf32>
    %cst_18 = arith.constant 1.200000e+01 : f32
    %54 = vector.broadcast %cst_18 : f32 to vector<8x256xf32>
    %55 = arith.mulf %53, %54 : vector<8x256xf32>
    %56 = math.exp %55 : vector<8x256xf32>
    %57 = arith.mulf %1, %56 : vector<8x256xf32>
    %58 = vector.shape_cast %57 : vector<8x256xf32> to vector<8x128x2xf32>
    %cst_19 = arith.constant dense<0.000000e+00> : vector<8x128xf32>
    %59 = vector.multi_reduction <add>, %58, %cst_19 [2] : vector<8x128x2xf32> to vector<8x128xf32>
    %60 = vector.shape_cast %56 : vector<8x256xf32> to vector<8x128x2xf32>
    %cst_20 = arith.constant dense<0.000000e+00> : vector<8x128xf32>
    %61 = vector.multi_reduction <add>, %60, %cst_20 [2] : vector<8x128x2xf32> to vector<8x128xf32>
    %62 = tpu.reciprocal %61 {approx = true} : vector<8x128xf32> -> vector<8x128xf32>
    %63 = arith.mulf %59, %62 : vector<8x128xf32>
    %c0_21 = arith.constant 0 : index
    %c0_22 = arith.constant 0 : index
    %c0_23 = arith.constant 0 : index
    %64 = vector.load %arg6[%c0_21, %c0_22, %c0_23] : memref<1x8x128xf32, #tpu.memory_space<vmem>>, vector<1x8x128xf32>
    %65 = vector.shape_cast %64 : vector<1x8x128xf32> to vector<8x128xf32>
    %66 = vector.shape_cast %63 : vector<8x128xf32> to vector<1x8x128xf32>
    tpu.vector_store %arg6[%c0_21, %c0_22, %c0_23], %66 {strides = array<i32>} : memref<1x8x128xf32, #tpu.memory_space<vmem>>, vector<1x8x128xf32>,
    return
  }
  func.func @transform_0(%arg0: i32) -> (i32, i32, i32) {
    %c0_i32 = arith.constant 0 : i32
    %c0_i32_0 = arith.constant 0 : i32
    %c0_i32_1 = arith.constant 0 : i32
    return %arg0, %c0_i32, %c0_i32_0 : i32, i32, i32
  }
  func.func @transform_1(%arg0: i32) -> (i32, i32) {
    %c0_i32 = arith.constant 0 : i32
    %c0_i32_0 = arith.constant 0 : i32
    %c0_i32_1 = arith.constant 0 : i32
    return %c0_i32, %c0_i32_0 : i32, i32
  }
  func.func @transform_2(%arg0: i32) -> (i32, i32) {
    %c0_i32 = arith.constant 0 : i32
    %c0_i32_0 = arith.constant 0 : i32
    %c0_i32_1 = arith.constant 0 : i32
    return %c0_i32, %c0_i32_0 : i32, i32
  }
  func.func @transform_3(%arg0: i32) -> (i32, i32) {
    %c0_i32 = arith.constant 0 : i32
    %c0_i32_0 = arith.constant 0 : i32
    %c0_i32_1 = arith.constant 0 : i32
    return %c0_i32, %c0_i32_0 : i32, i32
  }
  func.func @transform_4(%arg0: i32) -> (i32, i32) {
    %c0_i32 = arith.constant 0 : i32
    %c0_i32_0 = arith.constant 0 : i32
    %c0_i32_1 = arith.constant 0 : i32
    return %c0_i32, %c0_i32_0 : i32, i32
  }
  func.func @transform_5(%arg0: i32) -> (i32, i32, i32) {
    %c0_i32 = arith.constant 0 : i32
    %c0_i32_0 = arith.constant 0 : i32
    %c0_i32_1 = arith.constant 0 : i32
    return %arg0, %c0_i32, %c0_i32_0 : i32, i32, i32
  }
}

</mosaic_0001>

<llo_original>
// kernel: tpu_custom_call.1
$region0: #{tpu_custom_call.1}
  #allocation0 [shape = 'u32[]', space=smem, size = 0x4, offset = 0x4, fixed_abs, tag = 'smem constant byte address 0x4 - core index']
  #allocation1 [shape = 'u32[144,128]{1,0:T(1,128)}', space=vmem, size = 0x12000, scoped, tag = 'internal scratch']
  %s0 = inlined_call_operand.hbm [shape: f32[2,8,256], index: 0, kind: input, shape index: {}]
  %s1 = inlined_call_operand.vmem [shape: f32[8,3], index: 1, kind: input, shape index: {}]
  %s2 = inlined_call_operand.vmem [shape: f32[8,8], index: 2, kind: input, shape index: {}]
  %s3 = inlined_call_operand.vmem [shape: f32[8,1], index: 3, kind: input, shape index: {}]
  %s4 = inlined_call_operand.vmem [shape: f32[8,1], index: 4, kind: input, shape index: {}]
  %s5 = inlined_call_operand.hbm [shape: f32[2,8,128], index: 5, kind: output, shape index: {}]
  %s6 = sld [smem:[#allocation0]]
  $region57: #{tpu_custom_call.1} parent=0
    _
  %s8 = ssub.s32 1, %s6
  %s9 = scalar_select 0, %s8, %s6
  $region1: #{tpu_custom_call.1} parent=0
    #allocation2 [shape = 'u8[16384]{0}', space=vmem, size = 0x4000, scoped, tag = 'input window, operand 0']
    #allocation3 [shape = 's32[2]{0}', space=sflag, size = 0x8, scoped, tag = 'scoped memory for tpu_custom_call.1']
    #allocation4 [shape = 's32[2]{0}', space=sflag, size = 0x8, scoped, tag = 'scoped memory for tpu_custom_call.1']
    #allocation5 [shape = 'u8[8192]{0}', space=vmem, size = 0x2000, scoped, tag = 'output window, operand 0']
    %10 = vsyncpa [#allocation3], 0
    %s11 = scalar_lea.sflag [#allocation3], 1
    %12 = vsyncpa %s11, 0
    %13 = vsyncpa [#allocation4], 0
    %s14 = scalar_lea.sflag [#allocation4], 1
    %15 = vsyncpa %s14, 0
    loop: start=0, step=1, limit=4
    $region2: #{tpu_custom_call.1} parent=1 // loop_pre_header
      _
    $region3: #{tpu_custom_call.1} parent=1 // loop_header
      %s17 = sphi 0, %s21
      %p18 = scmp.ge.s32.totalorder %s17, 4
      %s27 = sphi 0, %s29
      %s30 = sphi 0, %s27
      %s31 = sphi 0, %s30
      %s47 = sphi 0, %s31
      %s51 = sphi 0, %s51
      %s53 = sphi 0, %s51
      %s54 = sphi 0, %s53
      %s68 = sphi 0, %s54
      %s72 = sphi 0, %s72
      %s74 = sphi 0, %s72
      %s75 = sphi 0, %s74
      %s89 = sphi 0, %s75
      %s93 = sphi 0, %s93
      %s95 = sphi 0, %s93
      %s96 = sphi 0, %s95
      %s110 = sphi 0, %s96
      %s114 = sphi 0, %s114
      %s116 = sphi 0, %s114
      %s117 = sphi 0, %s116
      %s131 = sphi 0, %s117
      %s137 = sphi 0, %s139
      %s140 = sphi 0, %s137
      %s141 = sphi 0, %s140
      %s157 = sphi 0, %s141
    $region4: #{tpu_custom_call.1} parent=1 // loop_header_branch
      %20 = sbr.rel (%p18) target = $region8
    $region5: #{tpu_custom_call.1} parent=1 // loop_body
      %s22 = ssub.s32 %s17, 1
      %s23 = ssub.s32 %s17, 2
      %s24 = sadd.s32 %s17, 1
      %s25 = ssub.s32 %s17, %s24
      %p26 = scmp.eq.s32.totalorder %s25, 0
      %s28 = sadd.s32 %s27, 1
      %s29 = scalar_select %p26, %s27, %s28
      %p32 = pneg %p26
      %p33 = scmp.eq.s32.totalorder %s17, 1
      %p34 = por %p32, %p33
      %p35 = scmp.ne.s32.totalorder %s27, %s30
      %p36 = scmp.eq.s32.totalorder %s17, 0
      %p37 = por %p35, %p36
      %p38 = scmp.ne.s32.totalorder %s27, %s30
      %p39 = scmp.eq.s32.totalorder %s22, 1
      %p40 = por %p38, %p39
      %p41 = scmp.ne.s32.totalorder %s30, %s31
      %p42 = scmp.eq.s32.totalorder %s22, 0
      %p43 = por %p41, %p42
      %p44 = scmp.ne.s32.totalorder %s30, %s31
      %p45 = scmp.eq.s32.totalorder %s23, 1
      %p46 = por %p44, %p45
      %p48 = scmp.ne.s32.totalorder %s31, %s47
      %p49 = scmp.eq.s32.totalorder %s23, 0
      %p50 = por %p48, %p49
      %s52 = sadd.s32 %s51, 1
      %p55 = scmp.eq.s32.totalorder %s17, 1
      %p56 = scmp.ne.s32.totalorder %s51, %s53
      %p57 = scmp.eq.s32.totalorder %s17, 0
      %p58 = por %p56, %p57
      %p59 = scmp.ne.s32.totalorder %s51, %s53
      %p60 = scmp.eq.s32.totalorder %s22, 1
      %p61 = por %p59, %p60
      %p62 = scmp.ne.s32.totalorder %s53, %s54
      %p63 = scmp.eq.s32.totalorder %s22, 0
      %p64 = por %p62, %p63
      %p65 = scmp.ne.s32.totalorder %s53, %s54
      %p66 = scmp.eq.s32.totalorder %s23, 1
      %p67 = por %p65, %p66
      %p69 = scmp.ne.s32.totalorder %s54, %s68
      %p70 = scmp.eq.s32.totalorder %s23, 0
      %p71 = por %p69, %p70
      %s73 = sadd.s32 %s72, 1
      %p76 = scmp.eq.s32.totalorder %s17, 1
      %p77 = scmp.ne.s32.totalorder %s72, %s74
      %p78 = scmp.eq.s32.totalorder %s17, 0
      %p79 = por %p77, %p78
      %p80 = scmp.ne.s32.totalorder %s72, %s74
      %p81 = scmp.eq.s32.totalorder %s22, 1
      %p82 = por %p80, %p81
      %p83 = scmp.ne.s32.totalorder %s74, %s75
      %p84 = scmp.eq.s32.totalorder %s22, 0
      %p85 = por %p83, %p84
      %p86 = scmp.ne.s32.totalorder %s74, %s75
      %p87 = scmp.eq.s32.totalorder %s23, 1
      %p88 = por %p86, %p87
      %p90 = scmp.ne.s32.totalorder %s75, %s89
      %p91 = scmp.eq.s32.totalorder %s23, 0
      %p92 = por %p90, %p91
      %s94 = sadd.s32 %s93, 1
      %p97 = scmp.eq.s32.totalorder %s17, 1
      %p98 = scmp.ne.s32.totalorder %s93, %s95
      %p99 = scmp.eq.s32.totalorder %s17, 0
      %p100 = por %p98, %p99
      %p101 = scmp.ne.s32.totalorder %s93, %s95
      %p102 = scmp.eq.s32.totalorder %s22, 1
      %p103 = por %p101, %p102
      %p104 = scmp.ne.s32.totalorder %s95, %s96
      %p105 = scmp.eq.s32.totalorder %s22, 0
      %p106 = por %p104, %p105
      %p107 = scmp.ne.s32.totalorder %s95, %s96
      %p108 = scmp.eq.s32.totalorder %s23, 1
      %p109 = por %p107, %p108
      %p111 = scmp.ne.s32.totalorder %s96, %s110
      %p112 = scmp.eq.s32.totalorder %s23, 0
      %p113 = por %p111, %p112
      %s115 = sadd.s32 %s114, 1
      %p118 = scmp.eq.s32.totalorder %s17, 1
      %p119 = scmp.ne.s32.totalorder %s114, %s116
      %p120 = scmp.eq.s32.totalorder %s17, 0
      %p121 = por %p119, %p120
      %p122 = scmp.ne.s32.totalorder %s114, %s116
      %p123 = scmp.eq.s32.totalorder %s22, 1
      %p124 = por %p122, %p123
      %p125 = scmp.ne.s32.totalorder %s116, %s117
      %p126 = scmp.eq.s32.totalorder %s22, 0
      %p127 = por %p125, %p126
      %p128 = scmp.ne.s32.totalorder %s116, %s117
      %p129 = scmp.eq.s32.totalorder %s23, 1
      %p130 = por %p128, %p129
      %p132 = scmp.ne.s32.totalorder %s117, %s131
      %p133 = scmp.eq.s32.totalorder %s23, 0
      %p134 = por %p132, %p133
      %s135 = ssub.s32 %s17, %s24
      %p136 = scmp.eq.s32.totalorder %s135, 0
      %s138 = sadd.s32 %s137, 1
      %s139 = scalar_select %p136, %s137, %s138
      %p142 = pneg %p136
      %p143 = scmp.eq.s32.totalorder %s17, 1
      %p144 = por %p142, %p143
      %p145 = scmp.ne.s32.totalorder %s137, %s140
      %p146 = scmp.eq.s32.totalorder %s17, 0
      %p147 = por %p145, %p146
      %p148 = scmp.ne.s32.totalorder %s137, %s140
      %p149 = scmp.eq.s32.totalorder %s22, 1
      %p150 = por %p148, %p149
      %p151 = scmp.ne.s32.totalorder %s140, %s141
      %p152 = scmp.eq.s32.totalorder %s22, 0
      %p153 = por %p151, %p152
      %p154 = scmp.ne.s32.totalorder %s140, %s141
      %p155 = scmp.eq.s32.totalorder %s23, 1
      %p156 = por %p154, %p155
      %p158 = scmp.ne.s32.totalorder %s141, %s157
      %p159 = scmp.eq.s32.totalorder %s23, 0
      %p160 = por %p158, %p159
      %p161 = scmp.le.s32.totalorder 1, %s17
      %p162 = scmp.lt.s32.totalorder %s17, 3
      %p163 = pnand %p161, %p162
      %p164 = pneg %p163
      // Predicated region
      $region9: #{tpu_custom_call.1} parent=5 // pred_check
        _
      $region10: #{tpu_custom_call.1} parent=5 // pred_check_branch
        %166 = sbr.rel (%p163) target = $region12
      $region11: #{tpu_custom_call.1} parent=5 // pred_region
        %s167 = ssub.s32 %s17, 1
        // Predicated region
        $region13: #{tpu_custom_call.1} parent=11 // pred_check
          %p168 = pneg %p64
        $region14: #{tpu_custom_call.1} parent=11 // pred_check_branch
          %170 = sbr.rel (%p168) target = $region16
        $region15: #{tpu_custom_call.1} parent=11 // pred_region
          _
        $region16: #{tpu_custom_call.1} parent=11 // pred_fallthru
          _
        // Predicated region
        $region17: #{tpu_custom_call.1} parent=11 // pred_check
          %p171 = pneg %p85
        $region18: #{tpu_custom_call.1} parent=11 // pred_check_branch
          %173 = sbr.rel (%p171) target = $region20
        $region19: #{tpu_custom_call.1} parent=11 // pred_region
          _
        $region20: #{tpu_custom_call.1} parent=11 // pred_fallthru
          _
        // Predicated region
        $region21: #{tpu_custom_call.1} parent=11 // pred_check
          %p174 = pneg %p106
        $region22: #{tpu_custom_call.1} parent=11 // pred_check_branch
          %176 = sbr.rel (%p174) target = $region24
        $region23: #{tpu_custom_call.1} parent=11 // pred_region
          _
        $region24: #{tpu_custom_call.1} parent=11 // pred_fallthru
          _
        // Predicated region
        $region25: #{tpu_custom_call.1} parent=11 // pred_check
          %p177 = pneg %p127
        $region26: #{tpu_custom_call.1} parent=11 // pred_check_branch
          %179 = sbr.rel (%p177) target = $region28
        $region27: #{tpu_custom_call.1} parent=11 // pred_region
          _
        $region28: #{tpu_custom_call.1} parent=11 // pred_fallthru
          _
      $region12: #{tpu_custom_call.1} parent=5 // pred_fallthru
        _
      %p180 = scmp.lt.s32.totalorder %s17, 2
      // Predicated region
      $region29: #{tpu_custom_call.1} parent=5 // pred_check
        %p181 = pneg %p180
      $region30: #{tpu_custom_call.1} parent=5 // pred_check_branch
        %183 = sbr.rel (%p181) target = $region32
      $region31: #{tpu_custom_call.1} parent=5 // pred_region
        // Predicated region
        $region33: #{tpu_custom_call.1} parent=31 // pred_check
          %p184 = pneg %p37
        $region34: #{tpu_custom_call.1} parent=31 // pred_check_branch
          %186 = sbr.rel (%p184) target = $region36
        $region35: #{tpu_custom_call.1} parent=31 // pred_region
          %s187 = sand.u32 %s27, 1
          %s188 = scalar_lea.sflag [#allocation3], %s187
          %s189 = sand.u32 %s27, 1
          %s190 = smul.addr %s189, 16
          %s191 = scalar_lea.vmem [#allocation2], %s190
          %s193 = ssub.s32 256, 256
          %194 = vsyncadd %s188, %s193
          %s195 = smul.addr %s17, 2
          %s196 = smul.addr %s195, 128
          %s197 = scalar_lea.hbm %s0, %s196
          %s199 = sshll.u32 %s191, 4
          %s200 = int_to_ptr.vmem [resolvable:$true] %s199
          %202 = dma.hbm_to_vmem [thread:$0]  %s197, 256, %s200, %s188
        $region36: #{tpu_custom_call.1} parent=31 // pred_fallthru
          _
      $region32: #{tpu_custom_call.1} parent=5 // pred_fallthru
        _
      %p203 = scmp.le.s32.totalorder 1, %s17
      %p204 = scmp.lt.s32.totalorder %s17, 3
      %p205 = pnand %p203, %p204
      %p206 = pneg %p205
      // Predicated region
      $region37: #{tpu_custom_call.1} parent=5 // pred_check
        _
      $region38: #{tpu_custom_call.1} parent=5 // pred_check_branch
        %208 = sbr.rel (%p205) target = $region40
      $region39: #{tpu_custom_call.1} parent=5 // pred_region
        %s209 = ssub.s32 %s17, 1
        %s210 = sand.u32 %s30, 1
        %s211 = scalar_lea.sflag [#allocation3], %s210
        %s212 = sand.u32 %s30, 1
        %s213 = smul.addr %s212, 16
        %s214 = scalar_lea.vmem [#allocation2], %s213
        // Predicated region
        $region41: #{tpu_custom_call.1} parent=39 // pred_check
          %p215 = pneg %p43
        $region42: #{tpu_custom_call.1} parent=39 // pred_check_branch
          %217 = sbr.rel (%p215) target = $region44
        $region43: #{tpu_custom_call.1} parent=39 // pred_region
          %218 = dma.done %s211, 256
        $region44: #{tpu_custom_call.1} parent=39 // pred_fallthru
          _
        %s219 = sand.u32 %s30, 1
        %s220 = scalar_lea.sflag [#allocation3], %s219
        %s221 = sand.u32 %s30, 1
        %s222 = smul.addr %s221, 16
        %s223 = scalar_lea.vmem [#allocation2], %s222
        %p224 = pneg %p43
        %p225 = pneg %p40
        %p226 = pneg %p64
        %p227 = pneg %p61
        %p228 = pneg %p85
        %p229 = pneg %p82
        %p230 = pneg %p106
        %p231 = pneg %p103
        %p232 = pneg %p127
        %p233 = pneg %p124
        %p234 = pneg %p153
        %p235 = pneg %p150
        %s236 = sand.u32 %s140, 1
        %s237 = scalar_lea.sflag [#allocation4], %s236
        %s238 = sand.u32 %s140, 1
        %s239 = smul.addr %s238, 8
        %s240 = scalar_lea.vmem [#allocation5], %s239
        %v242 = vld [vmem:[%s214] sm:$0xff]
        %v243 = vld [vmem:[%s214 + $0x8] sm:$0xff]
        %v244 = vld [vmem:[%s1] sm:$0xff]
        %v245 = vld [vmem:[%s2] sm:$0xff]
        %248 = vrot.lane.b32.xlu0 %v242, 1
        %v249 = vpop.permute.xlu0 %248
        %250 = vrot.lane.b32.xlu0 %v243, 1
        %v251 = vpop.permute.xlu0 %250
        %vm252 = vcmask 7168
        %v253 = vsel %vm252, %v249, %v251
        %v256 = vsel %vm252, 0.0, %v249
        %257 = vrot.lane.b32.xlu0 %v242, 127
        %v258 = vpop.permute.xlu0 %257
        %259 = vrot.lane.b32.xlu0 %v243, 127
        %v260 = vpop.permute.xlu0 %259
        %vm261 = vcmask 1039360
        %v262 = vsel %vm261, %v258, %v260
        %v265 = vsel %vm261, %v260, 0.0
        %267 = vset.pattern.permute.xlu0 0
        %268 = vperm.xlu0 %267, %v244
        %v269 = vpop.permute.xlu0 %268
        %v271 = vmul.f32 %v269, %v256
        %v272 = vmul.f32 %v269, %v253
        %273 = vset.pattern.permute.xlu0 1
        %274 = vperm.xlu0 %273, %v244
        %v275 = vpop.permute.xlu0 %274
        %v277 = vmul.f32 %v275, %v242
        %v278 = vmul.f32 %v275, %v243
        %v279 = vadd.f32 %v271, %v277
        %v280 = vadd.f32 %v272, %v278
        %281 = vset.pattern.permute.xlu0 2
        %282 = vperm.xlu0 %281, %v244
        %v283 = vpop.permute.xlu0 %282
        %v285 = vmul.f32 %v283, %v262
        %v286 = vmul.f32 %v283, %v265
        %v287 = vadd.f32 %v279, %v285
        %v288 = vadd.f32 %v280, %v286
        %v289 = vpack.c.bf16 %v245, %v245
        %v290 = vpack.c.bf16 %v287, %v287
        %v291 = vpack.c.bf16 %v288, %v288
        %vm292 = vcmask 64512
        %v294 = vsel %vm292, %v289, 0
        %vm296 = vcmask 1043456
        %v298 = vsel %vm296, %v290, 0
        %v301 = vsel %vm296, %v291, 0
        %303 = vmatprep.subr.bf16.mxu0 0
        %304 = vmatpush1.bf16.msra.mxu0 0
        %305 = vmatprep.subr.bf16.mxu0 0
        %306 = vmatpush1.bf16.msra.mxu0 0
        %307 = vmatprep.subr.bf16.mxu0 0
        %308 = vmatpush1.bf16.msra.mxu0 0
        %309 = vmatprep.subr.bf16.mxu0 0
        %310 = vmatpush1.bf16.msra.mxu0 0
        %311 = vmatprep.subr.bf16.mxu0 0
        %312 = vmatpush1.bf16.msra.mxu0 0
        %313 = vmatprep.subr.bf16.mxu0 0
        %314 = vmatpush1.bf16.msra.mxu0 0
        %315 = vmatprep.subr.bf16.mxu0 0
        %316 = vmatpush1.bf16.msra.mxu0 0
        %317 = vmatprep.subr.bf16.mxu0 %v301
        %318 = vmatpush1.bf16.msra.mxu0 %v298
        %319 = vmatprep.subr.bf16.mxu0 0
        %320 = vmatpush2.bf16.msra.mxu0 0
        %321 = vmatprep.subr.bf16.mxu0 0
        %322 = vmatpush2.bf16.msra.mxu0 0
        %323 = vmatprep.subr.bf16.mxu0 0
        %324 = vmatpush2.bf16.msra.mxu0 0
        %325 = vmatprep.subr.bf16.mxu0 0
        %326 = vmatpush2.bf16.msra.mxu0 0
        %327 = vmatprep.subr.bf16.mxu0 0
        %328 = vmatpush2.bf16.msra.mxu0 0
        %329 = vmatprep.subr.bf16.mxu0 0
        %330 = vmatpush2.bf16.msra.mxu0 0
        %331 = vmatprep.subr.bf16.mxu0 0
        %332 = vmatpush2.bf16.msra.mxu0 0
        %333 = vmatprep.subr.bf16.mxu0 0
        %334 = vmatpush2.bf16.msra.mxu0 0
        %335 = vmatprep.mubr.bf16.mxu0 0
        %336 = vmatmul.mubr.bf16.gmra.mxu0 %v294
        %v337 = vpop.f32.mrf.mxu0
        %v338 = vadd.f32 0.0, %v337
        %v339 = vpop.f32.mrf.mxu0
        %v340 = vadd.f32 0.0, %v339
        %v341 = vpop.f32.mrf.mxu0
        %v342 = vpop.f32.mrf.mxu0
        %343 = vdwg.mxu0
        %v344 = vadd.f32 %v338, %v340
        %345 = vadd.xlane.f32.xlu0 %v344
        %v346 = vpop.xlane.xlu0 %345
        %v347 = vmul.f32 %v346, 0.00390625
        %v348 = vmul.f32 %v338, %v338
        %v349 = vmul.f32 %v340, %v340
        %v350 = vadd.f32 %v348, %v349
        %351 = vadd.xlane.f32.xlu0 %v350
        %v352 = vpop.xlane.xlu0 %351
        %v353 = vmul.f32 %v352, 0.00390625
        %v354 = vmul.f32 %v347, %v347
        %v355 = vsub.f32 %v353, %v354
        %v356 = vmax.f32 %v355, 0.0
        %v357 = vsub.f32 %v338, %v347
        %v358 = vsub.f32 %v340, %v347
        %v359 = vadd.f32 %v356, 1e-05
        %v360 = vrsqrt.pop %v359
        %v361 = vmul.f32 %v357, %v360
        %v362 = vmul.f32 %v358, %v360
        %v363 = vld [vmem:[%s3] sm:$0xff]
        %365 = vset.pattern.permute.xlu0 0
        %366 = vperm.xlu0 %365, %v363
        %v367 = vpop.permute.xlu0 %366
        %v369 = vmul.f32 %v361, %v367
        %v370 = vmul.f32 %v362, %v367
        %v371 = vld [vmem:[%s4] sm:$0xff]
        %373 = vset.pattern.permute.xlu0 0
        %374 = vperm.xlu0 %373, %v371
        %v375 = vpop.permute.xlu0 %374
        %v377 = vadd.f32 %v369, %v375
        %v378 = vadd.f32 %v370, %v375
        %v379 = vxor.u32 %v377, 2147483648
        %v380 = vxor.u32 %v378, 2147483648
        %v381 = vmul.f32 %v379, 1.442695
        %v382 = vpow.pop %v381
        %v383 = vmul.f32 %v380, 1.442695
        %v384 = vpow.pop %v383
        %v385 = vadd.f32 %v382, 1.0
        %v386 = vadd.f32 %v384, 1.0
        %v387 = vrcp.pop %v385
        %v388 = vmul.f32 1.0, %v387
        %v389 = vrcp.pop %v386
        %v390 = vmul.f32 1.0, %v389
        %v391 = vmul.f32 %v388, 12.0
        %v392 = vmul.f32 %v390, 12.0
        %v393 = vmul.f32 %v391, 1.442695
        %v394 = vpow.pop %v393
        %v395 = vmul.f32 %v392, 1.442695
        %v396 = vpow.pop %v395
        %v397 = vmul.f32 %v242, %v394
        %v398 = vmul.f32 %v243, %v396
        %400 = vrot.lane.b32.xlu0 %v397, 126
        %v401 = vpop.permute.xlu0 %400
        %403 = vrot.lane.b32.xlu0 %v397, 124
        %v404 = vpop.permute.xlu0 %403
        %406 = vrot.lane.b32.xlu0 %v397, 122
        %v407 = vpop.permute.xlu0 %406
        %409 = vrot.lane.b32.xlu0 %v397, 120
        %v410 = vpop.permute.xlu0 %409
        %412 = vrot.lane.b32.xlu0 %v397, 118
        %v413 = vpop.permute.xlu0 %412
        %415 = vrot.lane.b32.xlu0 %v397, 116
        %v416 = vpop.permute.xlu0 %415
        %418 = vrot.lane.b32.xlu0 %v397, 114
        %v419 = vpop.permute.xlu0 %418
        %421 = vrot.lane.b32.xlu0 %v397, 112
        %v422 = vpop.permute.xlu0 %421
        %424 = vrot.lane.b32.xlu0 %v397, 110
        %v425 = vpop.permute.xlu0 %424
        %427 = vrot.lane.b32.xlu0 %v397, 108
        %v428 = vpop.permute.xlu0 %427
        %430 = vrot.lane.b32.xlu0 %v397, 106
        %v431 = vpop.permute.xlu0 %430
        %433 = vrot.lane.b32.xlu0 %v397, 104
        %v434 = vpop.permute.xlu0 %433
        %436 = vrot.lane.b32.xlu0 %v397, 102
        %v437 = vpop.permute.xlu0 %436
        %439 = vrot.lane.b32.xlu0 %v397, 100
        %v440 = vpop.permute.xlu0 %439
        %442 = vrot.lane.b32.xlu0 %v397, 98
        %v443 = vpop.permute.xlu0 %442
        %445 = vrot.lane.b32.xlu0 %v397, 96
        %v446 = vpop.permute.xlu0 %445
        %448 = vrot.lane.b32.xlu0 %v397, 94
        %v449 = vpop.permute.xlu0 %448
        %451 = vrot.lane.b32.xlu0 %v397, 92
        %v452 = vpop.permute.xlu0 %451
        %454 = vrot.lane.b32.xlu0 %v397, 90
        %v455 = vpop.permute.xlu0 %454
        %457 = vrot.lane.b32.xlu0 %v397, 88
        %v458 = vpop.permute.xlu0 %457
        %460 = vrot.lane.b32.xlu0 %v397, 86
        %v461 = vpop.permute.xlu0 %460
        %463 = vrot.lane.b32.xlu0 %v397, 84
        %v464 = vpop.permute.xlu0 %463
        %466 = vrot.lane.b32.xlu0 %v397, 82
        %v467 = vpop.permute.xlu0 %466
        %469 = vrot.lane.b32.xlu0 %v397, 80
        %v470 = vpop.permute.xlu0 %469
        %472 = vrot.lane.b32.xlu0 %v397, 78
        %v473 = vpop.permute.xlu0 %472
        %475 = vrot.lane.b32.xlu0 %v397, 76
        %v476 = vpop.permute.xlu0 %475
        %478 = vrot.lane.b32.xlu0 %v397, 74
        %v479 = vpop.permute.xlu0 %478
        %481 = vrot.lane.b32.xlu0 %v397, 72
        %v482 = vpop.permute.xlu0 %481
        %484 = vrot.lane.b32.xlu0 %v397, 70
        %v485 = vpop.permute.xlu0 %484
        %487 = vrot.lane.b32.xlu0 %v397, 68
        %v488 = vpop.permute.xlu0 %487
        %490 = vrot.lane.b32.xlu0 %v397, 66
        %v491 = vpop.permute.xlu0 %490
        %493 = vrot.lane.b32.xlu0 %v397, 64
        %v494 = vpop.permute.xlu0 %493
        %496 = vrot.lane.b32.xlu0 %v397, 62
        %v497 = vpop.permute.xlu0 %496
        %499 = vrot.lane.b32.xlu0 %v397, 60
        %v500 = vpop.permute.xlu0 %499
        %502 = vrot.lane.b32.xlu0 %v397, 58
        %v503 = vpop.permute.xlu0 %502
        %505 = vrot.lane.b32.xlu0 %v397, 56
        %v506 = vpop.permute.xlu0 %505
        %508 = vrot.lane.b32.xlu0 %v397, 54
        %v509 = vpop.permute.xlu0 %508
        %511 = vrot.lane.b32.xlu0 %v397, 52
        %v512 = vpop.permute.xlu0 %511
        %514 = vrot.lane.b32.xlu0 %v397, 50
        %v515 = vpop.permute.xlu0 %514
        %517 = vrot.lane.b32.xlu0 %v397, 48
        %v518 = vpop.permute.xlu0 %517
        %520 = vrot.lane.b32.xlu0 %v397, 46
        %v521 = vpop.permute.xlu0 %520
        %523 = vrot.lane.b32.xlu0 %v397, 44
        %v524 = vpop.permute.xlu0 %523
        %526 = vrot.lane.b32.xlu0 %v397, 42
        %v527 = vpop.permute.xlu0 %526
        %529 = vrot.lane.b32.xlu0 %v397, 40
        %v530 = vpop.permute.xlu0 %529
        %532 = vrot.lane.b32.xlu0 %v397, 38
        %v533 = vpop.permute.xlu0 %532
        %535 = vrot.lane.b32.xlu0 %v397, 36
        %v536 = vpop.permute.xlu0 %535
        %538 = vrot.lane.b32.xlu0 %v397, 34
        %v539 = vpop.permute.xlu0 %538
        %541 = vrot.lane.b32.xlu0 %v397, 32
        %v542 = vpop.permute.xlu0 %541
        %544 = vrot.lane.b32.xlu0 %v397, 30
        %v545 = vpop.permute.xlu0 %544
        %547 = vrot.lane.b32.xlu0 %v397, 28
        %v548 = vpop.permute.xlu0 %547
        %550 = vrot.lane.b32.xlu0 %v397, 26
        %v551 = vpop.permute.xlu0 %550
        %553 = vrot.lane.b32.xlu0 %v397, 24
        %v554 = vpop.permute.xlu0 %553
        %556 = vrot.lane.b32.xlu0 %v397, 22
        %v557 = vpop.permute.xlu0 %556
        %559 = vrot.lane.b32.xlu0 %v397, 20
        %v560 = vpop.permute.xlu0 %559
        %562 = vrot.lane.b32.xlu0 %v397, 18
        %v563 = vpop.permute.xlu0 %562
        %565 = vrot.lane.b32.xlu0 %v397, 16
        %v566 = vpop.permute.xlu0 %565
        %568 = vrot.lane.b32.xlu0 %v397, 14
        %v569 = vpop.permute.xlu0 %568
        %571 = vrot.lane.b32.xlu0 %v397, 12
        %v572 = vpop.permute.xlu0 %571
        %574 = vrot.lane.b32.xlu0 %v397, 10
        %v575 = vpop.permute.xlu0 %574
        %577 = vrot.lane.b32.xlu0 %v397, 8
        %v578 = vpop.permute.xlu0 %577
        %580 = vrot.lane.b32.xlu0 %v397, 6
        %v581 = vpop.permute.xlu0 %580
        %583 = vrot.lane.b32.xlu0 %v397, 4
        %v584 = vpop.permute.xlu0 %583
        %586 = vrot.lane.b32.xlu0 %v397, 2
        %v587 = vpop.permute.xlu0 %586
        %590 = vrot.lane.b32.xlu0 %v398, 126
        %v591 = vpop.permute.xlu0 %590
        %593 = vrot.lane.b32.xlu0 %v398, 124
        %v594 = vpop.permute.xlu0 %593
        %596 = vrot.lane.b32.xlu0 %v398, 122
        %v597 = vpop.permute.xlu0 %596
        %599 = vrot.lane.b32.xlu0 %v398, 120
        %v600 = vpop.permute.xlu0 %599
        %602 = vrot.lane.b32.xlu0 %v398, 118
        %v603 = vpop.permute.xlu0 %602
        %605 = vrot.lane.b32.xlu0 %v398, 116
        %v606 = vpop.permute.xlu0 %605
        %608 = vrot.lane.b32.xlu0 %v398, 114
        %v609 = vpop.permute.xlu0 %608
        %611 = vrot.lane.b32.xlu0 %v398, 112
        %v612 = vpop.permute.xlu0 %611
        %614 = vrot.lane.b32.xlu0 %v398, 110
        %v615 = vpop.permute.xlu0 %614
        %617 = vrot.lane.b32.xlu0 %v398, 108
        %v618 = vpop.permute.xlu0 %617
        %620 = vrot.lane.b32.xlu0 %v398, 106
        %v621 = vpop.permute.xlu0 %620
        %623 = vrot.lane.b32.xlu0 %v398, 104
        %v624 = vpop.permute.xlu0 %623
        %626 = vrot.lane.b32.xlu0 %v398, 102
        %v627 = vpop.permute.xlu0 %626
        %629 = vrot.lane.b32.xlu0 %v398, 100
        %v630 = vpop.permute.xlu0 %629
        %632 = vrot.lane.b32.xlu0 %v398, 98
        %v633 = vpop.permute.xlu0 %632
        %635 = vrot.lane.b32.xlu0 %v398, 96
        %v636 = vpop.permute.xlu0 %635
        %638 = vrot.lane.b32.xlu0 %v398, 94
        %v639 = vpop.permute.xlu0 %638
        %641 = vrot.lane.b32.xlu0 %v398, 92
        %v642 = vpop.permute.xlu0 %641
        %644 = vrot.lane.b32.xlu0 %v398, 90
        %v645 = vpop.permute.xlu0 %644
        %647 = vrot.lane.b32.xlu0 %v398, 88
        %v648 = vpop.permute.xlu0 %647
        %650 = vrot.lane.b32.xlu0 %v398, 86
        %v651 = vpop.permute.xlu0 %650
        %653 = vrot.lane.b32.xlu0 %v398, 84
        %v654 = vpop.permute.xlu0 %653
        %656 = vrot.lane.b32.xlu0 %v398, 82
        %v657 = vpop.permute.xlu0 %656
        %659 = vrot.lane.b32.xlu0 %v398, 80
        %v660 = vpop.permute.xlu0 %659
        %662 = vrot.lane.b32.xlu0 %v398, 78
        %v663 = vpop.permute.xlu0 %662
        %665 = vrot.lane.b32.xlu0 %v398, 76
        %v666 = vpop.permute.xlu0 %665
        %668 = vrot.lane.b32.xlu0 %v398, 74
        %v669 = vpop.permute.xlu0 %668
        %671 = vrot.lane.b32.xlu0 %v398, 72
        %v672 = vpop.permute.xlu0 %671
        %674 = vrot.lane.b32.xlu0 %v398, 70
        %v675 = vpop.permute.xlu0 %674
        %677 = vrot.lane.b32.xlu0 %v398, 68
        %v678 = vpop.permute.xlu0 %677
        %680 = vrot.lane.b32.xlu0 %v398, 66
        %v681 = vpop.permute.xlu0 %680
        %683 = vrot.lane.b32.xlu0 %v398, 64
        %v684 = vpop.permute.xlu0 %683
        %686 = vrot.lane.b32.xlu0 %v398, 62
        %v687 = vpop.permute.xlu0 %686
        %689 = vrot.lane.b32.xlu0 %v398, 60
        %v690 = vpop.permute.xlu0 %689
        %692 = vrot.lane.b32.xlu0 %v398, 58
        %v693 = vpop.permute.xlu0 %692
        %695 = vrot.lane.b32.xlu0 %v398, 56
        %v696 = vpop.permute.xlu0 %695
        %698 = vrot.lane.b32.xlu0 %v398, 54
        %v699 = vpop.permute.xlu0 %698
        %701 = vrot.lane.b32.xlu0 %v398, 52
        %v702 = vpop.permute.xlu0 %701
        %704 = vrot.lane.b32.xlu0 %v398, 50
        %v705 = vpop.permute.xlu0 %704
        %707 = vrot.lane.b32.xlu0 %v398, 48
        %v708 = vpop.permute.xlu0 %707
        %710 = vrot.lane.b32.xlu0 %v398, 46
        %v711 = vpop.permute.xlu0 %710
        %713 = vrot.lane.b32.xlu0 %v398, 44
        %v714 = vpop.permute.xlu0 %713
        %716 = vrot.lane.b32.xlu0 %v398, 42
        %v717 = vpop.permute.xlu0 %716
        %719 = vrot.lane.b32.xlu0 %v398, 40
        %v720 = vpop.permute.xlu0 %719
        %722 = vrot.lane.b32.xlu0 %v398, 38
        %v723 = vpop.permute.xlu0 %722
        %725 = vrot.lane.b32.xlu0 %v398, 36
        %v726 = vpop.permute.xlu0 %725
        %728 = vrot.lane.b32.xlu0 %v398, 34
        %v729 = vpop.permute.xlu0 %728
        %731 = vrot.lane.b32.xlu0 %v398, 32
        %v732 = vpop.permute.xlu0 %731
        %734 = vrot.lane.b32.xlu0 %v398, 30
        %v735 = vpop.permute.xlu0 %734
        %737 = vrot.lane.b32.xlu0 %v398, 28
        %v738 = vpop.permute.xlu0 %737
        %740 = vrot.lane.b32.xlu0 %v398, 26
        %v741 = vpop.permute.xlu0 %740
        %743 = vrot.lane.b32.xlu0 %v398, 24
        %v744 = vpop.permute.xlu0 %743
        %746 = vrot.lane.b32.xlu0 %v398, 22
        %v747 = vpop.permute.xlu0 %746
        %749 = vrot.lane.b32.xlu0 %v398, 20
        %v750 = vpop.permute.xlu0 %749
        %752 = vrot.lane.b32.xlu0 %v398, 18
        %v753 = vpop.permute.xlu0 %752
        %755 = vrot.lane.b32.xlu0 %v398, 16
        %v756 = vpop.permute.xlu0 %755
        %758 = vrot.lane.b32.xlu0 %v398, 14
        %v759 = vpop.permute.xlu0 %758
        %761 = vrot.lane.b32.xlu0 %v398, 12
        %v762 = vpop.permute.xlu0 %761
        %764 = vrot.lane.b32.xlu0 %v398, 10
        %v765 = vpop.permute.xlu0 %764
        %767 = vrot.lane.b32.xlu0 %v398, 8
        %v768 = vpop.permute.xlu0 %767
        %770 = vrot.lane.b32.xlu0 %v398, 6
        %v771 = vpop.permute.xlu0 %770
        %773 = vrot.lane.b32.xlu0 %v398, 4
        %v774 = vpop.permute.xlu0 %773
        %776 = vrot.lane.b32.xlu0 %v398, 2
        %v777 = vpop.permute.xlu0 %776
        %v779 = vcombine.low %v397, %v404
        %v780 = vcombine.high %v397, %v404
        %v782 = vunpack.c.l.s4 1983009808
        %v783 = vunpack.c.0.s8 %v782
        %v784 = vlaneseq
        %v785 = vshrl.u32 %v784, 7
        %v786 = vsub.s32 %v783, %v785
        %v787 = vrot.slane %v779, %v786
        %v789 = vunpack.c.l.s4 1983009808
        %v790 = vunpack.c.0.s8 %v789
        %v791 = vlaneseq
        %v792 = vshrl.u32 %v791, 7
        %v793 = vsub.s32 %v790, %v792
        %v794 = vrot.slane %v780, %v793
        %v795 = vcombine.low %v401, %v407
        %v796 = vcombine.high %v401, %v407
        %v798 = vunpack.c.l.s4 1983009808
        %v799 = vunpack.c.0.s8 %v798
        %v800 = vlaneseq
        %v801 = vshrl.u32 %v800, 7
        %v802 = vsub.s32 %v799, %v801
        %v803 = vrot.slane %v795, %v802
        %v805 = vunpack.c.l.s4 1983009808
        %v806 = vunpack.c.0.s8 %v805
        %v807 = vlaneseq
        %v808 = vshrl.u32 %v807, 7
        %v809 = vsub.s32 %v806, %v808
        %v810 = vrot.slane %v796, %v809
        %v811 = vcombine.low %v410, %v416
        %v812 = vcombine.high %v410, %v416
        %v814 = vunpack.c.l.s4 1983009808
        %v815 = vunpack.c.0.s8 %v814
        %v816 = vlaneseq
        %v817 = vshrl.u32 %v816, 7
        %v818 = vsub.s32 %v815, %v817
        %v819 = vrot.slane %v811, %v818
        %v821 = vunpack.c.l.s4 1983009808
        %v822 = vunpack.c.0.s8 %v821
        %v823 = vlaneseq
        %v824 = vshrl.u32 %v823, 7
        %v825 = vsub.s32 %v822, %v824
        %v826 = vrot.slane %v812, %v825
        %v827 = vcombine.low %v413, %v419
        %v828 = vcombine.high %v413, %v419
        %v830 = vunpack.c.l.s4 1983009808
        %v831 = vunpack.c.0.s8 %v830
        %v832 = vlaneseq
        %v833 = vshrl.u32 %v832, 7
        %v834 = vsub.s32 %v831, %v833
        %v835 = vrot.slane %v827, %v834
        %v837 = vunpack.c.l.s4 1983009808
        %v838 = vunpack.c.0.s8 %v837
        %v839 = vlaneseq
        %v840 = vshrl.u32 %v839, 7
        %v841 = vsub.s32 %v838, %v840
        %v842 = vrot.slane %v828, %v841
        %v843 = vcombine.low %v787, %v803
        %v844 = vcombine.high %v787, %v803
        %v846 = vunpack.c.l.s4 1934713408
        %v847 = vunpack.c.0.s8 %v846
        %v848 = vlaneseq
        %v849 = vshrl.u32 %v848, 7
        %v850 = vsub.s32 %v847, %v849
        %v851 = vrot.slane %v843, %v850
        %v853 = vunpack.c.l.s4 1934713408
        %v854 = vunpack.c.0.s8 %v853
        %v855 = vlaneseq
        %v856 = vshrl.u32 %v855, 7
        %v857 = vsub.s32 %v854, %v856
        %v858 = vrot.slane %v844, %v857
        %v859 = vcombine.low %v794, %v810
        %v860 = vcombine.high %v794, %v810
        %v862 = vunpack.c.l.s4 1934713408
        %v863 = vunpack.c.0.s8 %v862
        %v864 = vlaneseq
        %v865 = vshrl.u32 %v864, 7
        %v866 = vsub.s32 %v863, %v865
        %v867 = vrot.slane %v859, %v866
        %v869 = vunpack.c.l.s4 1934713408
        %v870 = vunpack.c.0.s8 %v869
        %v871 = vlaneseq
        %v872 = vshrl.u32 %v871, 7
        %v873 = vsub.s32 %v870, %v872
        %v874 = vrot.slane %v860, %v873
        %v875 = vcombine.low %v819, %v835
        %v876 = vcombine.high %v819, %v835
        %v878 = vunpack.c.l.s4 1934713408
        %v879 = vunpack.c.0.s8 %v878
        %v880 = vlaneseq
        %v881 = vshrl.u32 %v880, 7
        %v882 = vsub.s32 %v879, %v881
        %v883 = vrot.slane %v875, %v882
        %v885 = vunpack.c.l.s4 1934713408
        %v886 = vunpack.c.0.s8 %v885
        %v887 = vlaneseq
        %v888 = vshrl.u32 %v887, 7
        %v889 = vsub.s32 %v886, %v888
        %v890 = vrot.slane %v876, %v889
        %v891 = vcombine.low %v826, %v842
        %v892 = vcombine.high %v826, %v842
        %v894 = vunpack.c.l.s4 1934713408
        %v895 = vunpack.c.0.s8 %v894
        %v896 = vlaneseq
        %v897 = vshrl.u32 %v896, 7
        %v898 = vsub.s32 %v895, %v897
        %v899 = vrot.slane %v891, %v898
        %v901 = vunpack.c.l.s4 1934713408
        %v902 = vunpack.c.0.s8 %v901
        %v903 = vlaneseq
        %v904 = vshrl.u32 %v903, 7
        %v905 = vsub.s32 %v902, %v904
        %v906 = vrot.slane %v892, %v905
        %v907 = vcombine.low %v851, %v883
        %v908 = vcombine.high %v851, %v883
        %v909 = vcombine.low %v858, %v890
        %v910 = vcombine.high %v858, %v890
        %v911 = vcombine.low %v867, %v899
        %v912 = vcombine.high %v867, %v899
        %v913 = vcombine.low %v874, %v906
        %v914 = vcombine.high %v874, %v906
        %v915 = vcombine.low %v422, %v428
        %v916 = vcombine.high %v422, %v428
        %v918 = vunpack.c.l.s4 1983009808
        %v919 = vunpack.c.0.s8 %v918
        %v920 = vlaneseq
        %v921 = vshrl.u32 %v920, 7
        %v922 = vsub.s32 %v919, %v921
        %v923 = vrot.slane %v915, %v922
        %v925 = vunpack.c.l.s4 1983009808
        %v926 = vunpack.c.0.s8 %v925
        %v927 = vlaneseq
        %v928 = vshrl.u32 %v927, 7
        %v929 = vsub.s32 %v926, %v928
        %v930 = vrot.slane %v916, %v929
        %v931 = vcombine.low %v425, %v431
        %v932 = vcombine.high %v425, %v431
        %v934 = vunpack.c.l.s4 1983009808
        %v935 = vunpack.c.0.s8 %v934
        %v936 = vlaneseq
        %v937 = vshrl.u32 %v936, 7
        %v938 = vsub.s32 %v935, %v937
        %v939 = vrot.slane %v931, %v938
        %v941 = vunpack.c.l.s4 1983009808
        %v942 = vunpack.c.0.s8 %v941
        %v943 = vlaneseq
        %v944 = vshrl.u32 %v943, 7
        %v945 = vsub.s32 %v942, %v944
        %v946 = vrot.slane %v932, %v945
        %v947 = vcombine.low %v434, %v440
        %v948 = vcombine.high %v434, %v440
        %v950 = vunpack.c.l.s4 1983009808
        %v951 = vunpack.c.0.s8 %v950
        %v952 = vlaneseq
        %v953 = vshrl.u32 %v952, 7
        %v954 = vsub.s32 %v951, %v953
        %v955 = vrot.slane %v947, %v954
        %v957 = vunpack.c.l.s4 1983009808
        %v958 = vunpack.c.0.s8 %v957
        %v959 = vlaneseq
        %v960 = vshrl.u32 %v959, 7
        %v961 = vsub.s32 %v958, %v960
        %v962 = vrot.slane %v948, %v961
        %v963 = vcombine.low %v437, %v443
        %v964 = vcombine.high %v437, %v443
        %v966 = vunpack.c.l.s4 1983009808
        %v967 = vunpack.c.0.s8 %v966
        %v968 = vlaneseq
        %v969 = vshrl.u32 %v968, 7
        %v970 = vsub.s32 %v967, %v969
        %v971 = vrot.slane %v963, %v970
        %v973 = vunpack.c.l.s4 1983009808
        %v974 = vunpack.c.0.s8 %v973
        %v975 = vlaneseq
        %v976 = vshrl.u32 %v975, 7
        %v977 = vsub.s32 %v974, %v976
        %v978 = vrot.slane %v964, %v977
        %v979 = vcombine.low %v923, %v939
        %v980 = vcombine.high %v923, %v939
        %v982 = vunpack.c.l.s4 1934713408
        %v983 = vunpack.c.0.s8 %v982
        %v984 = vlaneseq
        %v985 = vshrl.u32 %v984, 7
        %v986 = vsub.s32 %v983, %v985
        %v987 = vrot.slane %v979, %v986
        %v989 = vunpack.c.l.s4 1934713408
        %v990 = vunpack.c.0.s8 %v989
        %v991 = vlaneseq
        %v992 = vshrl.u32 %v991, 7
        %v993 = vsub.s32 %v990, %v992
        %v994 = vrot.slane %v980, %v993
        %v995 = vcombine.low %v930, %v946
        %v996 = vcombine.high %v930, %v946
        %v998 = vunpack.c.l.s4 1934713408
        %v999 = vunpack.c.0.s8 %v998
        %v1000 = vlaneseq
        %v1001 = vshrl.u32 %v1000, 7
        %v1002 = vsub.s32 %v999, %v1001
        %v1003 = vrot.slane %v995, %v1002
        %v1005 = vunpack.c.l.s4 1934713408
        %v1006 = vunpack.c.0.s8 %v1005
        %v1007 = vlaneseq
        %v1008 = vshrl.u32 %v1007, 7
        %v1009 = vsub.s32 %v1006, %v1008
        %v1010 = vrot.slane %v996, %v1009
        %v1011 = vcombine.low %v955, %v971
        %v1012 = vcombine.high %v955, %v971
        %v1014 = vunpack.c.l.s4 1934713408
        %v1015 = vunpack.c.0.s8 %v1014
        %v1016 = vlaneseq
        %v1017 = vshrl.u32 %v1016, 7
        %v1018 = vsub.s32 %v1015, %v1017
        %v1019 = vrot.slane %v1011, %v1018
        %v1021 = vunpack.c.l.s4 1934713408
        %v1022 = vunpack.c.0.s8 %v1021
        %v1023 = vlaneseq
        %v1024 = vshrl.u32 %v1023, 7
        %v1025 = vsub.s32 %v1022, %v1024
        %v1026 = vrot.slane %v1012, %v1025
        %v1027 = vcombine.low %v962, %v978
        %v1028 = vcombine.high %v962, %v978
        %v1030 = vunpack.c.l.s4 1934713408
        %v1031 = vunpack.c.0.s8 %v1030
        %v1032 = vlaneseq
        %v1033 = vshrl.u32 %v1032, 7
        %v1034 = vsub.s32 %v1031, %v1033
        %v1035 = vrot.slane %v1027, %v1034
        %v1037 = vunpack.c.l.s4 1934713408
        %v1038 = vunpack.c.0.s8 %v1037
        %v1039 = vlaneseq
        %v1040 = vshrl.u32 %v1039, 7
        %v1041 = vsub.s32 %v1038, %v1040
        %v1042 = vrot.slane %v1028, %v1041
        %v1043 = vcombine.low %v987, %v1019
        %v1044 = vcombine.high %v987, %v1019
        %v1045 = vcombine.low %v994, %v1026
        %v1046 = vcombine.high %v994, %v1026
        %v1047 = vcombine.low %v1003, %v1035
        %v1048 = vcombine.high %v1003, %v1035
        %v1049 = vcombine.low %v1010, %v1042
        %v1050 = vcombine.high %v1010, %v1042
        %v1051 = vcombine.low %v446, %v452
        %v1052 = vcombine.high %v446, %v452
        %v1054 = vunpack.c.l.s4 1983009808
        %v1055 = vunpack.c.0.s8 %v1054
        %v1056 = vlaneseq
        %v1057 = vshrl.u32 %v1056, 7
        %v1058 = vsub.s32 %v1055, %v1057
        %v1059 = vrot.slane %v1051, %v1058
        %v1061 = vunpack.c.l.s4 1983009808
        %v1062 = vunpack.c.0.s8 %v1061
        %v1063 = vlaneseq
        %v1064 = vshrl.u32 %v1063, 7
        %v1065 = vsub.s32 %v1062, %v1064
        %v1066 = vrot.slane %v1052, %v1065
        %v1067 = vcombine.low %v449, %v455
        %v1068 = vcombine.high %v449, %v455
        %v1070 = vunpack.c.l.s4 1983009808
        %v1071 = vunpack.c.0.s8 %v1070
        %v1072 = vlaneseq
        %v1073 = vshrl.u32 %v1072, 7
        %v1074 = vsub.s32 %v1071, %v1073
        %v1075 = vrot.slane %v1067, %v1074
        %v1077 = vunpack.c.l.s4 1983009808
        %v1078 = vunpack.c.0.s8 %v1077
        %v1079 = vlaneseq
        %v1080 = vshrl.u32 %v1079, 7
        %v1081 = vsub.s32 %v1078, %v1080
        %v1082 = vrot.slane %v1068, %v1081
        %v1083 = vcombine.low %v458, %v464
        %v1084 = vcombine.high %v458, %v464
        %v1086 = vunpack.c.l.s4 1983009808
        %v1087 = vunpack.c.0.s8 %v1086
        %v1088 = vlaneseq
        %v1089 = vshrl.u32 %v1088, 7
        %v1090 = vsub.s32 %v1087, %v1089
        %v1091 = vrot.slane %v1083, %v1090
        %v1093 = vunpack.c.l.s4 1983009808
        %v1094 = vunpack.c.0.s8 %v1093
        %v1095 = vlaneseq
        %v1096 = vshrl.u32 %v1095, 7
        %v1097 = vsub.s32 %v1094, %v1096
        %v1098 = vrot.slane %v1084, %v1097
        %v1099 = vcombine.low %v461, %v467
        %v1100 = vcombine.high %v461, %v467
        %v1102 = vunpack.c.l.s4 1983009808
        %v1103 = vunpack.c.0.s8 %v1102
        %v1104 = vlaneseq
        %v1105 = vshrl.u32 %v1104, 7
        %v1106 = vsub.s32 %v1103, %v1105
        %v1107 = vrot.slane %v1099, %v1106
        %v1109 = vunpack.c.l.s4 1983009808
        %v1110 = vunpack.c.0.s8 %v1109
        %v1111 = vlaneseq
        %v1112 = vshrl.u32 %v1111, 7
        %v1113 = vsub.s32 %v1110, %v1112
        %v1114 = vrot.slane %v1100, %v1113
        %v1115 = vcombine.low %v1059, %v1075
        %v1116 = vcombine.high %v1059, %v1075
        %v1118 = vunpack.c.l.s4 1934713408
        %v1119 = vunpack.c.0.s8 %v1118
        %v1120 = vlaneseq
        %v1121 = vshrl.u32 %v1120, 7
        %v1122 = vsub.s32 %v1119, %v1121
        %v1123 = vrot.slane %v1115, %v1122
        %v1125 = vunpack.c.l.s4 1934713408
        %v1126 = vunpack.c.0.s8 %v1125
        %v1127 = vlaneseq
        %v1128 = vshrl.u32 %v1127, 7
        %v1129 = vsub.s32 %v1126, %v1128
        %v1130 = vrot.slane %v1116, %v1129
        %v1131 = vcombine.low %v1066, %v1082
        %v1132 = vcombine.high %v1066, %v1082
        %v1134 = vunpack.c.l.s4 1934713408
        %v1135 = vunpack.c.0.s8 %v1134
        %v1136 = vlaneseq
        %v1137 = vshrl.u32 %v1136, 7
        %v1138 = vsub.s32 %v1135, %v1137
        %v1139 = vrot.slane %v1131, %v1138
        %v1141 = vunpack.c.l.s4 1934713408
        %v1142 = vunpack.c.0.s8 %v1141
        %v1143 = vlaneseq
        %v1144 = vshrl.u32 %v1143, 7
        %v1145 = vsub.s32 %v1142, %v1144
        %v1146 = vrot.slane %v1132, %v1145
        %v1147 = vcombine.low %v1091, %v1107
        %v1148 = vcombine.high %v1091, %v1107
        %v1150 = vunpack.c.l.s4 1934713408
        %v1151 = vunpack.c.0.s8 %v1150
        %v1152 = vlaneseq
        %v1153 = vshrl.u32 %v1152, 7
        %v1154 = vsub.s32 %v1151, %v1153
        %v1155 = vrot.slane %v1147, %v1154
        %v1157 = vunpack.c.l.s4 1934713408
        %v1158 = vunpack.c.0.s8 %v1157
        %v1159 = vlaneseq
        %v1160 = vshrl.u32 %v1159, 7
        %v1161 = vsub.s32 %v1158, %v1160
        %v1162 = vrot.slane %v1148, %v1161
        %v1163 = vcombine.low %v1098, %v1114
        %v1164 = vcombine.high %v1098, %v1114
        %v1166 = vunpack.c.l.s4 1934713408
        %v1167 = vunpack.c.0.s8 %v1166
        %v1168 = vlaneseq
        %v1169 = vshrl.u32 %v1168, 7
        %v1170 = vsub.s32 %v1167, %v1169
        %v1171 = vrot.slane %v1163, %v1170
        %v1173 = vunpack.c.l.s4 1934713408
        %v1174 = vunpack.c.0.s8 %v1173
        %v1175 = vlaneseq
        %v1176 = vshrl.u32 %v1175, 7
        %v1177 = vsub.s32 %v1174, %v1176
        %v1178 = vrot.slane %v1164, %v1177
        %v1179 = vcombine.low %v1123, %v1155
        %v1180 = vcombine.high %v1123, %v1155
        %v1181 = vcombine.low %v1130, %v1162
        %v1182 = vcombine.high %v1130, %v1162
        %v1183 = vcombine.low %v1139, %v1171
        %v1184 = vcombine.high %v1139, %v1171
        %v1185 = vcombine.low %v1146, %v1178
        %v1186 = vcombine.high %v1146, %v1178
        %v1187 = vcombine.low %v470, %v476
        %v1188 = vcombine.high %v470, %v476
        %v1190 = vunpack.c.l.s4 1983009808
        %v1191 = vunpack.c.0.s8 %v1190
        %v1192 = vlaneseq
        %v1193 = vshrl.u32 %v1192, 7
        %v1194 = vsub.s32 %v1191, %v1193
        %v1195 = vrot.slane %v1187, %v1194
        %v1197 = vunpack.c.l.s4 1983009808
        %v1198 = vunpack.c.0.s8 %v1197
        %v1199 = vlaneseq
        %v1200 = vshrl.u32 %v1199, 7
        %v1201 = vsub.s32 %v1198, %v1200
        %v1202 = vrot.slane %v1188, %v1201
        %v1203 = vcombine.low %v473, %v479
        %v1204 = vcombine.high %v473, %v479
        %v1206 = vunpack.c.l.s4 1983009808
        %v1207 = vunpack.c.0.s8 %v1206
        %v1208 = vlaneseq
        %v1209 = vshrl.u32 %v1208, 7
        %v1210 = vsub.s32 %v1207, %v1209
        %v1211 = vrot.slane %v1203, %v1210
        %v1213 = vunpack.c.l.s4 1983009808
        %v1214 = vunpack.c.0.s8 %v1213
        %v1215 = vlaneseq
        %v1216 = vshrl.u32 %v1215, 7
        %v1217 = vsub.s32 %v1214, %v1216
        %v1218 = vrot.slane %v1204, %v1217
        %v1219 = vcombine.low %v482, %v488
        %v1220 = vcombine.high %v482, %v488
        %v1222 = vunpack.c.l.s4 1983009808
        %v1223 = vunpack.c.0.s8 %v1222
        %v1224 = vlaneseq
        %v1225 = vshrl.u32 %v1224, 7
        %v1226 = vsub.s32 %v1223, %v1225
        %v1227 = vrot.slane %v1219, %v1226
        %v1229 = vunpack.c.l.s4 1983009808
        %v1230 = vunpack.c.0.s8 %v1229
        %v1231 = vlaneseq
        %v1232 = vshrl.u32 %v1231, 7
        %v1233 = vsub.s32 %v1230, %v1232
        %v1234 = vrot.slane %v1220, %v1233
        %v1235 = vcombine.low %v485, %v491
        %v1236 = vcombine.high %v485, %v491
        %v1238 = vunpack.c.l.s4 1983009808
        %v1239 = vunpack.c.0.s8 %v1238
        %v1240 = vlaneseq
        %v1241 = vshrl.u32 %v1240, 7
        %v1242 = vsub.s32 %v1239, %v1241
        %v1243 = vrot.slane %v1235, %v1242
        %v1245 = vunpack.c.l.s4 1983009808
        %v1246 = vunpack.c.0.s8 %v1245
        %v1247 = vlaneseq
        %v1248 = vshrl.u32 %v1247, 7
        %v1249 = vsub.s32 %v1246, %v1248
        %v1250 = vrot.slane %v1236, %v1249
        %v1251 = vcombine.low %v1195, %v1211
        %v1252 = vcombine.high %v1195, %v1211
        %v1254 = vunpack.c.l.s4 1934713408
        %v1255 = vunpack.c.0.s8 %v1254
        %v1256 = vlaneseq
        %v1257 = vshrl.u32 %v1256, 7
        %v1258 = vsub.s32 %v1255, %v1257
        %v1259 = vrot.slane %v1251, %v1258
        %v1261 = vunpack.c.l.s4 1934713408
        %v1262 = vunpack.c.0.s8 %v1261
        %v1263 = vlaneseq
        %v1264 = vshrl.u32 %v1263, 7
        %v1265 = vsub.s32 %v1262, %v1264
        %v1266 = vrot.slane %v1252, %v1265
        %v1267 = vcombine.low %v1202, %v1218
        %v1268 = vcombine.high %v1202, %v1218
        %v1270 = vunpack.c.l.s4 1934713408
        %v1271 = vunpack.c.0.s8 %v1270
        %v1272 = vlaneseq
        %v1273 = vshrl.u32 %v1272, 7
        %v1274 = vsub.s32 %v1271, %v1273
        %v1275 = vrot.slane %v1267, %v1274
        %v1277 = vunpack.c.l.s4 1934713408
        %v1278 = vunpack.c.0.s8 %v1277
        %v1279 = vlaneseq
        %v1280 = vshrl.u32 %v1279, 7
        %v1281 = vsub.s32 %v1278, %v1280
        %v1282 = vrot.slane %v1268, %v1281
        %v1283 = vcombine.low %v1227, %v1243
        %v1284 = vcombine.high %v1227, %v1243
        %v1286 = vunpack.c.l.s4 1934713408
        %v1287 = vunpack.c.0.s8 %v1286
        %v1288 = vlaneseq
        %v1289 = vshrl.u32 %v1288, 7
        %v1290 = vsub.s32 %v1287, %v1289
        %v1291 = vrot.slane %v1283, %v1290
        %v1293 = vunpack.c.l.s4 1934713408
        %v1294 = vunpack.c.0.s8 %v1293
        %v1295 = vlaneseq
        %v1296 = vshrl.u32 %v1295, 7
        %v1297 = vsub.s32 %v1294, %v1296
        %v1298 = vrot.slane %v1284, %v1297
        %v1299 = vcombine.low %v1234, %v1250
        %v1300 = vcombine.high %v1234, %v1250
        %v1302 = vunpack.c.l.s4 1934713408
        %v1303 = vunpack.c.0.s8 %v1302
        %v1304 = vlaneseq
        %v1305 = vshrl.u32 %v1304, 7
        %v1306 = vsub.s32 %v1303, %v1305
        %v1307 = vrot.slane %v1299, %v1306
        %v1309 = vunpack.c.l.s4 1934713408
        %v1310 = vunpack.c.0.s8 %v1309
        %v1311 = vlaneseq
        %v1312 = vshrl.u32 %v1311, 7
        %v1313 = vsub.s32 %v1310, %v1312
        %v1314 = vrot.slane %v1300, %v1313
        %v1315 = vcombine.low %v1259, %v1291
        %v1316 = vcombine.high %v1259, %v1291
        %v1317 = vcombine.low %v1266, %v1298
        %v1318 = vcombine.high %v1266, %v1298
        %v1319 = vcombine.low %v1275, %v1307
        %v1320 = vcombine.high %v1275, %v1307
        %v1321 = vcombine.low %v1282, %v1314
        %v1322 = vcombine.high %v1282, %v1314
        %v1323 = vcombine.low %v494, %v500
        %v1324 = vcombine.high %v494, %v500
        %v1326 = vunpack.c.l.s4 1983009808
        %v1327 = vunpack.c.0.s8 %v1326
        %v1328 = vlaneseq
        %v1329 = vshrl.u32 %v1328, 7
        %v1330 = vsub.s32 %v1327, %v1329
        %v1331 = vrot.slane %v1323, %v1330
        %v1333 = vunpack.c.l.s4 1983009808
        %v1334 = vunpack.c.0.s8 %v1333
        %v1335 = vlaneseq
        %v1336 = vshrl.u32 %v1335, 7
        %v1337 = vsub.s32 %v1334, %v1336
        %v1338 = vrot.slane %v1324, %v1337
        %v1339 = vcombine.low %v497, %v503
        %v1340 = vcombine.high %v497, %v503
        %v1342 = vunpack.c.l.s4 1983009808
        %v1343 = vunpack.c.0.s8 %v1342
        %v1344 = vlaneseq
        %v1345 = vshrl.u32 %v1344, 7
        %v1346 = vsub.s32 %v1343, %v1345
        %v1347 = vrot.slane %v1339, %v1346
        %v1349 = vunpack.c.l.s4 1983009808
        %v1350 = vunpack.c.0.s8 %v1349
        %v1351 = vlaneseq
        %v1352 = vshrl.u32 %v1351, 7
        %v1353 = vsub.s32 %v1350, %v1352
        %v1354 = vrot.slane %v1340, %v1353
        %v1355 = vcombine.low %v506, %v512
        %v1356 = vcombine.high %v506, %v512
        %v1358 = vunpack.c.l.s4 1983009808
        %v1359 = vunpack.c.0.s8 %v1358
        %v1360 = vlaneseq
        %v1361 = vshrl.u32 %v1360, 7
        %v1362 = vsub.s32 %v1359, %v1361
        %v1363 = vrot.slane %v1355, %v1362
        %v1365 = vunpack.c.l.s4 1983009808
        %v1366 = vunpack.c.0.s8 %v1365
        %v1367 = vlaneseq
        %v1368 = vshrl.u32 %v1367, 7
        %v1369 = vsub.s32 %v1366, %v1368
        %v1370 = vrot.slane %v1356, %v1369
        %v1371 = vcombine.low %v509, %v515
        %v1372 = vcombine.high %v509, %v515
        %v1374 = vunpack.c.l.s4 1983009808
        %v1375 = vunpack.c.0.s8 %v1374
        %v1376 = vlaneseq
        %v1377 = vshrl.u32 %v1376, 7
        %v1378 = vsub.s32 %v1375, %v1377
        %v1379 = vrot.slane %v1371, %v1378
        %v1381 = vunpack.c.l.s4 1983009808
        %v1382 = vunpack.c.0.s8 %v1381
        %v1383 = vlaneseq
        %v1384 = vshrl.u32 %v1383, 7
        %v1385 = vsub.s32 %v1382, %v1384
        %v1386 = vrot.slane %v1372, %v1385
        %v1387 = vcombine.low %v1331, %v1347
        %v1388 = vcombine.high %v1331, %v1347
        %v1390 = vunpack.c.l.s4 1934713408
        %v1391 = vunpack.c.0.s8 %v1390
        %v1392 = vlaneseq
        %v1393 = vshrl.u32 %v1392, 7
        %v1394 = vsub.s32 %v1391, %v1393
        %v1395 = vrot.slane %v1387, %v1394
        %v1397 = vunpack.c.l.s4 1934713408
        %v1398 = vunpack.c.0.s8 %v1397
        %v1399 = vlaneseq
        %v1400 = vshrl.u32 %v1399, 7
        %v1401 = vsub.s32 %v1398, %v1400
        %v1402 = vrot.slane %v1388, %v1401
        %v1403 = vcombine.low %v1338, %v1354
        %v1404 = vcombine.high %v1338, %v1354
        %v1406 = vunpack.c.l.s4 1934713408
        %v1407 = vunpack.c.0.s8 %v1406
        %v1408 = vlaneseq
        %v1409 = vshrl.u32 %v1408, 7
        %v1410 = vsub.s32 %v1407, %v1409
        %v1411 = vrot.slane %v1403, %v1410
        %v1413 = vunpack.c.l.s4 1934713408
        %v1414 = vunpack.c.0.s8 %v1413
        %v1415 = vlaneseq
        %v1416 = vshrl.u32 %v1415, 7
        %v1417 = vsub.s32 %v1414, %v1416
        %v1418 = vrot.slane %v1404, %v1417
        %v1419 = vcombine.low %v1363, %v1379
        %v1420 = vcombine.high %v1363, %v1379
        %v1422 = vunpack.c.l.s4 1934713408
        %v1423 = vunpack.c.0.s8 %v1422
        %v1424 = vlaneseq
        %v1425 = vshrl.u32 %v1424, 7
        %v1426 = vsub.s32 %v1423, %v1425
        %v1427 = vrot.slane %v1419, %v1426
        %v1429 = vunpack.c.l.s4 1934713408
        %v1430 = vunpack.c.0.s8 %v1429
        %v1431 = vlaneseq
        %v1432 = vshrl.u32 %v1431, 7
        %v1433 = vsub.s32 %v1430, %v1432
        %v1434 = vrot.slane %v1420, %v1433
        %v1435 = vcombine.low %v1370, %v1386
        %v1436 = vcombine.high %v1370, %v1386
        %v1438 = vunpack.c.l.s4 1934713408
        %v1439 = vunpack.c.0.s8 %v1438
        %v1440 = vlaneseq
        %v1441 = vshrl.u32 %v1440, 7
        %v1442 = vsub.s32 %v1439, %v1441
        %v1443 = vrot.slane %v1435, %v1442
        %v1445 = vunpack.c.l.s4 1934713408
        %v1446 = vunpack.c.0.s8 %v1445
        %v1447 = vlaneseq
        %v1448 = vshrl.u32 %v1447, 7
        %v1449 = vsub.s32 %v1446, %v1448
        %v1450 = vrot.slane %v1436, %v1449
        %v1451 = vcombine.low %v1395, %v1427
        %v1452 = vcombine.high %v1395, %v1427
        %v1453 = vcombine.low %v1402, %v1434
        %v1454 = vcombine.high %v1402, %v1434
        %v1455 = vcombine.low %v1411, %v1443
        %v1456 = vcombine.high %v1411, %v1443
        %v1457 = vcombine.low %v1418, %v1450
        %v1458 = vcombine.high %v1418, %v1450
        %v1459 = vcombine.low %v518, %v524
        %v1460 = vcombine.high %v518, %v524
        %v1462 = vunpack.c.l.s4 1983009808
        %v1463 = vunpack.c.0.s8 %v1462
        %v1464 = vlaneseq
        %v1465 = vshrl.u32 %v1464, 7
        %v1466 = vsub.s32 %v1463, %v1465
        %v1467 = vrot.slane %v1459, %v1466
        %v1469 = vunpack.c.l.s4 1983009808
        %v1470 = vunpack.c.0.s8 %v1469
        %v1471 = vlaneseq
        %v1472 = vshrl.u32 %v1471, 7
        %v1473 = vsub.s32 %v1470, %v1472
        %v1474 = vrot.slane %v1460, %v1473
        %v1475 = vcombine.low %v521, %v527
        %v1476 = vcombine.high %v521, %v527
        %v1478 = vunpack.c.l.s4 1983009808
        %v1479 = vunpack.c.0.s8 %v1478
        %v1480 = vlaneseq
        %v1481 = vshrl.u32 %v1480, 7
        %v1482 = vsub.s32 %v1479, %v1481
        %v1483 = vrot.slane %v1475, %v1482
        %v1485 = vunpack.c.l.s4 1983009808
        %v1486 = vunpack.c.0.s8 %v1485
        %v1487 = vlaneseq
        %v1488 = vshrl.u32 %v1487, 7
        %v1489 = vsub.s32 %v1486, %v1488
        %v1490 = vrot.slane %v1476, %v1489
        %v1491 = vcombine.low %v530, %v536
        %v1492 = vcombine.high %v530, %v536
        %v1494 = vunpack.c.l.s4 1983009808
        %v1495 = vunpack.c.0.s8 %v1494
        %v1496 = vlaneseq
        %v1497 = vshrl.u32 %v1496, 7
        %v1498 = vsub.s32 %v1495, %v1497
        %v1499 = vrot.slane %v1491, %v1498
        %v1501 = vunpack.c.l.s4 1983009808
        %v1502 = vunpack.c.0.s8 %v1501
        %v1503 = vlaneseq
        %v1504 = vshrl.u32 %v1503, 7
        %v1505 = vsub.s32 %v1502, %v1504
        %v1506 = vrot.slane %v1492, %v1505
        %v1507 = vcombine.low %v533, %v539
        %v1508 = vcombine.high %v533, %v539
        %v1510 = vunpack.c.l.s4 1983009808
        %v1511 = vunpack.c.0.s8 %v1510
        %v1512 = vlaneseq
        %v1513 = vshrl.u32 %v1512, 7
        %v1514 = vsub.s32 %v1511, %v1513
        %v1515 = vrot.slane %v1507, %v1514
        %v1517 = vunpack.c.l.s4 1983009808
        %v1518 = vunpack.c.0.s8 %v1517
        %v1519 = vlaneseq
        %v1520 = vshrl.u32 %v1519, 7
        %v1521 = vsub.s32 %v1518, %v1520
        %v1522 = vrot.slane %v1508, %v1521
        %v1523 = vcombine.low %v1467, %v1483
        %v1524 = vcombine.high %v1467, %v1483
        %v1526 = vunpack.c.l.s4 1934713408
        %v1527 = vunpack.c.0.s8 %v1526
        %v1528 = vlaneseq
        %v1529 = vshrl.u32 %v1528, 7
        %v1530 = vsub.s32 %v1527, %v1529
        %v1531 = vrot.slane %v1523, %v1530
        %v1533 = vunpack.c.l.s4 1934713408
        %v1534 = vunpack.c.0.s8 %v1533
        %v1535 = vlaneseq
        %v1536 = vshrl.u32 %v1535, 7
        %v1537 = vsub.s32 %v1534, %v1536
        %v1538 = vrot.slane %v1524, %v1537
        %v1539 = vcombine.low %v1474, %v1490
        %v1540 = vcombine.high %v1474, %v1490
        %v1542 = vunpack.c.l.s4 1934713408
        %v1543 = vunpack.c.0.s8 %v1542
        %v1544 = vlaneseq
        %v1545 = vshrl.u32 %v1544, 7
        %v1546 = vsub.s32 %v1543, %v1545
        %v1547 = vrot.slane %v1539, %v1546
        %v1549 = vunpack.c.l.s4 1934713408
        %v1550 = vunpack.c.0.s8 %v1549
        %v1551 = vlaneseq
        %v1552 = vshrl.u32 %v1551, 7
        %v1553 = vsub.s32 %v1550, %v1552
        %v1554 = vrot.slane %v1540, %v1553
        %v1555 = vcombine.low %v1499, %v1515
        %v1556 = vcombine.high %v1499, %v1515
        %v1558 = vunpack.c.l.s4 1934713408
        %v1559 = vunpack.c.0.s8 %v1558
        %v1560 = vlaneseq
        %v1561 = vshrl.u32 %v1560, 7
        %v1562 = vsub.s32 %v1559, %v1561
        %v1563 = vrot.slane %v1555, %v1562
        %v1565 = vunpack.c.l.s4 1934713408
        %v1566 = vunpack.c.0.s8 %v1565
        %v1567 = vlaneseq
        %v1568 = vshrl.u32 %v1567, 7
        %v1569 = vsub.s32 %v1566, %v1568
        %v1570 = vrot.slane %v1556, %v1569
        %v1571 = vcombine.low %v1506, %v1522
        %v1572 = vcombine.high %v1506, %v1522
        %v1574 = vunpack.c.l.s4 1934713408
        %v1575 = vunpack.c.0.s8 %v1574
        %v1576 = vlaneseq
        %v1577 = vshrl.u32 %v1576, 7
        %v1578 = vsub.s32 %v1575, %v1577
        %v1579 = vrot.slane %v1571, %v1578
        %v1581 = vunpack.c.l.s4 1934713408
        %v1582 = vunpack.c.0.s8 %v1581
        %v1583 = vlaneseq
        %v1584 = vshrl.u32 %v1583, 7
        %v1585 = vsub.s32 %v1582, %v1584
        %v1586 = vrot.slane %v1572, %v1585
        %v1587 = vcombine.low %v1531, %v1563
        %v1588 = vcombine.high %v1531, %v1563
        %v1589 = vcombine.low %v1538, %v1570
        %v1590 = vcombine.high %v1538, %v1570
        %v1591 = vcombine.low %v1547, %v1579
        %v1592 = vcombine.high %v1547, %v1579
        %v1593 = vcombine.low %v1554, %v1586
        %v1594 = vcombine.high %v1554, %v1586
        %v1595 = vcombine.low %v542, %v548
        %v1596 = vcombine.high %v542, %v548
        %v1598 = vunpack.c.l.s4 1983009808
        %v1599 = vunpack.c.0.s8 %v1598
        %v1600 = vlaneseq
        %v1601 = vshrl.u32 %v1600, 7
        %v1602 = vsub.s32 %v1599, %v1601
        %v1603 = vrot.slane %v1595, %v1602
        %v1605 = vunpack.c.l.s4 1983009808
        %v1606 = vunpack.c.0.s8 %v1605
        %v1607 = vlaneseq
        %v1608 = vshrl.u32 %v1607, 7
        %v1609 = vsub.s32 %v1606, %v1608
        %v1610 = vrot.slane %v1596, %v1609
        %v1611 = vcombine.low %v545, %v551
        %v1612 = vcombine.high %v545, %v551
        %v1614 = vunpack.c.l.s4 1983009808
        %v1615 = vunpack.c.0.s8 %v1614
        %v1616 = vlaneseq
        %v1617 = vshrl.u32 %v1616, 7
        %v1618 = vsub.s32 %v1615, %v1617
        %v1619 = vrot.slane %v1611, %v1618
        %v1621 = vunpack.c.l.s4 1983009808
        %v1622 = vunpack.c.0.s8 %v1621
        %v1623 = vlaneseq
        %v1624 = vshrl.u32 %v1623, 7
        %v1625 = vsub.s32 %v1622, %v1624
        %v1626 = vrot.slane %v1612, %v1625
        %v1627 = vcombine.low %v554, %v560
        %v1628 = vcombine.high %v554, %v560
        %v1630 = vunpack.c.l.s4 1983009808
        %v1631 = vunpack.c.0.s8 %v1630
        %v1632 = vlaneseq
        %v1633 = vshrl.u32 %v1632, 7
        %v1634 = vsub.s32 %v1631, %v1633
        %v1635 = vrot.slane %v1627, %v1634
        %v1637 = vunpack.c.l.s4 1983009808
        %v1638 = vunpack.c.0.s8 %v1637
        %v1639 = vlaneseq
        %v1640 = vshrl.u32 %v1639, 7
        %v1641 = vsub.s32 %v1638, %v1640
        %v1642 = vrot.slane %v1628, %v1641
        %v1643 = vcombine.low %v557, %v563
        %v1644 = vcombine.high %v557, %v563
        %v1646 = vunpack.c.l.s4 1983009808
        %v1647 = vunpack.c.0.s8 %v1646
        %v1648 = vlaneseq
        %v1649 = vshrl.u32 %v1648, 7
        %v1650 = vsub.s32 %v1647, %v1649
        %v1651 = vrot.slane %v1643, %v1650
        %v1653 = vunpack.c.l.s4 1983009808
        %v1654 = vunpack.c.0.s8 %v1653
        %v1655 = vlaneseq
        %v1656 = vshrl.u32 %v1655, 7
        %v1657 = vsub.s32 %v1654, %v1656
        %v1658 = vrot.slane %v1644, %v1657
        %v1659 = vcombine.low %v1603, %v1619
        %v1660 = vcombine.high %v1603, %v1619
        %v1662 = vunpack.c.l.s4 1934713408
        %v1663 = vunpack.c.0.s8 %v1662
        %v1664 = vlaneseq
        %v1665 = vshrl.u32 %v1664, 7
        %v1666 = vsub.s32 %v1663, %v1665
        %v1667 = vrot.slane %v1659, %v1666
        %v1669 = vunpack.c.l.s4 1934713408
        %v1670 = vunpack.c.0.s8 %v1669
        %v1671 = vlaneseq
        %v1672 = vshrl.u32 %v1671, 7
        %v1673 = vsub.s32 %v1670, %v1672
        %v1674 = vrot.slane %v1660, %v1673
        %v1675 = vcombine.low %v1610, %v1626
        %v1676 = vcombine.high %v1610, %v1626
        %v1678 = vunpack.c.l.s4 1934713408
        %v1679 = vunpack.c.0.s8 %v1678
        %v1680 = vlaneseq
        %v1681 = vshrl.u32 %v1680, 7
        %v1682 = vsub.s32 %v1679, %v1681
        %v1683 = vrot.slane %v1675, %v1682
        %v1685 = vunpack.c.l.s4 1934713408
        %v1686 = vunpack.c.0.s8 %v1685
        %v1687 = vlaneseq
        %v1688 = vshrl.u32 %v1687, 7
        %v1689 = vsub.s32 %v1686, %v1688
        %v1690 = vrot.slane %v1676, %v1689
        %v1691 = vcombine.low %v1635, %v1651
        %v1692 = vcombine.high %v1635, %v1651
        %v1694 = vunpack.c.l.s4 1934713408
        %v1695 = vunpack.c.0.s8 %v1694
        %v1696 = vlaneseq
        %v1697 = vshrl.u32 %v1696, 7
        %v1698 = vsub.s32 %v1695, %v1697
        %v1699 = vrot.slane %v1691, %v1698
        %v1701 = vunpack.c.l.s4 1934713408
        %v1702 = vunpack.c.0.s8 %v1701
        %v1703 = vlaneseq
        %v1704 = vshrl.u32 %v1703, 7
        %v1705 = vsub.s32 %v1702, %v1704
        %v1706 = vrot.slane %v1692, %v1705
        %v1707 = vcombine.low %v1642, %v1658
        %v1708 = vcombine.high %v1642, %v1658
        %v1710 = vunpack.c.l.s4 1934713408
        %v1711 = vunpack.c.0.s8 %v1710
        %v1712 = vlaneseq
        %v1713 = vshrl.u32 %v1712, 7
        %v1714 = vsub.s32 %v1711, %v1713
        %v1715 = vrot.slane %v1707, %v1714
        %v1717 = vunpack.c.l.s4 1934713408
        %v1718 = vunpack.c.0.s8 %v1717
        %v1719 = vlaneseq
        %v1720 = vshrl.u32 %v1719, 7
        %v1721 = vsub.s32 %v1718, %v1720
        %v1722 = vrot.slane %v1708, %v1721
        %v1723 = vcombine.low %v1667, %v1699
        %v1724 = vcombine.high %v1667, %v1699
        %v1725 = vcombine.low %v1674, %v1706
        %v1726 = vcombine.high %v1674, %v1706
        %v1727 = vcombine.low %v1683, %v1715
        %v1728 = vcombine.high %v1683, %v1715
        %v1729 = vcombine.low %v1690, %v1722
        %v1730 = vcombine.high %v1690, %v1722
        %v1731 = vcombine.low %v566, %v572
        %v1732 = vcombine.high %v566, %v572
        %v1734 = vunpack.c.l.s4 1983009808
        %v1735 = vunpack.c.0.s8 %v1734
        %v1736 = vlaneseq
        %v1737 = vshrl.u32 %v1736, 7
        %v1738 = vsub.s32 %v1735, %v1737
        %v1739 = vrot.slane %v1731, %v1738
        %v1741 = vunpack.c.l.s4 1983009808
        %v1742 = vunpack.c.0.s8 %v1741
        %v1743 = vlaneseq
        %v1744 = vshrl.u32 %v1743, 7
        %v1745 = vsub.s32 %v1742, %v1744
        %v1746 = vrot.slane %v1732, %v1745
        %v1747 = vcombine.low %v569, %v575
        %v1748 = vcombine.high %v569, %v575
        %v1750 = vunpack.c.l.s4 1983009808
        %v1751 = vunpack.c.0.s8 %v1750
        %v1752 = vlaneseq
        %v1753 = vshrl.u32 %v1752, 7
        %v1754 = vsub.s32 %v1751, %v1753
        %v1755 = vrot.slane %v1747, %v1754
        %v1757 = vunpack.c.l.s4 1983009808
        %v1758 = vunpack.c.0.s8 %v1757
        %v1759 = vlaneseq
        %v1760 = vshrl.u32 %v1759, 7
        %v1761 = vsub.s32 %v1758, %v1760
        %v1762 = vrot.slane %v1748, %v1761
        %v1763 = vcombine.low %v578, %v584
        %v1764 = vcombine.high %v578, %v584
        %v1766 = vunpack.c.l.s4 1983009808
        %v1767 = vunpack.c.0.s8 %v1766
        %v1768 = vlaneseq
        %v1769 = vshrl.u32 %v1768, 7
        %v1770 = vsub.s32 %v1767, %v1769
        %v1771 = vrot.slane %v1763, %v1770
        %v1773 = vunpack.c.l.s4 1983009808
        %v1774 = vunpack.c.0.s8 %v1773
        %v1775 = vlaneseq
        %v1776 = vshrl.u32 %v1775, 7
        %v1777 = vsub.s32 %v1774, %v1776
        %v1778 = vrot.slane %v1764, %v1777
        %v1779 = vcombine.low %v581, %v587
        %v1780 = vcombine.high %v581, %v587
        %v1782 = vunpack.c.l.s4 1983009808
        %v1783 = vunpack.c.0.s8 %v1782
        %v1784 = vlaneseq
        %v1785 = vshrl.u32 %v1784, 7
        %v1786 = vsub.s32 %v1783, %v1785
        %v1787 = vrot.slane %v1779, %v1786
        %v1789 = vunpack.c.l.s4 1983009808
        %v1790 = vunpack.c.0.s8 %v1789
        %v1791 = vlaneseq
        %v1792 = vshrl.u32 %v1791, 7
        %v1793 = vsub.s32 %v1790, %v1792
        %v1794 = vrot.slane %v1780, %v1793
        %v1795 = vcombine.low %v1739, %v1755
        %v1796 = vcombine.high %v1739, %v1755
        %v1798 = vunpack.c.l.s4 1934713408
        %v1799 = vunpack.c.0.s8 %v1798
        %v1800 = vlaneseq
        %v1801 = vshrl.u32 %v1800, 7
        %v1802 = vsub.s32 %v1799, %v1801
        %v1803 = vrot.slane %v1795, %v1802
        %v1805 = vunpack.c.l.s4 1934713408
        %v1806 = vunpack.c.0.s8 %v1805
        %v1807 = vlaneseq
        %v1808 = vshrl.u32 %v1807, 7
        %v1809 = vsub.s32 %v1806, %v1808
        %v1810 = vrot.slane %v1796, %v1809
        %v1811 = vcombine.low %v1746, %v1762
        %v1812 = vcombine.high %v1746, %v1762
        %v1814 = vunpack.c.l.s4 1934713408
        %v1815 = vunpack.c.0.s8 %v1814
        %v1816 = vlaneseq
        %v1817 = vshrl.u32 %v1816, 7
        %v1818 = vsub.s32 %v1815, %v1817
        %v1819 = vrot.slane %v1811, %v1818
        %v1821 = vunpack.c.l.s4 1934713408
        %v1822 = vunpack.c.0.s8 %v1821
        %v1823 = vlaneseq
        %v1824 = vshrl.u32 %v1823, 7
        %v1825 = vsub.s32 %v1822, %v1824
        %v1826 = vrot.slane %v1812, %v1825
        %v1827 = vcombine.low %v1771, %v1787
        %v1828 = vcombine.high %v1771, %v1787
        %v1830 = vunpack.c.l.s4 1934713408
        %v1831 = vunpack.c.0.s8 %v1830
        %v1832 = vlaneseq
        %v1833 = vshrl.u32 %v1832, 7
        %v1834 = vsub.s32 %v1831, %v1833
        %v1835 = vrot.slane %v1827, %v1834
        %v1837 = vunpack.c.l.s4 1934713408
        %v1838 = vunpack.c.0.s8 %v1837
        %v1839 = vlaneseq
        %v1840 = vshrl.u32 %v1839, 7
        %v1841 = vsub.s32 %v1838, %v1840
        %v1842 = vrot.slane %v1828, %v1841
        %v1843 = vcombine.low %v1778, %v1794
        %v1844 = vcombine.high %v1778, %v1794
        %v1846 = vunpack.c.l.s4 1934713408
        %v1847 = vunpack.c.0.s8 %v1846
        %v1848 = vlaneseq
        %v1849 = vshrl.u32 %v1848, 7
        %v1850 = vsub.s32 %v1847, %v1849
        %v1851 = vrot.slane %v1843, %v1850
        %v1853 = vunpack.c.l.s4 1934713408
        %v1854 = vunpack.c.0.s8 %v1853
        %v1855 = vlaneseq
        %v1856 = vshrl.u32 %v1855, 7
        %v1857 = vsub.s32 %v1854, %v1856
        %v1858 = vrot.slane %v1844, %v1857
        %v1859 = vcombine.low %v1803, %v1835
        %v1860 = vcombine.high %v1803, %v1835
        %v1861 = vcombine.low %v1810, %v1842
        %v1862 = vcombine.high %v1810, %v1842
        %v1863 = vcombine.low %v1819, %v1851
        %v1864 = vcombine.high %v1819, %v1851
        %v1865 = vcombine.low %v1826, %v1858
        %v1866 = vcombine.high %v1826, %v1858
        %v1867 = vcombine.low %v398, %v594
        %v1868 = vcombine.high %v398, %v594
        %v1870 = vunpack.c.l.s4 1983009808
        %v1871 = vunpack.c.0.s8 %v1870
        %v1872 = vlaneseq
        %v1873 = vshrl.u32 %v1872, 7
        %v1874 = vsub.s32 %v1871, %v1873
        %v1875 = vrot.slane %v1867, %v1874
        %v1877 = vunpack.c.l.s4 1983009808
        %v1878 = vunpack.c.0.s8 %v1877
        %v1879 = vlaneseq
        %v1880 = vshrl.u32 %v1879, 7
        %v1881 = vsub.s32 %v1878, %v1880
        %v1882 = vrot.slane %v1868, %v1881
        %v1883 = vcombine.low %v591, %v597
        %v1884 = vcombine.high %v591, %v597
        %v1886 = vunpack.c.l.s4 1983009808
        %v1887 = vunpack.c.0.s8 %v1886
        %v1888 = vlaneseq
        %v1889 = vshrl.u32 %v1888, 7
        %v1890 = vsub.s32 %v1887, %v1889
        %v1891 = vrot.slane %v1883, %v1890
        %v1893 = vunpack.c.l.s4 1983009808
        %v1894 = vunpack.c.0.s8 %v1893
        %v1895 = vlaneseq
        %v1896 = vshrl.u32 %v1895, 7
        %v1897 = vsub.s32 %v1894, %v1896
        %v1898 = vrot.slane %v1884, %v1897
        %v1899 = vcombine.low %v600, %v606
        %v1900 = vcombine.high %v600, %v606
        %v1902 = vunpack.c.l.s4 1983009808
        %v1903 = vunpack.c.0.s8 %v1902
        %v1904 = vlaneseq
        %v1905 = vshrl.u32 %v1904, 7
        %v1906 = vsub.s32 %v1903, %v1905
        %v1907 = vrot.slane %v1899, %v1906
        %v1909 = vunpack.c.l.s4 1983009808
        %v1910 = vunpack.c.0.s8 %v1909
        %v1911 = vlaneseq
        %v1912 = vshrl.u32 %v1911, 7
        %v1913 = vsub.s32 %v1910, %v1912
        %v1914 = vrot.slane %v1900, %v1913
        %v1915 = vcombine.low %v603, %v609
        %v1916 = vcombine.high %v603, %v609
        %v1918 = vunpack.c.l.s4 1983009808
        %v1919 = vunpack.c.0.s8 %v1918
        %v1920 = vlaneseq
        %v1921 = vshrl.u32 %v1920, 7
        %v1922 = vsub.s32 %v1919, %v1921
        %v1923 = vrot.slane %v1915, %v1922
        %v1925 = vunpack.c.l.s4 1983009808
        %v1926 = vunpack.c.0.s8 %v1925
        %v1927 = vlaneseq
        %v1928 = vshrl.u32 %v1927, 7
        %v1929 = vsub.s32 %v1926, %v1928
        %v1930 = vrot.slane %v1916, %v1929
        %v1931 = vcombine.low %v1875, %v1891
        %v1932 = vcombine.high %v1875, %v1891
        %v1934 = vunpack.c.l.s4 1934713408
        %v1935 = vunpack.c.0.s8 %v1934
        %v1936 = vlaneseq
        %v1937 = vshrl.u32 %v1936, 7
        %v1938 = vsub.s32 %v1935, %v1937
        %v1939 = vrot.slane %v1931, %v1938
        %v1941 = vunpack.c.l.s4 1934713408
        %v1942 = vunpack.c.0.s8 %v1941
        %v1943 = vlaneseq
        %v1944 = vshrl.u32 %v1943, 7
        %v1945 = vsub.s32 %v1942, %v1944
        %v1946 = vrot.slane %v1932, %v1945
        %v1947 = vcombine.low %v1882, %v1898
        %v1948 = vcombine.high %v1882, %v1898
        %v1950 = vunpack.c.l.s4 1934713408
        %v1951 = vunpack.c.0.s8 %v1950
        %v1952 = vlaneseq
        %v1953 = vshrl.u32 %v1952, 7
        %v1954 = vsub.s32 %v1951, %v1953
        %v1955 = vrot.slane %v1947, %v1954
        %v1957 = vunpack.c.l.s4 1934713408
        %v1958 = vunpack.c.0.s8 %v1957
        %v1959 = vlaneseq
        %v1960 = vshrl.u32 %v1959, 7
        %v1961 = vsub.s32 %v1958, %v1960
        %v1962 = vrot.slane %v1948, %v1961
        %v1963 = vcombine.low %v1907, %v1923
        %v1964 = vcombine.high %v1907, %v1923
        %v1966 = vunpack.c.l.s4 1934713408
        %v1967 = vunpack.c.0.s8 %v1966
        %v1968 = vlaneseq
        %v1969 = vshrl.u32 %v1968, 7
        %v1970 = vsub.s32 %v1967, %v1969
        %v1971 = vrot.slane %v1963, %v1970
        %v1973 = vunpack.c.l.s4 1934713408
        %v1974 = vunpack.c.0.s8 %v1973
        %v1975 = vlaneseq
        %v1976 = vshrl.u32 %v1975, 7
        %v1977 = vsub.s32 %v1974, %v1976
        %v1978 = vrot.slane %v1964, %v1977
        %v1979 = vcombine.low %v1914, %v1930
        %v1980 = vcombine.high %v1914, %v1930
        %v1982 = vunpack.c.l.s4 1934713408
        %v1983 = vunpack.c.0.s8 %v1982
        %v1984 = vlaneseq
        %v1985 = vshrl.u32 %v1984, 7
        %v1986 = vsub.s32 %v1983, %v1985
        %v1987 = vrot.slane %v1979, %v1986
        %v1989 = vunpack.c.l.s4 1934713408
        %v1990 = vunpack.c.0.s8 %v1989
        %v1991 = vlaneseq
        %v1992 = vshrl.u32 %v1991, 7
        %v1993 = vsub.s32 %v1990, %v1992
        %v1994 = vrot.slane %v1980, %v1993
        %v1995 = vcombine.low %v1939, %v1971
        %v1996 = vcombine.high %v1939, %v1971
        %v1997 = vcombine.low %v1946, %v1978
        %v1998 = vcombine.high %v1946, %v1978
        %v1999 = vcombine.low %v1955, %v1987
        %v2000 = vcombine.high %v1955, %v1987
        %v2001 = vcombine.low %v1962, %v1994
        %v2002 = vcombine.high %v1962, %v1994
        %v2003 = vcombine.low %v612, %v618
        %v2004 = vcombine.high %v612, %v618
        %v2006 = vunpack.c.l.s4 1983009808
        %v2007 = vunpack.c.0.s8 %v2006
        %v2008 = vlaneseq
        %v2009 = vshrl.u32 %v2008, 7
        %v2010 = vsub.s32 %v2007, %v2009
        %v2011 = vrot.slane %v2003, %v2010
        %v2013 = vunpack.c.l.s4 1983009808
        %v2014 = vunpack.c.0.s8 %v2013
        %v2015 = vlaneseq
        %v2016 = vshrl.u32 %v2015, 7
        %v2017 = vsub.s32 %v2014, %v2016
        %v2018 = vrot.slane %v2004, %v2017
        %v2019 = vcombine.low %v615, %v621
        %v2020 = vcombine.high %v615, %v621
        %v2022 = vunpack.c.l.s4 1983009808
        %v2023 = vunpack.c.0.s8 %v2022
        %v2024 = vlaneseq
        %v2025 = vshrl.u32 %v2024, 7
        %v2026 = vsub.s32 %v2023, %v2025
        %v2027 = vrot.slane %v2019, %v2026
        %v2029 = vunpack.c.l.s4 1983009808
        %v2030 = vunpack.c.0.s8 %v2029
        %v2031 = vlaneseq
        %v2032 = vshrl.u32 %v2031, 7
        %v2033 = vsub.s32 %v2030, %v2032
        %v2034 = vrot.slane %v2020, %v2033
        %v2035 = vcombine.low %v624, %v630
        %v2036 = vcombine.high %v624, %v630
        %v2038 = vunpack.c.l.s4 1983009808
        %v2039 = vunpack.c.0.s8 %v2038
        %v2040 = vlaneseq
        %v2041 = vshrl.u32 %v2040, 7
        %v2042 = vsub.s32 %v2039, %v2041
        %v2043 = vrot.slane %v2035, %v2042
        %v2045 = vunpack.c.l.s4 1983009808
        %v2046 = vunpack.c.0.s8 %v2045
        %v2047 = vlaneseq
        %v2048 = vshrl.u32 %v2047, 7
        %v2049 = vsub.s32 %v2046, %v2048
        %v2050 = vrot.slane %v2036, %v2049
        %v2051 = vcombine.low %v627, %v633
        %v2052 = vcombine.high %v627, %v633
        %v2054 = vunpack.c.l.s4 1983009808
        %v2055 = vunpack.c.0.s8 %v2054
        %v2056 = vlaneseq
        %v2057 = vshrl.u32 %v2056, 7
        %v2058 = vsub.s32 %v2055, %v2057
        %v2059 = vrot.slane %v2051, %v2058
        %v2061 = vunpack.c.l.s4 1983009808
        %v2062 = vunpack.c.0.s8 %v2061
        %v2063 = vlaneseq
        %v2064 = vshrl.u32 %v2063, 7
        %v2065 = vsub.s32 %v2062, %v2064
        %v2066 = vrot.slane %v2052, %v2065
        %v2067 = vcombine.low %v2011, %v2027
        %v2068 = vcombine.high %v2011, %v2027
        %v2070 = vunpack.c.l.s4 1934713408
        %v2071 = vunpack.c.0.s8 %v2070
        %v2072 = vlaneseq
        %v2073 = vshrl.u32 %v2072, 7
        %v2074 = vsub.s32 %v2071, %v2073
        %v2075 = vrot.slane %v2067, %v2074
        %v2077 = vunpack.c.l.s4 1934713408
        %v2078 = vunpack.c.0.s8 %v2077
        %v2079 = vlaneseq
        %v2080 = vshrl.u32 %v2079, 7
        %v2081 = vsub.s32 %v2078, %v2080
        %v2082 = vrot.slane %v2068, %v2081
        %v2083 = vcombine.low %v2018, %v2034
        %v2084 = vcombine.high %v2018, %v2034
        %v2086 = vunpack.c.l.s4 1934713408
        %v2087 = vunpack.c.0.s8 %v2086
        %v2088 = vlaneseq
        %v2089 = vshrl.u32 %v2088, 7
        %v2090 = vsub.s32 %v2087, %v2089
        %v2091 = vrot.slane %v2083, %v2090
        %v2093 = vunpack.c.l.s4 1934713408
        %v2094 = vunpack.c.0.s8 %v2093
        %v2095 = vlaneseq
        %v2096 = vshrl.u32 %v2095, 7
        %v2097 = vsub.s32 %v2094, %v2096
        %v2098 = vrot.slane %v2084, %v2097
        %v2099 = vcombine.low %v2043, %v2059
        %v2100 = vcombine.high %v2043, %v2059
        %v2102 = vunpack.c.l.s4 1934713408
        %v2103 = vunpack.c.0.s8 %v2102
        %v2104 = vlaneseq
        %v2105 = vshrl.u32 %v2104, 7
        %v2106 = vsub.s32 %v2103, %v2105
        %v2107 = vrot.slane %v2099, %v2106
        %v2109 = vunpack.c.l.s4 1934713408
        %v2110 = vunpack.c.0.s8 %v2109
        %v2111 = vlaneseq
        %v2112 = vshrl.u32 %v2111, 7
        %v2113 = vsub.s32 %v2110, %v2112
        %v2114 = vrot.slane %v2100, %v2113
        %v2115 = vcombine.low %v2050, %v2066
        %v2116 = vcombine.high %v2050, %v2066
        %v2118 = vunpack.c.l.s4 1934713408
        %v2119 = vunpack.c.0.s8 %v2118
        %v2120 = vlaneseq
        %v2121 = vshrl.u32 %v2120, 7
        %v2122 = vsub.s32 %v2119, %v2121
        %v2123 = vrot.slane %v2115, %v2122
        %v2125 = vunpack.c.l.s4 1934713408
        %v2126 = vunpack.c.0.s8 %v2125
        %v2127 = vlaneseq
        %v2128 = vshrl.u32 %v2127, 7
        %v2129 = vsub.s32 %v2126, %v2128
        %v2130 = vrot.slane %v2116, %v2129
        %v2131 = vcombine.low %v2075, %v2107
        %v2132 = vcombine.high %v2075, %v2107
        %v2133 = vcombine.low %v2082, %v2114
        %v2134 = vcombine.high %v2082, %v2114
        %v2135 = vcombine.low %v2091, %v2123
        %v2136 = vcombine.high %v2091, %v2123
        %v2137 = vcombine.low %v2098, %v2130
        %v2138 = vcombine.high %v2098, %v2130
        %v2139 = vcombine.low %v636, %v642
        %v2140 = vcombine.high %v636, %v642
        %v2142 = vunpack.c.l.s4 1983009808
        %v2143 = vunpack.c.0.s8 %v2142
        %v2144 = vlaneseq
        %v2145 = vshrl.u32 %v2144, 7
        %v2146 = vsub.s32 %v2143, %v2145
        %v2147 = vrot.slane %v2139, %v2146
        %v2149 = vunpack.c.l.s4 1983009808
        %v2150 = vunpack.c.0.s8 %v2149
        %v2151 = vlaneseq
        %v2152 = vshrl.u32 %v2151, 7
        %v2153 = vsub.s32 %v2150, %v2152
        %v2154 = vrot.slane %v2140, %v2153
        %v2155 = vcombine.low %v639, %v645
        %v2156 = vcombine.high %v639, %v645
        %v2158 = vunpack.c.l.s4 1983009808
        %v2159 = vunpack.c.0.s8 %v2158
        %v2160 = vlaneseq
        %v2161 = vshrl.u32 %v2160, 7
        %v2162 = vsub.s32 %v2159, %v2161
        %v2163 = vrot.slane %v2155, %v2162
        %v2165 = vunpack.c.l.s4 1983009808
        %v2166 = vunpack.c.0.s8 %v2165
        %v2167 = vlaneseq
        %v2168 = vshrl.u32 %v2167, 7
        %v2169 = vsub.s32 %v2166, %v2168
        %v2170 = vrot.slane %v2156, %v2169
        %v2171 = vcombine.low %v648, %v654
        %v2172 = vcombine.high %v648, %v654
        %v2174 = vunpack.c.l.s4 1983009808
        %v2175 = vunpack.c.0.s8 %v2174
        %v2176 = vlaneseq
        %v2177 = vshrl.u32 %v2176, 7
        %v2178 = vsub.s32 %v2175, %v2177
        %v2179 = vrot.slane %v2171, %v2178
        %v2181 = vunpack.c.l.s4 1983009808
        %v2182 = vunpack.c.0.s8 %v2181
        %v2183 = vlaneseq
        %v2184 = vshrl.u32 %v2183, 7
        %v2185 = vsub.s32 %v2182, %v2184
        %v2186 = vrot.slane %v2172, %v2185
        %v2187 = vcombine.low %v651, %v657
        %v2188 = vcombine.high %v651, %v657
        %v2190 = vunpack.c.l.s4 1983009808
        %v2191 = vunpack.c.0.s8 %v2190
        %v2192 = vlaneseq
        %v2193 = vshrl.u32 %v2192, 7
        %v2194 = vsub.s32 %v2191, %v2193
        %v2195 = vrot.slane %v2187, %v2194
        %v2197 = vunpack.c.l.s4 1983009808
        %v2198 = vunpack.c.0.s8 %v2197
        %v2199 = vlaneseq
        %v2200 = vshrl.u32 %v2199, 7
        %v2201 = vsub.s32 %v2198, %v2200
        %v2202 = vrot.slane %v2188, %v2201
        %v2203 = vcombine.low %v2147, %v2163
        %v2204 = vcombine.high %v2147, %v2163
        %v2206 = vunpack.c.l.s4 1934713408
        %v2207 = vunpack.c.0.s8 %v2206
        %v2208 = vlaneseq
        %v2209 = vshrl.u32 %v2208, 7
        %v2210 = vsub.s32 %v2207, %v2209
        %v2211 = vrot.slane %v2203, %v2210
        %v2213 = vunpack.c.l.s4 1934713408
        %v2214 = vunpack.c.0.s8 %v2213
        %v2215 = vlaneseq
        %v2216 = vshrl.u32 %v2215, 7
        %v2217 = vsub.s32 %v2214, %v2216
        %v2218 = vrot.slane %v2204, %v2217
        %v2219 = vcombine.low %v2154, %v2170
        %v2220 = vcombine.high %v2154, %v2170
        %v2222 = vunpack.c.l.s4 1934713408
        %v2223 = vunpack.c.0.s8 %v2222
        %v2224 = vlaneseq
        %v2225 = vshrl.u32 %v2224, 7
        %v2226 = vsub.s32 %v2223, %v2225
        %v2227 = vrot.slane %v2219, %v2226
        %v2229 = vunpack.c.l.s4 1934713408
        %v2230 = vunpack.c.0.s8 %v2229
        %v2231 = vlaneseq
        %v2232 = vshrl.u32 %v2231, 7
        %v2233 = vsub.s32 %v2230, %v2232
        %v2234 = vrot.slane %v2220, %v2233
        %v2235 = vcombine.low %v2179, %v2195
        %v2236 = vcombine.high %v2179, %v2195
        %v2238 = vunpack.c.l.s4 1934713408
        %v2239 = vunpack.c.0.s8 %v2238
        %v2240 = vlaneseq
        %v2241 = vshrl.u32 %v2240, 7
        %v2242 = vsub.s32 %v2239, %v2241
        %v2243 = vrot.slane %v2235, %v2242
        %v2245 = vunpack.c.l.s4 1934713408
        %v2246 = vunpack.c.0.s8 %v2245
        %v2247 = vlaneseq
        %v2248 = vshrl.u32 %v2247, 7
        %v2249 = vsub.s32 %v2246, %v2248
        %v2250 = vrot.slane %v2236, %v2249
        %v2251 = vcombine.low %v2186, %v2202
        %v2252 = vcombine.high %v2186, %v2202
        %v2254 = vunpack.c.l.s4 1934713408
        %v2255 = vunpack.c.0.s8 %v2254
        %v2256 = vlaneseq
        %v2257 = vshrl.u32 %v2256, 7
        %v2258 = vsub.s32 %v2255, %v2257
        %v2259 = vrot.slane %v2251, %v2258
        %v2261 = vunpack.c.l.s4 1934713408
        %v2262 = vunpack.c.0.s8 %v2261
        %v2263 = vlaneseq
        %v2264 = vshrl.u32 %v2263, 7
        %v2265 = vsub.s32 %v2262, %v2264
        %v2266 = vrot.slane %v2252, %v2265
        %v2267 = vcombine.low %v2211, %v2243
        %v2268 = vcombine.high %v2211, %v2243
        %v2269 = vcombine.low %v2218, %v2250
        %v2270 = vcombine.high %v2218, %v2250
        %v2271 = vcombine.low %v2227, %v2259
        %v2272 = vcombine.high %v2227, %v2259
        %v2273 = vcombine.low %v2234, %v2266
        %v2274 = vcombine.high %v2234, %v2266
        %v2275 = vcombine.low %v660, %v666
        %v2276 = vcombine.high %v660, %v666
        %v2278 = vunpack.c.l.s4 1983009808
        %v2279 = vunpack.c.0.s8 %v2278
        %v2280 = vlaneseq
        %v2281 = vshrl.u32 %v2280, 7
        %v2282 = vsub.s32 %v2279, %v2281
        %v2283 = vrot.slane %v2275, %v2282
        %v2285 = vunpack.c.l.s4 1983009808
        %v2286 = vunpack.c.0.s8 %v2285
        %v2287 = vlaneseq
        %v2288 = vshrl.u32 %v2287, 7
        %v2289 = vsub.s32 %v2286, %v2288
        %v2290 = vrot.slane %v2276, %v2289
        %v2291 = vcombine.low %v663, %v669
        %v2292 = vcombine.high %v663, %v669
        %v2294 = vunpack.c.l.s4 1983009808
        %v2295 = vunpack.c.0.s8 %v2294
        %v2296 = vlaneseq
        %v2297 = vshrl.u32 %v2296, 7
        %v2298 = vsub.s32 %v2295, %v2297
        %v2299 = vrot.slane %v2291, %v2298
        %v2301 = vunpack.c.l.s4 1983009808
        %v2302 = vunpack.c.0.s8 %v2301
        %v2303 = vlaneseq
        %v2304 = vshrl.u32 %v2303, 7
        %v2305 = vsub.s32 %v2302, %v2304
        %v2306 = vrot.slane %v2292, %v2305
        %v2307 = vcombine.low %v672, %v678
        %v2308 = vcombine.high %v672, %v678
        %v2310 = vunpack.c.l.s4 1983009808
        %v2311 = vunpack.c.0.s8 %v2310
        %v2312 = vlaneseq
        %v2313 = vshrl.u32 %v2312, 7
        %v2314 = vsub.s32 %v2311, %v2313
        %v2315 = vrot.slane %v2307, %v2314
        %v2317 = vunpack.c.l.s4 1983009808
        %v2318 = vunpack.c.0.s8 %v2317
        %v2319 = vlaneseq
        %v2320 = vshrl.u32 %v2319, 7
        %v2321 = vsub.s32 %v2318, %v2320
        %v2322 = vrot.slane %v2308, %v2321
        %v2323 = vcombine.low %v675, %v681
        %v2324 = vcombine.high %v675, %v681
        %v2326 = vunpack.c.l.s4 1983009808
        %v2327 = vunpack.c.0.s8 %v2326
        %v2328 = vlaneseq
        %v2329 = vshrl.u32 %v2328, 7
        %v2330 = vsub.s32 %v2327, %v2329
        %v2331 = vrot.slane %v2323, %v2330
        %v2333 = vunpack.c.l.s4 1983009808
        %v2334 = vunpack.c.0.s8 %v2333
        %v2335 = vlaneseq
        %v2336 = vshrl.u32 %v2335, 7
        %v2337 = vsub.s32 %v2334, %v2336
        %v2338 = vrot.slane %v2324, %v2337
        %v2339 = vcombine.low %v2283, %v2299
        %v2340 = vcombine.high %v2283, %v2299
        %v2342 = vunpack.c.l.s4 1934713408
        %v2343 = vunpack.c.0.s8 %v2342
        %v2344 = vlaneseq
        %v2345 = vshrl.u32 %v2344, 7
        %v2346 = vsub.s32 %v2343, %v2345
        %v2347 = vrot.slane %v2339, %v2346
        %v2349 = vunpack.c.l.s4 1934713408
        %v2350 = vunpack.c.0.s8 %v2349
        %v2351 = vlaneseq
        %v2352 = vshrl.u32 %v2351, 7
        %v2353 = vsub.s32 %v2350, %v2352
        %v2354 = vrot.slane %v2340, %v2353
        %v2355 = vcombine.low %v2290, %v2306
        %v2356 = vcombine.high %v2290, %v2306
        %v2358 = vunpack.c.l.s4 1934713408
        %v2359 = vunpack.c.0.s8 %v2358
        %v2360 = vlaneseq
        %v2361 = vshrl.u32 %v2360, 7
        %v2362 = vsub.s32 %v2359, %v2361
        %v2363 = vrot.slane %v2355, %v2362
        %v2365 = vunpack.c.l.s4 1934713408
        %v2366 = vunpack.c.0.s8 %v2365
        %v2367 = vlaneseq
        %v2368 = vshrl.u32 %v2367, 7
        %v2369 = vsub.s32 %v2366, %v2368
        %v2370 = vrot.slane %v2356, %v2369
        %v2371 = vcombine.low %v2315, %v2331
        %v2372 = vcombine.high %v2315, %v2331
        %v2374 = vunpack.c.l.s4 1934713408
        %v2375 = vunpack.c.0.s8 %v2374
        %v2376 = vlaneseq
        %v2377 = vshrl.u32 %v2376, 7
        %v2378 = vsub.s32 %v2375, %v2377
        %v2379 = vrot.slane %v2371, %v2378
        %v2381 = vunpack.c.l.s4 1934713408
        %v2382 = vunpack.c.0.s8 %v2381
        %v2383 = vlaneseq
        %v2384 = vshrl.u32 %v2383, 7
        %v2385 = vsub.s32 %v2382, %v2384
        %v2386 = vrot.slane %v2372, %v2385
        %v2387 = vcombine.low %v2322, %v2338
        %v2388 = vcombine.high %v2322, %v2338
        %v2390 = vunpack.c.l.s4 1934713408
        %v2391 = vunpack.c.0.s8 %v2390
        %v2392 = vlaneseq
        %v2393 = vshrl.u32 %v2392, 7
        %v2394 = vsub.s32 %v2391, %v2393
        %v2395 = vrot.slane %v2387, %v2394
        %v2397 = vunpack.c.l.s4 1934713408
        %v2398 = vunpack.c.0.s8 %v2397
        %v2399 = vlaneseq
        %v2400 = vshrl.u32 %v2399, 7
        %v2401 = vsub.s32 %v2398, %v2400
        %v2402 = vrot.slane %v2388, %v2401
        %v2403 = vcombine.low %v2347, %v2379
        %v2404 = vcombine.high %v2347, %v2379
        %v2405 = vcombine.low %v2354, %v2386
        %v2406 = vcombine.high %v2354, %v2386
        %v2407 = vcombine.low %v2363, %v2395
        %v2408 = vcombine.high %v2363, %v2395
        %v2409 = vcombine.low %v2370, %v2402
        %v2410 = vcombine.high %v2370, %v2402
        %v2411 = vcombine.low %v684, %v690
        %v2412 = vcombine.high %v684, %v690
        %v2414 = vunpack.c.l.s4 1983009808
        %v2415 = vunpack.c.0.s8 %v2414
        %v2416 = vlaneseq
        %v2417 = vshrl.u32 %v2416, 7
        %v2418 = vsub.s32 %v2415, %v2417
        %v2419 = vrot.slane %v2411, %v2418
        %v2421 = vunpack.c.l.s4 1983009808
        %v2422 = vunpack.c.0.s8 %v2421
        %v2423 = vlaneseq
        %v2424 = vshrl.u32 %v2423, 7
        %v2425 = vsub.s32 %v2422, %v2424
        %v2426 = vrot.slane %v2412, %v2425
        %v2427 = vcombine.low %v687, %v693
        %v2428 = vcombine.high %v687, %v693
        %v2430 = vunpack.c.l.s4 1983009808
        %v2431 = vunpack.c.0.s8 %v2430
        %v2432 = vlaneseq
        %v2433 = vshrl.u32 %v2432, 7
        %v2434 = vsub.s32 %v2431, %v2433
        %v2435 = vrot.slane %v2427, %v2434
        %v2437 = vunpack.c.l.s4 1983009808
        %v2438 = vunpack.c.0.s8 %v2437
        %v2439 = vlaneseq
        %v2440 = vshrl.u32 %v2439, 7
        %v2441 = vsub.s32 %v2438, %v2440
        %v2442 = vrot.slane %v2428, %v2441
        %v2443 = vcombine.low %v696, %v702
        %v2444 = vcombine.high %v696, %v702
        %v2446 = vunpack.c.l.s4 1983009808
        %v2447 = vunpack.c.0.s8 %v2446
        %v2448 = vlaneseq
        %v2449 = vshrl.u32 %v2448, 7
        %v2450 = vsub.s32 %v2447, %v2449
        %v2451 = vrot.slane %v2443, %v2450
        %v2453 = vunpack.c.l.s4 1983009808
        %v2454 = vunpack.c.0.s8 %v2453
        %v2455 = vlaneseq
        %v2456 = vshrl.u32 %v2455, 7
        %v2457 = vsub.s32 %v2454, %v2456
        %v2458 = vrot.slane %v2444, %v2457
        %v2459 = vcombine.low %v699, %v705
        %v2460 = vcombine.high %v699, %v705
        %v2462 = vunpack.c.l.s4 1983009808
        %v2463 = vunpack.c.0.s8 %v2462
        %v2464 = vlaneseq
        %v2465 = vshrl.u32 %v2464, 7
        %v2466 = vsub.s32 %v2463, %v2465
        %v2467 = vrot.slane %v2459, %v2466
        %v2469 = vunpack.c.l.s4 1983009808
        %v2470 = vunpack.c.0.s8 %v2469
        %v2471 = vlaneseq
        %v2472 = vshrl.u32 %v2471, 7
        %v2473 = vsub.s32 %v2470, %v2472
        %v2474 = vrot.slane %v2460, %v2473
        %v2475 = vcombine.low %v2419, %v2435
        %v2476 = vcombine.high %v2419, %v2435
        %v2478 = vunpack.c.l.s4 1934713408
        %v2479 = vunpack.c.0.s8 %v2478
        %v2480 = vlaneseq
        %v2481 = vshrl.u32 %v2480, 7
        %v2482 = vsub.s32 %v2479, %v2481
        %v2483 = vrot.slane %v2475, %v2482
        %v2485 = vunpack.c.l.s4 1934713408
        %v2486 = vunpack.c.0.s8 %v2485
        %v2487 = vlaneseq
        %v2488 = vshrl.u32 %v2487, 7
        %v2489 = vsub.s32 %v2486, %v2488
        %v2490 = vrot.slane %v2476, %v2489
        %v2491 = vcombine.low %v2426, %v2442
        %v2492 = vcombine.high %v2426, %v2442
        %v2494 = vunpack.c.l.s4 1934713408
        %v2495 = vunpack.c.0.s8 %v2494
        %v2496 = vlaneseq
        %v2497 = vshrl.u32 %v2496, 7
        %v2498 = vsub.s32 %v2495, %v2497
        %v2499 = vrot.slane %v2491, %v2498
        %v2501 = vunpack.c.l.s4 1934713408
        %v2502 = vunpack.c.0.s8 %v2501
        %v2503 = vlaneseq
        %v2504 = vshrl.u32 %v2503, 7
        %v2505 = vsub.s32 %v2502, %v2504
        %v2506 = vrot.slane %v2492, %v2505
        %v2507 = vcombine.low %v2451, %v2467
        %v2508 = vcombine.high %v2451, %v2467
        %v2510 = vunpack.c.l.s4 1934713408
        %v2511 = vunpack.c.0.s8 %v2510
        %v2512 = vlaneseq
        %v2513 = vshrl.u32 %v2512, 7
        %v2514 = vsub.s32 %v2511, %v2513
        %v2515 = vrot.slane %v2507, %v2514
        %v2517 = vunpack.c.l.s4 1934713408
        %v2518 = vunpack.c.0.s8 %v2517
        %v2519 = vlaneseq
        %v2520 = vshrl.u32 %v2519, 7
        %v2521 = vsub.s32 %v2518, %v2520
        %v2522 = vrot.slane %v2508, %v2521
        %v2523 = vcombine.low %v2458, %v2474
        %v2524 = vcombine.high %v2458, %v2474
        %v2526 = vunpack.c.l.s4 1934713408
        %v2527 = vunpack.c.0.s8 %v2526
        %v2528 = vlaneseq
        %v2529 = vshrl.u32 %v2528, 7
        %v2530 = vsub.s32 %v2527, %v2529
        %v2531 = vrot.slane %v2523, %v2530
        %v2533 = vunpack.c.l.s4 1934713408
        %v2534 = vunpack.c.0.s8 %v2533
        %v2535 = vlaneseq
        %v2536 = vshrl.u32 %v2535, 7
        %v2537 = vsub.s32 %v2534, %v2536
        %v2538 = vrot.slane %v2524, %v2537
        %v2539 = vcombine.low %v2483, %v2515
        %v2540 = vcombine.high %v2483, %v2515
        %v2541 = vcombine.low %v2490, %v2522
        %v2542 = vcombine.high %v2490, %v2522
        %v2543 = vcombine.low %v2499, %v2531
        %v2544 = vcombine.high %v2499, %v2531
        %v2545 = vcombine.low %v2506, %v2538
        %v2546 = vcombine.high %v2506, %v2538
        %v2547 = vcombine.low %v708, %v714
        %v2548 = vcombine.high %v708, %v714
        %v2550 = vunpack.c.l.s4 1983009808
        %v2551 = vunpack.c.0.s8 %v2550
        %v2552 = vlaneseq
        %v2553 = vshrl.u32 %v2552, 7
        %v2554 = vsub.s32 %v2551, %v2553
        %v2555 = vrot.slane %v2547, %v2554
        %v2557 = vunpack.c.l.s4 1983009808
        %v2558 = vunpack.c.0.s8 %v2557
        %v2559 = vlaneseq
        %v2560 = vshrl.u32 %v2559, 7
        %v2561 = vsub.s32 %v2558, %v2560
        %v2562 = vrot.slane %v2548, %v2561
        %v2563 = vcombine.low %v711, %v717
        %v2564 = vcombine.high %v711, %v717
        %v2566 = vunpack.c.l.s4 1983009808
        %v2567 = vunpack.c.0.s8 %v2566
        %v2568 = vlaneseq
        %v2569 = vshrl.u32 %v2568, 7
        %v2570 = vsub.s32 %v2567, %v2569
        %v2571 = vrot.slane %v2563, %v2570
        %v2573 = vunpack.c.l.s4 1983009808
        %v2574 = vunpack.c.0.s8 %v2573
        %v2575 = vlaneseq
        %v2576 = vshrl.u32 %v2575, 7
        %v2577 = vsub.s32 %v2574, %v2576
        %v2578 = vrot.slane %v2564, %v2577
        %v2579 = vcombine.low %v720, %v726
        %v2580 = vcombine.high %v720, %v726
        %v2582 = vunpack.c.l.s4 1983009808
        %v2583 = vunpack.c.0.s8 %v2582
        %v2584 = vlaneseq
        %v2585 = vshrl.u32 %v2584, 7
        %v2586 = vsub.s32 %v2583, %v2585
        %v2587 = vrot.slane %v2579, %v2586
        %v2589 = vunpack.c.l.s4 1983009808
        %v2590 = vunpack.c.0.s8 %v2589
        %v2591 = vlaneseq
        %v2592 = vshrl.u32 %v2591, 7
        %v2593 = vsub.s32 %v2590, %v2592
        %v2594 = vrot.slane %v2580, %v2593
        %v2595 = vcombine.low %v723, %v729
        %v2596 = vcombine.high %v723, %v729
        %v2598 = vunpack.c.l.s4 1983009808
        %v2599 = vunpack.c.0.s8 %v2598
        %v2600 = vlaneseq
        %v2601 = vshrl.u32 %v2600, 7
        %v2602 = vsub.s32 %v2599, %v2601
        %v2603 = vrot.slane %v2595, %v2602
        %v2605 = vunpack.c.l.s4 1983009808
        %v2606 = vunpack.c.0.s8 %v2605
        %v2607 = vlaneseq
        %v2608 = vshrl.u32 %v2607, 7
        %v2609 = vsub.s32 %v2606, %v2608
        %v2610 = vrot.slane %v2596, %v2609
        %v2611 = vcombine.low %v2555, %v2571
        %v2612 = vcombine.high %v2555, %v2571
        %v2614 = vunpack.c.l.s4 1934713408
        %v2615 = vunpack.c.0.s8 %v2614
        %v2616 = vlaneseq
        %v2617 = vshrl.u32 %v2616, 7
        %v2618 = vsub.s32 %v2615, %v2617
        %v2619 = vrot.slane %v2611, %v2618
        %v2621 = vunpack.c.l.s4 1934713408
        %v2622 = vunpack.c.0.s8 %v2621
        %v2623 = vlaneseq
        %v2624 = vshrl.u32 %v2623, 7
        %v2625 = vsub.s32 %v2622, %v2624
        %v2626 = vrot.slane %v2612, %v2625
        %v2627 = vcombine.low %v2562, %v2578
        %v2628 = vcombine.high %v2562, %v2578
        %v2630 = vunpack.c.l.s4 1934713408
        %v2631 = vunpack.c.0.s8 %v2630
        %v2632 = vlaneseq
        %v2633 = vshrl.u32 %v2632, 7
        %v2634 = vsub.s32 %v2631, %v2633
        %v2635 = vrot.slane %v2627, %v2634
        %v2637 = vunpack.c.l.s4 1934713408
        %v2638 = vunpack.c.0.s8 %v2637
        %v2639 = vlaneseq
        %v2640 = vshrl.u32 %v2639, 7
        %v2641 = vsub.s32 %v2638, %v2640
        %v2642 = vrot.slane %v2628, %v2641
        %v2643 = vcombine.low %v2587, %v2603
        %v2644 = vcombine.high %v2587, %v2603
        %v2646 = vunpack.c.l.s4 1934713408
        %v2647 = vunpack.c.0.s8 %v2646
        %v2648 = vlaneseq
        %v2649 = vshrl.u32 %v2648, 7
        %v2650 = vsub.s32 %v2647, %v2649
        %v2651 = vrot.slane %v2643, %v2650
        %v2653 = vunpack.c.l.s4 1934713408
        %v2654 = vunpack.c.0.s8 %v2653
        %v2655 = vlaneseq
        %v2656 = vshrl.u32 %v2655, 7
        %v2657 = vsub.s32 %v2654, %v2656
        %v2658 = vrot.slane %v2644, %v2657
        %v2659 = vcombine.low %v2594, %v2610
        %v2660 = vcombine.high %v2594, %v2610
        %v2662 = vunpack.c.l.s4 1934713408
        %v2663 = vunpack.c.0.s8 %v2662
        %v2664 = vlaneseq
        %v2665 = vshrl.u32 %v2664, 7
        %v2666 = vsub.s32 %v2663, %v2665
        %v2667 = vrot.slane %v2659, %v2666
        %v2669 = vunpack.c.l.s4 1934713408
        %v2670 = vunpack.c.0.s8 %v2669
        %v2671 = vlaneseq
        %v2672 = vshrl.u32 %v2671, 7
        %v2673 = vsub.s32 %v2670, %v2672
        %v2674 = vrot.slane %v2660, %v2673
        %v2675 = vcombine.low %v2619, %v2651
        %v2676 = vcombine.high %v2619, %v2651
        %v2677 = vcombine.low %v2626, %v2658
        %v2678 = vcombine.high %v2626, %v2658
        %v2679 = vcombine.low %v2635, %v2667
        %v2680 = vcombine.high %v2635, %v2667
        %v2681 = vcombine.low %v2642, %v2674
        %v2682 = vcombine.high %v2642, %v2674
        %v2683 = vcombine.low %v732, %v738
        %v2684 = vcombine.high %v732, %v738
        %v2686 = vunpack.c.l.s4 1983009808
        %v2687 = vunpack.c.0.s8 %v2686
        %v2688 = vlaneseq
        %v2689 = vshrl.u32 %v2688, 7
        %v2690 = vsub.s32 %v2687, %v2689
        %v2691 = vrot.slane %v2683, %v2690
        %v2693 = vunpack.c.l.s4 1983009808
        %v2694 = vunpack.c.0.s8 %v2693
        %v2695 = vlaneseq
        %v2696 = vshrl.u32 %v2695, 7
        %v2697 = vsub.s32 %v2694, %v2696
        %v2698 = vrot.slane %v2684, %v2697
        %v2699 = vcombine.low %v735, %v741
        %v2700 = vcombine.high %v735, %v741
        %v2702 = vunpack.c.l.s4 1983009808
        %v2703 = vunpack.c.0.s8 %v2702
        %v2704 = vlaneseq
        %v2705 = vshrl.u32 %v2704, 7
        %v2706 = vsub.s32 %v2703, %v2705
        %v2707 = vrot.slane %v2699, %v2706
        %v2709 = vunpack.c.l.s4 1983009808
        %v2710 = vunpack.c.0.s8 %v2709
        %v2711 = vlaneseq
        %v2712 = vshrl.u32 %v2711, 7
        %v2713 = vsub.s32 %v2710, %v2712
        %v2714 = vrot.slane %v2700, %v2713
        %v2715 = vcombine.low %v744, %v750
        %v2716 = vcombine.high %v744, %v750
        %v2718 = vunpack.c.l.s4 1983009808
        %v2719 = vunpack.c.0.s8 %v2718
        %v2720 = vlaneseq
        %v2721 = vshrl.u32 %v2720, 7
        %v2722 = vsub.s32 %v2719, %v2721
        %v2723 = vrot.slane %v2715, %v2722
        %v2725 = vunpack.c.l.s4 1983009808
        %v2726 = vunpack.c.0.s8 %v2725
        %v2727 = vlaneseq
        %v2728 = vshrl.u32 %v2727, 7
        %v2729 = vsub.s32 %v2726, %v2728
        %v2730 = vrot.slane %v2716, %v2729
        %v2731 = vcombine.low %v747, %v753
        %v2732 = vcombine.high %v747, %v753
        %v2734 = vunpack.c.l.s4 1983009808
        %v2735 = vunpack.c.0.s8 %v2734
        %v2736 = vlaneseq
        %v2737 = vshrl.u32 %v2736, 7
        %v2738 = vsub.s32 %v2735, %v2737
        %v2739 = vrot.slane %v2731, %v2738
        %v2741 = vunpack.c.l.s4 1983009808
        %v2742 = vunpack.c.0.s8 %v2741
        %v2743 = vlaneseq
        %v2744 = vshrl.u32 %v2743, 7
        %v2745 = vsub.s32 %v2742, %v2744
        %v2746 = vrot.slane %v2732, %v2745
        %v2747 = vcombine.low %v2691, %v2707
        %v2748 = vcombine.high %v2691, %v2707
        %v2750 = vunpack.c.l.s4 1934713408
        %v2751 = vunpack.c.0.s8 %v2750
        %v2752 = vlaneseq
        %v2753 = vshrl.u32 %v2752, 7
        %v2754 = vsub.s32 %v2751, %v2753
        %v2755 = vrot.slane %v2747, %v2754
        %v2757 = vunpack.c.l.s4 1934713408
        %v2758 = vunpack.c.0.s8 %v2757
        %v2759 = vlaneseq
        %v2760 = vshrl.u32 %v2759, 7
        %v2761 = vsub.s32 %v2758, %v2760
        %v2762 = vrot.slane %v2748, %v2761
        %v2763 = vcombine.low %v2698, %v2714
        %v2764 = vcombine.high %v2698, %v2714
        %v2766 = vunpack.c.l.s4 1934713408
        %v2767 = vunpack.c.0.s8 %v2766
        %v2768 = vlaneseq
        %v2769 = vshrl.u32 %v2768, 7
        %v2770 = vsub.s32 %v2767, %v2769
        %v2771 = vrot.slane %v2763, %v2770
        %v2773 = vunpack.c.l.s4 1934713408
        %v2774 = vunpack.c.0.s8 %v2773
        %v2775 = vlaneseq
        %v2776 = vshrl.u32 %v2775, 7
        %v2777 = vsub.s32 %v2774, %v2776
        %v2778 = vrot.slane %v2764, %v2777
        %v2779 = vcombine.low %v2723, %v2739
        %v2780 = vcombine.high %v2723, %v2739
        %v2782 = vunpack.c.l.s4 1934713408
        %v2783 = vunpack.c.0.s8 %v2782
        %v2784 = vlaneseq
        %v2785 = vshrl.u32 %v2784, 7
        %v2786 = vsub.s32 %v2783, %v2785
        %v2787 = vrot.slane %v2779, %v2786
        %v2789 = vunpack.c.l.s4 1934713408
        %v2790 = vunpack.c.0.s8 %v2789
        %v2791 = vlaneseq
        %v2792 = vshrl.u32 %v2791, 7
        %v2793 = vsub.s32 %v2790, %v2792
        %v2794 = vrot.slane %v2780, %v2793
        %v2795 = vcombine.low %v2730, %v2746
        %v2796 = vcombine.high %v2730, %v2746
        %v2798 = vunpack.c.l.s4 1934713408
        %v2799 = vunpack.c.0.s8 %v2798
        %v2800 = vlaneseq
        %v2801 = vshrl.u32 %v2800, 7
        %v2802 = vsub.s32 %v2799, %v2801
        %v2803 = vrot.slane %v2795, %v2802
        %v2805 = vunpack.c.l.s4 1934713408
        %v2806 = vunpack.c.0.s8 %v2805
        %v2807 = vlaneseq
        %v2808 = vshrl.u32 %v2807, 7
        %v2809 = vsub.s32 %v2806, %v2808
        %v2810 = vrot.slane %v2796, %v2809
        %v2811 = vcombine.low %v2755, %v2787
        %v2812 = vcombine.high %v2755, %v2787
        %v2813 = vcombine.low %v2762, %v2794
        %v2814 = vcombine.high %v2762, %v2794
        %v2815 = vcombine.low %v2771, %v2803
        %v2816 = vcombine.high %v2771, %v2803
        %v2817 = vcombine.low %v2778, %v2810
        %v2818 = vcombine.high %v2778, %v2810
        %v2819 = vcombine.low %v756, %v762
        %v2820 = vcombine.high %v756, %v762
        %v2822 = vunpack.c.l.s4 1983009808
        %v2823 = vunpack.c.0.s8 %v2822
        %v2824 = vlaneseq
        %v2825 = vshrl.u32 %v2824, 7
        %v2826 = vsub.s32 %v2823, %v2825
        %v2827 = vrot.slane %v2819, %v2826
        %v2829 = vunpack.c.l.s4 1983009808
        %v2830 = vunpack.c.0.s8 %v2829
        %v2831 = vlaneseq
        %v2832 = vshrl.u32 %v2831, 7
        %v2833 = vsub.s32 %v2830, %v2832
        %v2834 = vrot.slane %v2820, %v2833
        %v2835 = vcombine.low %v759, %v765
        %v2836 = vcombine.high %v759, %v765
        %v2838 = vunpack.c.l.s4 1983009808
        %v2839 = vunpack.c.0.s8 %v2838
        %v2840 = vlaneseq
        %v2841 = vshrl.u32 %v2840, 7
        %v2842 = vsub.s32 %v2839, %v2841
        %v2843 = vrot.slane %v2835, %v2842
        %v2845 = vunpack.c.l.s4 1983009808
        %v2846 = vunpack.c.0.s8 %v2845
        %v2847 = vlaneseq
        %v2848 = vshrl.u32 %v2847, 7
        %v2849 = vsub.s32 %v2846, %v2848
        %v2850 = vrot.slane %v2836, %v2849
        %v2851 = vcombine.low %v768, %v774
        %v2852 = vcombine.high %v768, %v774
        %v2854 = vunpack.c.l.s4 1983009808
        %v2855 = vunpack.c.0.s8 %v2854
        %v2856 = vlaneseq
        %v2857 = vshrl.u32 %v2856, 7
        %v2858 = vsub.s32 %v2855, %v2857
        %v2859 = vrot.slane %v2851, %v2858
        %v2861 = vunpack.c.l.s4 1983009808
        %v2862 = vunpack.c.0.s8 %v2861
        %v2863 = vlaneseq
        %v2864 = vshrl.u32 %v2863, 7
        %v2865 = vsub.s32 %v2862, %v2864
        %v2866 = vrot.slane %v2852, %v2865
        %v2867 = vcombine.low %v771, %v777
        %v2868 = vcombine.high %v771, %v777
        %v2870 = vunpack.c.l.s4 1983009808
        %v2871 = vunpack.c.0.s8 %v2870
        %v2872 = vlaneseq
        %v2873 = vshrl.u32 %v2872, 7
        %v2874 = vsub.s32 %v2871, %v2873
        %v2875 = vrot.slane %v2867, %v2874
        %v2877 = vunpack.c.l.s4 1983009808
        %v2878 = vunpack.c.0.s8 %v2877
        %v2879 = vlaneseq
        %v2880 = vshrl.u32 %v2879, 7
        %v2881 = vsub.s32 %v2878, %v2880
        %v2882 = vrot.slane %v2868, %v2881
        %v2883 = vcombine.low %v2827, %v2843
        %v2884 = vcombine.high %v2827, %v2843
        %v2886 = vunpack.c.l.s4 1934713408
        %v2887 = vunpack.c.0.s8 %v2886
        %v2888 = vlaneseq
        %v2889 = vshrl.u32 %v2888, 7
        %v2890 = vsub.s32 %v2887, %v2889
        %v2891 = vrot.slane %v2883, %v2890
        %v2893 = vunpack.c.l.s4 1934713408
        %v2894 = vunpack.c.0.s8 %v2893
        %v2895 = vlaneseq
        %v2896 = vshrl.u32 %v2895, 7
        %v2897 = vsub.s32 %v2894, %v2896
        %v2898 = vrot.slane %v2884, %v2897
        %v2899 = vcombine.low %v2834, %v2850
        %v2900 = vcombine.high %v2834, %v2850
        %v2902 = vunpack.c.l.s4 1934713408
        %v2903 = vunpack.c.0.s8 %v2902
        %v2904 = vlaneseq
        %v2905 = vshrl.u32 %v2904, 7
        %v2906 = vsub.s32 %v2903, %v2905
        %v2907 = vrot.slane %v2899, %v2906
        %v2909 = vunpack.c.l.s4 1934713408
        %v2910 = vunpack.c.0.s8 %v2909
        %v2911 = vlaneseq
        %v2912 = vshrl.u32 %v2911, 7
        %v2913 = vsub.s32 %v2910, %v2912
        %v2914 = vrot.slane %v2900, %v2913
        %v2915 = vcombine.low %v2859, %v2875
        %v2916 = vcombine.high %v2859, %v2875
        %v2918 = vunpack.c.l.s4 1934713408
        %v2919 = vunpack.c.0.s8 %v2918
        %v2920 = vlaneseq
        %v2921 = vshrl.u32 %v2920, 7
        %v2922 = vsub.s32 %v2919, %v2921
        %v2923 = vrot.slane %v2915, %v2922
        %v2925 = vunpack.c.l.s4 1934713408
        %v2926 = vunpack.c.0.s8 %v2925
        %v2927 = vlaneseq
        %v2928 = vshrl.u32 %v2927, 7
        %v2929 = vsub.s32 %v2926, %v2928
        %v2930 = vrot.slane %v2916, %v2929
        %v2931 = vcombine.low %v2866, %v2882
        %v2932 = vcombine.high %v2866, %v2882
        %v2934 = vunpack.c.l.s4 1934713408
        %v2935 = vunpack.c.0.s8 %v2934
        %v2936 = vlaneseq
        %v2937 = vshrl.u32 %v2936, 7
        %v2938 = vsub.s32 %v2935, %v2937
        %v2939 = vrot.slane %v2931, %v2938
        %v2941 = vunpack.c.l.s4 1934713408
        %v2942 = vunpack.c.0.s8 %v2941
        %v2943 = vlaneseq
        %v2944 = vshrl.u32 %v2943, 7
        %v2945 = vsub.s32 %v2942, %v2944
        %v2946 = vrot.slane %v2932, %v2945
        %v2947 = vcombine.low %v2891, %v2923
        %v2948 = vcombine.high %v2891, %v2923
        %v2949 = vcombine.low %v2898, %v2930
        %v2950 = vcombine.high %v2898, %v2930
        %v2951 = vcombine.low %v2907, %v2939
        %v2952 = vcombine.high %v2907, %v2939
        %v2953 = vcombine.low %v2914, %v2946
        %v2954 = vcombine.high %v2914, %v2946
        %vm2955 = vcmask 15360
        %v2956 = vsel %vm2955, %v907, 0.0
        %2957 = vadd.xlane.f32.xlu0 %v2956
        %v2958 = vpop.xlane.xlu0 %2957
        %v2959 = vsel %vm2955, %v1043, 0.0
        %2960 = vadd.xlane.f32.xlu0 %v2959
        %v2961 = vpop.xlane.xlu0 %2960
        %v2962 = vsel %vm2955, %v1179, 0.0
        %2963 = vadd.xlane.f32.xlu0 %v2962
        %v2964 = vpop.xlane.xlu0 %2963
        %v2965 = vsel %vm2955, %v1315, 0.0
        %2966 = vadd.xlane.f32.xlu0 %v2965
        %v2967 = vpop.xlane.xlu0 %2966
        %v2968 = vsel %vm2955, %v1451, 0.0
        %2969 = vadd.xlane.f32.xlu0 %v2968
        %v2970 = vpop.xlane.xlu0 %2969
        %v2971 = vsel %vm2955, %v1587, 0.0
        %2972 = vadd.xlane.f32.xlu0 %v2971
        %v2973 = vpop.xlane.xlu0 %2972
        %v2974 = vsel %vm2955, %v1723, 0.0
        %2975 = vadd.xlane.f32.xlu0 %v2974
        %v2976 = vpop.xlane.xlu0 %2975
        %v2977 = vsel %vm2955, %v1859, 0.0
        %2978 = vadd.xlane.f32.xlu0 %v2977
        %v2979 = vpop.xlane.xlu0 %2978
        %v2980 = vsel %vm2955, %v1995, 0.0
        %2981 = vadd.xlane.f32.xlu0 %v2980
        %v2982 = vpop.xlane.xlu0 %2981
        %v2983 = vsel %vm2955, %v2131, 0.0
        %2984 = vadd.xlane.f32.xlu0 %v2983
        %v2985 = vpop.xlane.xlu0 %2984
        %v2986 = vsel %vm2955, %v2267, 0.0
        %2987 = vadd.xlane.f32.xlu0 %v2986
        %v2988 = vpop.xlane.xlu0 %2987
        %v2989 = vsel %vm2955, %v2403, 0.0
        %2990 = vadd.xlane.f32.xlu0 %v2989
        %v2991 = vpop.xlane.xlu0 %2990
        %v2992 = vsel %vm2955, %v2539, 0.0
        %2993 = vadd.xlane.f32.xlu0 %v2992
        %v2994 = vpop.xlane.xlu0 %2993
        %v2995 = vsel %vm2955, %v2675, 0.0
        %2996 = vadd.xlane.f32.xlu0 %v2995
        %v2997 = vpop.xlane.xlu0 %2996
        %v2998 = vsel %vm2955, %v2811, 0.0
        %2999 = vadd.xlane.f32.xlu0 %v2998
        %v3000 = vpop.xlane.xlu0 %2999
        %v3001 = vsel %vm2955, %v2947, 0.0
        %3002 = vadd.xlane.f32.xlu0 %v3001
        %v3003 = vpop.xlane.xlu0 %3002
        %v3004 = vsel %vm2955, %v908, 0.0
        %3005 = vadd.xlane.f32.xlu0 %v3004
        %v3006 = vpop.xlane.xlu0 %3005
        %v3007 = vsel %vm2955, %v1044, 0.0
        %3008 = vadd.xlane.f32.xlu0 %v3007
        %v3009 = vpop.xlane.xlu0 %3008
        %v3010 = vsel %vm2955, %v1180, 0.0
        %3011 = vadd.xlane.f32.xlu0 %v3010
        %v3012 = vpop.xlane.xlu0 %3011
        %v3013 = vsel %vm2955, %v1316, 0.0
        %3014 = vadd.xlane.f32.xlu0 %v3013
        %v3015 = vpop.xlane.xlu0 %3014
        %v3016 = vsel %vm2955, %v1452, 0.0
        %3017 = vadd.xlane.f32.xlu0 %v3016
        %v3018 = vpop.xlane.xlu0 %3017
        %v3019 = vsel %vm2955, %v1588, 0.0
        %3020 = vadd.xlane.f32.xlu0 %v3019
        %v3021 = vpop.xlane.xlu0 %3020
        %v3022 = vsel %vm2955, %v1724, 0.0
        %3023 = vadd.xlane.f32.xlu0 %v3022
        %v3024 = vpop.xlane.xlu0 %3023
        %v3025 = vsel %vm2955, %v1860, 0.0
        %3026 = vadd.xlane.f32.xlu0 %v3025
        %v3027 = vpop.xlane.xlu0 %3026
        %v3028 = vsel %vm2955, %v1996, 0.0
        %3029 = vadd.xlane.f32.xlu0 %v3028
        %v3030 = vpop.xlane.xlu0 %3029
        %v3031 = vsel %vm2955, %v2132, 0.0
        %3032 = vadd.xlane.f32.xlu0 %v3031
        %v3033 = vpop.xlane.xlu0 %3032
        %v3034 = vsel %vm2955, %v2268, 0.0
        %3035 = vadd.xlane.f32.xlu0 %v3034
        %v3036 = vpop.xlane.xlu0 %3035
        %v3037 = vsel %vm2955, %v2404, 0.0
        %3038 = vadd.xlane.f32.xlu0 %v3037
        %v3039 = vpop.xlane.xlu0 %3038
        %v3040 = vsel %vm2955, %v2540, 0.0
        %3041 = vadd.xlane.f32.xlu0 %v3040
        %v3042 = vpop.xlane.xlu0 %3041
        %v3043 = vsel %vm2955, %v2676, 0.0
        %3044 = vadd.xlane.f32.xlu0 %v3043
        %v3045 = vpop.xlane.xlu0 %3044
        %v3046 = vsel %vm2955, %v2812, 0.0
        %3047 = vadd.xlane.f32.xlu0 %v3046
        %v3048 = vpop.xlane.xlu0 %3047
        %v3049 = vsel %vm2955, %v2948, 0.0
        %3050 = vadd.xlane.f32.xlu0 %v3049
        %v3051 = vpop.xlane.xlu0 %3050
        %v3052 = vsel %vm2955, %v909, 0.0
        %3053 = vadd.xlane.f32.xlu0 %v3052
        %v3054 = vpop.xlane.xlu0 %3053
        %v3055 = vsel %vm2955, %v1045, 0.0
        %3056 = vadd.xlane.f32.xlu0 %v3055
        %v3057 = vpop.xlane.xlu0 %3056
        %v3058 = vsel %vm2955, %v1181, 0.0
        %3059 = vadd.xlane.f32.xlu0 %v3058
        %v3060 = vpop.xlane.xlu0 %3059
        %v3061 = vsel %vm2955, %v1317, 0.0
        %3062 = vadd.xlane.f32.xlu0 %v3061
        %v3063 = vpop.xlane.xlu0 %3062
        %v3064 = vsel %vm2955, %v1453, 0.0
        %3065 = vadd.xlane.f32.xlu0 %v3064
        %v3066 = vpop.xlane.xlu0 %3065
        %v3067 = vsel %vm2955, %v1589, 0.0
        %3068 = vadd.xlane.f32.xlu0 %v3067
        %v3069 = vpop.xlane.xlu0 %3068
        %v3070 = vsel %vm2955, %v1725, 0.0
        %3071 = vadd.xlane.f32.xlu0 %v3070
        %v3072 = vpop.xlane.xlu0 %3071
        %v3073 = vsel %vm2955, %v1861, 0.0
        %3074 = vadd.xlane.f32.xlu0 %v3073
        %v3075 = vpop.xlane.xlu0 %3074
        %v3076 = vsel %vm2955, %v1997, 0.0
        %3077 = vadd.xlane.f32.xlu0 %v3076
        %v3078 = vpop.xlane.xlu0 %3077
        %v3079 = vsel %vm2955, %v2133, 0.0
        %3080 = vadd.xlane.f32.xlu0 %v3079
        %v3081 = vpop.xlane.xlu0 %3080
        %v3082 = vsel %vm2955, %v2269, 0.0
        %3083 = vadd.xlane.f32.xlu0 %v3082
        %v3084 = vpop.xlane.xlu0 %3083
        %v3085 = vsel %vm2955, %v2405, 0.0
        %3086 = vadd.xlane.f32.xlu0 %v3085
        %v3087 = vpop.xlane.xlu0 %3086
        %v3088 = vsel %vm2955, %v2541, 0.0
        %3089 = vadd.xlane.f32.xlu0 %v3088
        %v3090 = vpop.xlane.xlu0 %3089
        %v3091 = vsel %vm2955, %v2677, 0.0
        %3092 = vadd.xlane.f32.xlu0 %v3091
        %v3093 = vpop.xlane.xlu0 %3092
        %v3094 = vsel %vm2955, %v2813, 0.0
        %3095 = vadd.xlane.f32.xlu0 %v3094
        %v3096 = vpop.xlane.xlu0 %3095
        %v3097 = vsel %vm2955, %v2949, 0.0
        %3098 = vadd.xlane.f32.xlu0 %v3097
        %v3099 = vpop.xlane.xlu0 %3098
        %v3100 = vsel %vm2955, %v910, 0.0
        %3101 = vadd.xlane.f32.xlu0 %v3100
        %v3102 = vpop.xlane.xlu0 %3101
        %v3103 = vsel %vm2955, %v1046, 0.0
        %3104 = vadd.xlane.f32.xlu0 %v3103
        %v3105 = vpop.xlane.xlu0 %3104
        %v3106 = vsel %vm2955, %v1182, 0.0
        %3107 = vadd.xlane.f32.xlu0 %v3106
        %v3108 = vpop.xlane.xlu0 %3107
        %v3109 = vsel %vm2955, %v1318, 0.0
        %3110 = vadd.xlane.f32.xlu0 %v3109
        %v3111 = vpop.xlane.xlu0 %3110
        %v3112 = vsel %vm2955, %v1454, 0.0
        %3113 = vadd.xlane.f32.xlu0 %v3112
        %v3114 = vpop.xlane.xlu0 %3113
        %v3115 = vsel %vm2955, %v1590, 0.0
        %3116 = vadd.xlane.f32.xlu0 %v3115
        %v3117 = vpop.xlane.xlu0 %3116
        %v3118 = vsel %vm2955, %v1726, 0.0
        %3119 = vadd.xlane.f32.xlu0 %v3118
        %v3120 = vpop.xlane.xlu0 %3119
        %v3121 = vsel %vm2955, %v1862, 0.0
        %3122 = vadd.xlane.f32.xlu0 %v3121
        %v3123 = vpop.xlane.xlu0 %3122
        %v3124 = vsel %vm2955, %v1998, 0.0
        %3125 = vadd.xlane.f32.xlu0 %v3124
        %v3126 = vpop.xlane.xlu0 %3125
        %v3127 = vsel %vm2955, %v2134, 0.0
        %3128 = vadd.xlane.f32.xlu0 %v3127
        %v3129 = vpop.xlane.xlu0 %3128
        %v3130 = vsel %vm2955, %v2270, 0.0
        %3131 = vadd.xlane.f32.xlu0 %v3130
        %v3132 = vpop.xlane.xlu0 %3131
        %v3133 = vsel %vm2955, %v2406, 0.0
        %3134 = vadd.xlane.f32.xlu0 %v3133
        %v3135 = vpop.xlane.xlu0 %3134
        %v3136 = vsel %vm2955, %v2542, 0.0
        %3137 = vadd.xlane.f32.xlu0 %v3136
        %v3138 = vpop.xlane.xlu0 %3137
        %v3139 = vsel %vm2955, %v2678, 0.0
        %3140 = vadd.xlane.f32.xlu0 %v3139
        %v3141 = vpop.xlane.xlu0 %3140
        %v3142 = vsel %vm2955, %v2814, 0.0
        %3143 = vadd.xlane.f32.xlu0 %v3142
        %v3144 = vpop.xlane.xlu0 %3143
        %v3145 = vsel %vm2955, %v2950, 0.0
        %3146 = vadd.xlane.f32.xlu0 %v3145
        %v3147 = vpop.xlane.xlu0 %3146
        %v3148 = vsel %vm2955, %v911, 0.0
        %3149 = vadd.xlane.f32.xlu0 %v3148
        %v3150 = vpop.xlane.xlu0 %3149
        %v3151 = vsel %vm2955, %v1047, 0.0
        %3152 = vadd.xlane.f32.xlu0 %v3151
        %v3153 = vpop.xlane.xlu0 %3152
        %v3154 = vsel %vm2955, %v1183, 0.0
        %3155 = vadd.xlane.f32.xlu0 %v3154
        %v3156 = vpop.xlane.xlu0 %3155
        %v3157 = vsel %vm2955, %v1319, 0.0
        %3158 = vadd.xlane.f32.xlu0 %v3157
        %v3159 = vpop.xlane.xlu0 %3158
        %v3160 = vsel %vm2955, %v1455, 0.0
        %3161 = vadd.xlane.f32.xlu0 %v3160
        %v3162 = vpop.xlane.xlu0 %3161
        %v3163 = vsel %vm2955, %v1591, 0.0
        %3164 = vadd.xlane.f32.xlu0 %v3163
        %v3165 = vpop.xlane.xlu0 %3164
        %v3166 = vsel %vm2955, %v1727, 0.0
        %3167 = vadd.xlane.f32.xlu0 %v3166
        %v3168 = vpop.xlane.xlu0 %3167
        %v3169 = vsel %vm2955, %v1863, 0.0
        %3170 = vadd.xlane.f32.xlu0 %v3169
        %v3171 = vpop.xlane.xlu0 %3170
        %v3172 = vsel %vm2955, %v1999, 0.0
        %3173 = vadd.xlane.f32.xlu0 %v3172
        %v3174 = vpop.xlane.xlu0 %3173
        %v3175 = vsel %vm2955, %v2135, 0.0
        %3176 = vadd.xlane.f32.xlu0 %v3175
        %v3177 = vpop.xlane.xlu0 %3176
        %v3178 = vsel %vm2955, %v2271, 0.0
        %3179 = vadd.xlane.f32.xlu0 %v3178
        %v3180 = vpop.xlane.xlu0 %3179
        %v3181 = vsel %vm2955, %v2407, 0.0
        %3182 = vadd.xlane.f32.xlu0 %v3181
        %v3183 = vpop.xlane.xlu0 %3182
        %v3184 = vsel %vm2955, %v2543, 0.0
        %3185 = vadd.xlane.f32.xlu0 %v3184
        %v3186 = vpop.xlane.xlu0 %3185
        %v3187 = vsel %vm2955, %v2679, 0.0
        %3188 = vadd.xlane.f32.xlu0 %v3187
        %v3189 = vpop.xlane.xlu0 %3188
        %v3190 = vsel %vm2955, %v2815, 0.0
        %3191 = vadd.xlane.f32.xlu0 %v3190
        %v3192 = vpop.xlane.xlu0 %3191
        %v3193 = vsel %vm2955, %v2951, 0.0
        %3194 = vadd.xlane.f32.xlu0 %v3193
        %v3195 = vpop.xlane.xlu0 %3194
        %v3196 = vsel %vm2955, %v912, 0.0
        %3197 = vadd.xlane.f32.xlu0 %v3196
        %v3198 = vpop.xlane.xlu0 %3197
        %v3199 = vsel %vm2955, %v1048, 0.0
        %3200 = vadd.xlane.f32.xlu0 %v3199
        %v3201 = vpop.xlane.xlu0 %3200
        %v3202 = vsel %vm2955, %v1184, 0.0
        %3203 = vadd.xlane.f32.xlu0 %v3202
        %v3204 = vpop.xlane.xlu0 %3203
        %v3205 = vsel %vm2955, %v1320, 0.0
        %3206 = vadd.xlane.f32.xlu0 %v3205
        %v3207 = vpop.xlane.xlu0 %3206
        %v3208 = vsel %vm2955, %v1456, 0.0
        %3209 = vadd.xlane.f32.xlu0 %v3208
        %v3210 = vpop.xlane.xlu0 %3209
        %v3211 = vsel %vm2955, %v1592, 0.0
        %3212 = vadd.xlane.f32.xlu0 %v3211
        %v3213 = vpop.xlane.xlu0 %3212
        %v3214 = vsel %vm2955, %v1728, 0.0
        %3215 = vadd.xlane.f32.xlu0 %v3214
        %v3216 = vpop.xlane.xlu0 %3215
        %v3217 = vsel %vm2955, %v1864, 0.0
        %3218 = vadd.xlane.f32.xlu0 %v3217
        %v3219 = vpop.xlane.xlu0 %3218
        %v3220 = vsel %vm2955, %v2000, 0.0
        %3221 = vadd.xlane.f32.xlu0 %v3220
        %v3222 = vpop.xlane.xlu0 %3221
        %v3223 = vsel %vm2955, %v2136, 0.0
        %3224 = vadd.xlane.f32.xlu0 %v3223
        %v3225 = vpop.xlane.xlu0 %3224
        %v3226 = vsel %vm2955, %v2272, 0.0
        %3227 = vadd.xlane.f32.xlu0 %v3226
        %v3228 = vpop.xlane.xlu0 %3227
        %v3229 = vsel %vm2955, %v2408, 0.0
        %3230 = vadd.xlane.f32.xlu0 %v3229
        %v3231 = vpop.xlane.xlu0 %3230
        %v3232 = vsel %vm2955, %v2544, 0.0
        %3233 = vadd.xlane.f32.xlu0 %v3232
        %v3234 = vpop.xlane.xlu0 %3233
        %v3235 = vsel %vm2955, %v2680, 0.0
        %3236 = vadd.xlane.f32.xlu0 %v3235
        %v3237 = vpop.xlane.xlu0 %3236
        %v3238 = vsel %vm2955, %v2816, 0.0
        %3239 = vadd.xlane.f32.xlu0 %v3238
        %v3240 = vpop.xlane.xlu0 %3239
        %v3241 = vsel %vm2955, %v2952, 0.0
        %3242 = vadd.xlane.f32.xlu0 %v3241
        %v3243 = vpop.xlane.xlu0 %3242
        %v3244 = vsel %vm2955, %v913, 0.0
        %3245 = vadd.xlane.f32.xlu0 %v3244
        %v3246 = vpop.xlane.xlu0 %3245
        %v3247 = vsel %vm2955, %v1049, 0.0
        %3248 = vadd.xlane.f32.xlu0 %v3247
        %v3249 = vpop.xlane.xlu0 %3248
        %v3250 = vsel %vm2955, %v1185, 0.0
        %3251 = vadd.xlane.f32.xlu0 %v3250
        %v3252 = vpop.xlane.xlu0 %3251
        %v3253 = vsel %vm2955, %v1321, 0.0
        %3254 = vadd.xlane.f32.xlu0 %v3253
        %v3255 = vpop.xlane.xlu0 %3254
        %v3256 = vsel %vm2955, %v1457, 0.0
        %3257 = vadd.xlane.f32.xlu0 %v3256
        %v3258 = vpop.xlane.xlu0 %3257
        %v3259 = vsel %vm2955, %v1593, 0.0
        %3260 = vadd.xlane.f32.xlu0 %v3259
        %v3261 = vpop.xlane.xlu0 %3260
        %v3262 = vsel %vm2955, %v1729, 0.0
        %3263 = vadd.xlane.f32.xlu0 %v3262
        %v3264 = vpop.xlane.xlu0 %3263
        %v3265 = vsel %vm2955, %v1865, 0.0
        %3266 = vadd.xlane.f32.xlu0 %v3265
        %v3267 = vpop.xlane.xlu0 %3266
        %v3268 = vsel %vm2955, %v2001, 0.0
        %3269 = vadd.xlane.f32.xlu0 %v3268
        %v3270 = vpop.xlane.xlu0 %3269
        %v3271 = vsel %vm2955, %v2137, 0.0
        %3272 = vadd.xlane.f32.xlu0 %v3271
        %v3273 = vpop.xlane.xlu0 %3272
        %v3274 = vsel %vm2955, %v2273, 0.0
        %3275 = vadd.xlane.f32.xlu0 %v3274
        %v3276 = vpop.xlane.xlu0 %3275
        %v3277 = vsel %vm2955, %v2409, 0.0
        %3278 = vadd.xlane.f32.xlu0 %v3277
        %v3279 = vpop.xlane.xlu0 %3278
        %v3280 = vsel %vm2955, %v2545, 0.0
        %3281 = vadd.xlane.f32.xlu0 %v3280
        %v3282 = vpop.xlane.xlu0 %3281
        %v3283 = vsel %vm2955, %v2681, 0.0
        %3284 = vadd.xlane.f32.xlu0 %v3283
        %v3285 = vpop.xlane.xlu0 %3284
        %v3286 = vsel %vm2955, %v2817, 0.0
        %3287 = vadd.xlane.f32.xlu0 %v3286
        %v3288 = vpop.xlane.xlu0 %3287
        %v3289 = vsel %vm2955, %v2953, 0.0
        %3290 = vadd.xlane.f32.xlu0 %v3289
        %v3291 = vpop.xlane.xlu0 %3290
        %v3292 = vsel %vm2955, %v914, 0.0
        %3293 = vadd.xlane.f32.xlu0 %v3292
        %v3294 = vpop.xlane.xlu0 %3293
        %v3295 = vsel %vm2955, %v1050, 0.0
        %3296 = vadd.xlane.f32.xlu0 %v3295
        %v3297 = vpop.xlane.xlu0 %3296
        %v3298 = vsel %vm2955, %v1186, 0.0
        %3299 = vadd.xlane.f32.xlu0 %v3298
        %v3300 = vpop.xlane.xlu0 %3299
        %v3301 = vsel %vm2955, %v1322, 0.0
        %3302 = vadd.xlane.f32.xlu0 %v3301
        %v3303 = vpop.xlane.xlu0 %3302
        %v3304 = vsel %vm2955, %v1458, 0.0
        %3305 = vadd.xlane.f32.xlu0 %v3304
        %v3306 = vpop.xlane.xlu0 %3305
        %v3307 = vsel %vm2955, %v1594, 0.0
        %3308 = vadd.xlane.f32.xlu0 %v3307
        %v3309 = vpop.xlane.xlu0 %3308
        %v3310 = vsel %vm2955, %v1730, 0.0
        %3311 = vadd.xlane.f32.xlu0 %v3310
        %v3312 = vpop.xlane.xlu0 %3311
        %v3313 = vsel %vm2955, %v1866, 0.0
        %3314 = vadd.xlane.f32.xlu0 %v3313
        %v3315 = vpop.xlane.xlu0 %3314
        %v3316 = vsel %vm2955, %v2002, 0.0
        %3317 = vadd.xlane.f32.xlu0 %v3316
        %v3318 = vpop.xlane.xlu0 %3317
        %v3319 = vsel %vm2955, %v2138, 0.0
        %3320 = vadd.xlane.f32.xlu0 %v3319
        %v3321 = vpop.xlane.xlu0 %3320
        %v3322 = vsel %vm2955, %v2274, 0.0
        %3323 = vadd.xlane.f32.xlu0 %v3322
        %v3324 = vpop.xlane.xlu0 %3323
        %v3325 = vsel %vm2955, %v2410, 0.0
        %3326 = vadd.xlane.f32.xlu0 %v3325
        %v3327 = vpop.xlane.xlu0 %3326
        %v3328 = vsel %vm2955, %v2546, 0.0
        %3329 = vadd.xlane.f32.xlu0 %v3328
        %v3330 = vpop.xlane.xlu0 %3329
        %v3331 = vsel %vm2955, %v2682, 0.0
        %3332 = vadd.xlane.f32.xlu0 %v3331
        %v3333 = vpop.xlane.xlu0 %3332
        %v3334 = vsel %vm2955, %v2818, 0.0
        %3335 = vadd.xlane.f32.xlu0 %v3334
        %v3336 = vpop.xlane.xlu0 %3335
        %v3337 = vsel %vm2955, %v2954, 0.0
        %3338 = vadd.xlane.f32.xlu0 %v3337
        %v3339 = vpop.xlane.xlu0 %3338
        %3341 = vrot.lane.b32.xlu0 %v394, 126
        %v3342 = vpop.permute.xlu0 %3341
        %3344 = vrot.lane.b32.xlu0 %v394, 124
        %v3345 = vpop.permute.xlu0 %3344
        %3347 = vrot.lane.b32.xlu0 %v394, 122
        %v3348 = vpop.permute.xlu0 %3347
        %3350 = vrot.lane.b32.xlu0 %v394, 120
        %v3351 = vpop.permute.xlu0 %3350
        %3353 = vrot.lane.b32.xlu0 %v394, 118
        %v3354 = vpop.permute.xlu0 %3353
        %3356 = vrot.lane.b32.xlu0 %v394, 116
        %v3357 = vpop.permute.xlu0 %3356
        %3359 = vrot.lane.b32.xlu0 %v394, 114
        %v3360 = vpop.permute.xlu0 %3359
        %3362 = vrot.lane.b32.xlu0 %v394, 112
        %v3363 = vpop.permute.xlu0 %3362
        %3365 = vrot.lane.b32.xlu0 %v394, 110
        %v3366 = vpop.permute.xlu0 %3365
        %3368 = vrot.lane.b32.xlu0 %v394, 108
        %v3369 = vpop.permute.xlu0 %3368
        %3371 = vrot.lane.b32.xlu0 %v394, 106
        %v3372 = vpop.permute.xlu0 %3371
        %3374 = vrot.lane.b32.xlu0 %v394, 104
        %v3375 = vpop.permute.xlu0 %3374
        %3377 = vrot.lane.b32.xlu0 %v394, 102
        %v3378 = vpop.permute.xlu0 %3377
        %3380 = vrot.lane.b32.xlu0 %v394, 100
        %v3381 = vpop.permute.xlu0 %3380
        %3383 = vrot.lane.b32.xlu0 %v394, 98
        %v3384 = vpop.permute.xlu0 %3383
        %3386 = vrot.lane.b32.xlu0 %v394, 96
        %v3387 = vpop.permute.xlu0 %3386
        %3389 = vrot.lane.b32.xlu0 %v394, 94
        %v3390 = vpop.permute.xlu0 %3389
        %3392 = vrot.lane.b32.xlu0 %v394, 92
        %v3393 = vpop.permute.xlu0 %3392
        %3395 = vrot.lane.b32.xlu0 %v394, 90
        %v3396 = vpop.permute.xlu0 %3395
        %3398 = vrot.lane.b32.xlu0 %v394, 88
        %v3399 = vpop.permute.xlu0 %3398
        %3401 = vrot.lane.b32.xlu0 %v394, 86
        %v3402 = vpop.permute.xlu0 %3401
        %3404 = vrot.lane.b32.xlu0 %v394, 84
        %v3405 = vpop.permute.xlu0 %3404
        %3407 = vrot.lane.b32.xlu0 %v394, 82
        %v3408 = vpop.permute.xlu0 %3407
        %3410 = vrot.lane.b32.xlu0 %v394, 80
        %v3411 = vpop.permute.xlu0 %3410
        %3413 = vrot.lane.b32.xlu0 %v394, 78
        %v3414 = vpop.permute.xlu0 %3413
        %3416 = vrot.lane.b32.xlu0 %v394, 76
        %v3417 = vpop.permute.xlu0 %3416
        %3419 = vrot.lane.b32.xlu0 %v394, 74
        %v3420 = vpop.permute.xlu0 %3419
        %3422 = vrot.lane.b32.xlu0 %v394, 72
        %v3423 = vpop.permute.xlu0 %3422
        %3425 = vrot.lane.b32.xlu0 %v394, 70
        %v3426 = vpop.permute.xlu0 %3425
        %3428 = vrot.lane.b32.xlu0 %v394, 68
        %v3429 = vpop.permute.xlu0 %3428
        %3431 = vrot.lane.b32.xlu0 %v394, 66
        %v3432 = vpop.permute.xlu0 %3431
        %3434 = vrot.lane.b32.xlu0 %v394, 64
        %v3435 = vpop.permute.xlu0 %3434
        %3437 = vrot.lane.b32.xlu0 %v394, 62
        %v3438 = vpop.permute.xlu0 %3437
        %3440 = vrot.lane.b32.xlu0 %v394, 60
        %v3441 = vpop.permute.xlu0 %3440
        %3443 = vrot.lane.b32.xlu0 %v394, 58
        %v3444 = vpop.permute.xlu0 %3443
        %3446 = vrot.lane.b32.xlu0 %v394, 56
        %v3447 = vpop.permute.xlu0 %3446
        %3449 = vrot.lane.b32.xlu0 %v394, 54
        %v3450 = vpop.permute.xlu0 %3449
        %3452 = vrot.lane.b32.xlu0 %v394, 52
        %v3453 = vpop.permute.xlu0 %3452
        %3455 = vrot.lane.b32.xlu0 %v394, 50
        %v3456 = vpop.permute.xlu0 %3455
        %3458 = vrot.lane.b32.xlu0 %v394, 48
        %v3459 = vpop.permute.xlu0 %3458
        %3461 = vrot.lane.b32.xlu0 %v394, 46
        %v3462 = vpop.permute.xlu0 %3461
        %3464 = vrot.lane.b32.xlu0 %v394, 44
        %v3465 = vpop.permute.xlu0 %3464
        %3467 = vrot.lane.b32.xlu0 %v394, 42
        %v3468 = vpop.permute.xlu0 %3467
        %3470 = vrot.lane.b32.xlu0 %v394, 40
        %v3471 = vpop.permute.xlu0 %3470
        %3473 = vrot.lane.b32.xlu0 %v394, 38
        %v3474 = vpop.permute.xlu0 %3473
        %3476 = vrot.lane.b32.xlu0 %v394, 36
        %v3477 = vpop.permute.xlu0 %3476
        %3479 = vrot.lane.b32.xlu0 %v394, 34
        %v3480 = vpop.permute.xlu0 %3479
        %3482 = vrot.lane.b32.xlu0 %v394, 32
        %v3483 = vpop.permute.xlu0 %3482
        %3485 = vrot.lane.b32.xlu0 %v394, 30
        %v3486 = vpop.permute.xlu0 %3485
        %3488 = vrot.lane.b32.xlu0 %v394, 28
        %v3489 = vpop.permute.xlu0 %3488
        %3491 = vrot.lane.b32.xlu0 %v394, 26
        %v3492 = vpop.permute.xlu0 %3491
        %3494 = vrot.lane.b32.xlu0 %v394, 24
        %v3495 = vpop.permute.xlu0 %3494
        %3497 = vrot.lane.b32.xlu0 %v394, 22
        %v3498 = vpop.permute.xlu0 %3497
        %3500 = vrot.lane.b32.xlu0 %v394, 20
        %v3501 = vpop.permute.xlu0 %3500
        %3503 = vrot.lane.b32.xlu0 %v394, 18
        %v3504 = vpop.permute.xlu0 %3503
        %3506 = vrot.lane.b32.xlu0 %v394, 16
        %v3507 = vpop.permute.xlu0 %3506
        %3509 = vrot.lane.b32.xlu0 %v394, 14
        %v3510 = vpop.permute.xlu0 %3509
        %3512 = vrot.lane.b32.xlu0 %v394, 12
        %v3513 = vpop.permute.xlu0 %3512
        %3515 = vrot.lane.b32.xlu0 %v394, 10
        %v3516 = vpop.permute.xlu0 %3515
        %3518 = vrot.lane.b32.xlu0 %v394, 8
        %v3519 = vpop.permute.xlu0 %3518
        %3521 = vrot.lane.b32.xlu0 %v394, 6
        %v3522 = vpop.permute.xlu0 %3521
        %3524 = vrot.lane.b32.xlu0 %v394, 4
        %v3525 = vpop.permute.xlu0 %3524
        %3527 = vrot.lane.b32.xlu0 %v394, 2
        %v3528 = vpop.permute.xlu0 %3527
        %3531 = vrot.lane.b32.xlu0 %v396, 126
        %v3532 = vpop.permute.xlu0 %3531
        %3534 = vrot.lane.b32.xlu0 %v396, 124
        %v3535 = vpop.permute.xlu0 %3534
        %3537 = vrot.lane.b32.xlu0 %v396, 122
        %v3538 = vpop.permute.xlu0 %3537
        %3540 = vrot.lane.b32.xlu0 %v396, 120
        %v3541 = vpop.permute.xlu0 %3540
        %3543 = vrot.lane.b32.xlu0 %v396, 118
        %v3544 = vpop.permute.xlu0 %3543
        %3546 = vrot.lane.b32.xlu0 %v396, 116
        %v3547 = vpop.permute.xlu0 %3546
        %3549 = vrot.lane.b32.xlu0 %v396, 114
        %v3550 = vpop.permute.xlu0 %3549
        %3552 = vrot.lane.b32.xlu0 %v396, 112
        %v3553 = vpop.permute.xlu0 %3552
        %3555 = vrot.lane.b32.xlu0 %v396, 110
        %v3556 = vpop.permute.xlu0 %3555
        %3558 = vrot.lane.b32.xlu0 %v396, 108
        %v3559 = vpop.permute.xlu0 %3558
        %3561 = vrot.lane.b32.xlu0 %v396, 106
        %v3562 = vpop.permute.xlu0 %3561
        %3564 = vrot.lane.b32.xlu0 %v396, 104
        %v3565 = vpop.permute.xlu0 %3564
        %3567 = vrot.lane.b32.xlu0 %v396, 102
        %v3568 = vpop.permute.xlu0 %3567
        %3570 = vrot.lane.b32.xlu0 %v396, 100
        %v3571 = vpop.permute.xlu0 %3570
        %3573 = vrot.lane.b32.xlu0 %v396, 98
        %v3574 = vpop.permute.xlu0 %3573
        %3576 = vrot.lane.b32.xlu0 %v396, 96
        %v3577 = vpop.permute.xlu0 %3576
        %3579 = vrot.lane.b32.xlu0 %v396, 94
        %v3580 = vpop.permute.xlu0 %3579
        %3582 = vrot.lane.b32.xlu0 %v396, 92
        %v3583 = vpop.permute.xlu0 %3582
        %3585 = vrot.lane.b32.xlu0 %v396, 90
        %v3586 = vpop.permute.xlu0 %3585
        %3588 = vrot.lane.b32.xlu0 %v396, 88
        %v3589 = vpop.permute.xlu0 %3588
        %3591 = vrot.lane.b32.xlu0 %v396, 86
        %v3592 = vpop.permute.xlu0 %3591
        %3594 = vrot.lane.b32.xlu0 %v396, 84
        %v3595 = vpop.permute.xlu0 %3594
        %3597 = vrot.lane.b32.xlu0 %v396, 82
        %v3598 = vpop.permute.xlu0 %3597
        %3600 = vrot.lane.b32.xlu0 %v396, 80
        %v3601 = vpop.permute.xlu0 %3600
        %3603 = vrot.lane.b32.xlu0 %v396, 78
        %v3604 = vpop.permute.xlu0 %3603
        %3606 = vrot.lane.b32.xlu0 %v396, 76
        %v3607 = vpop.permute.xlu0 %3606
        %3609 = vrot.lane.b32.xlu0 %v396, 74
        %v3610 = vpop.permute.xlu0 %3609
        %3612 = vrot.lane.b32.xlu0 %v396, 72
        %v3613 = vpop.permute.xlu0 %3612
        %3615 = vrot.lane.b32.xlu0 %v396, 70
        %v3616 = vpop.permute.xlu0 %3615
        %3618 = vrot.lane.b32.xlu0 %v396, 68
        %v3619 = vpop.permute.xlu0 %3618
        %3621 = vrot.lane.b32.xlu0 %v396, 66
        %v3622 = vpop.permute.xlu0 %3621
        %3624 = vrot.lane.b32.xlu0 %v396, 64
        %v3625 = vpop.permute.xlu0 %3624
        %3627 = vrot.lane.b32.xlu0 %v396, 62
        %v3628 = vpop.permute.xlu0 %3627
        %3630 = vrot.lane.b32.xlu0 %v396, 60
        %v3631 = vpop.permute.xlu0 %3630
        %3633 = vrot.lane.b32.xlu0 %v396, 58
        %v3634 = vpop.permute.xlu0 %3633
        %3636 = vrot.lane.b32.xlu0 %v396, 56
        %v3637 = vpop.permute.xlu0 %3636
        %3639 = vrot.lane.b32.xlu0 %v396, 54
        %v3640 = vpop.permute.xlu0 %3639
        %3642 = vrot.lane.b32.xlu0 %v396, 52
        %v3643 = vpop.permute.xlu0 %3642
        %3645 = vrot.lane.b32.xlu0 %v396, 50
        %v3646 = vpop.permute.xlu0 %3645
        %3648 = vrot.lane.b32.xlu0 %v396, 48
        %v3649 = vpop.permute.xlu0 %3648
        %3651 = vrot.lane.b32.xlu0 %v396, 46
        %v3652 = vpop.permute.xlu0 %3651
        %3654 = vrot.lane.b32.xlu0 %v396, 44
        %v3655 = vpop.permute.xlu0 %3654
        %3657 = vrot.lane.b32.xlu0 %v396, 42
        %v3658 = vpop.permute.xlu0 %3657
        %3660 = vrot.lane.b32.xlu0 %v396, 40
        %v3661 = vpop.permute.xlu0 %3660
        %3663 = vrot.lane.b32.xlu0 %v396, 38
        %v3664 = vpop.permute.xlu0 %3663
        %3666 = vrot.lane.b32.xlu0 %v396, 36
        %v3667 = vpop.permute.xlu0 %3666
        %3669 = vrot.lane.b32.xlu0 %v396, 34
        %v3670 = vpop.permute.xlu0 %3669
        %3672 = vrot.lane.b32.xlu0 %v396, 32
        %v3673 = vpop.permute.xlu0 %3672
        %3675 = vrot.lane.b32.xlu0 %v396, 30
        %v3676 = vpop.permute.xlu0 %3675
        %3678 = vrot.lane.b32.xlu0 %v396, 28
        %v3679 = vpop.permute.xlu0 %3678
        %3681 = vrot.lane.b32.xlu0 %v396, 26
        %v3682 = vpop.permute.xlu0 %3681
        %3684 = vrot.lane.b32.xlu0 %v396, 24
        %v3685 = vpop.permute.xlu0 %3684
        %3687 = vrot.lane.b32.xlu0 %v396, 22
        %v3688 = vpop.permute.xlu0 %3687
        %3690 = vrot.lane.b32.xlu0 %v396, 20
        %v3691 = vpop.permute.xlu0 %3690
        %3693 = vrot.lane.b32.xlu0 %v396, 18
        %v3694 = vpop.permute.xlu0 %3693
        %3696 = vrot.lane.b32.xlu0 %v396, 16
        %v3697 = vpop.permute.xlu0 %3696
        %3699 = vrot.lane.b32.xlu0 %v396, 14
        %v3700 = vpop.permute.xlu0 %3699
        %3702 = vrot.lane.b32.xlu0 %v396, 12
        %v3703 = vpop.permute.xlu0 %3702
        %3705 = vrot.lane.b32.xlu0 %v396, 10
        %v3706 = vpop.permute.xlu0 %3705
        %3708 = vrot.lane.b32.xlu0 %v396, 8
        %v3709 = vpop.permute.xlu0 %3708
        %3711 = vrot.lane.b32.xlu0 %v396, 6
        %v3712 = vpop.permute.xlu0 %3711
        %3714 = vrot.lane.b32.xlu0 %v396, 4
        %v3715 = vpop.permute.xlu0 %3714
        %3717 = vrot.lane.b32.xlu0 %v396, 2
        %v3718 = vpop.permute.xlu0 %3717
        %v3720 = vcombine.low %v394, %v3345
        %v3721 = vcombine.high %v394, %v3345
        %v3723 = vunpack.c.l.s4 1983009808
        %v3724 = vunpack.c.0.s8 %v3723
        %v3725 = vlaneseq
        %v3726 = vshrl.u32 %v3725, 7
        %v3727 = vsub.s32 %v3724, %v3726
        %v3728 = vrot.slane %v3720, %v3727
        %v3730 = vunpack.c.l.s4 1983009808
        %v3731 = vunpack.c.0.s8 %v3730
        %v3732 = vlaneseq
        %v3733 = vshrl.u32 %v3732, 7
        %v3734 = vsub.s32 %v3731, %v3733
        %v3735 = vrot.slane %v3721, %v3734
        %v3736 = vcombine.low %v3342, %v3348
        %v3737 = vcombine.high %v3342, %v3348
        %v3739 = vunpack.c.l.s4 1983009808
        %v3740 = vunpack.c.0.s8 %v3739
        %v3741 = vlaneseq
        %v3742 = vshrl.u32 %v3741, 7
        %v3743 = vsub.s32 %v3740, %v3742
        %v3744 = vrot.slane %v3736, %v3743
        %v3746 = vunpack.c.l.s4 1983009808
        %v3747 = vunpack.c.0.s8 %v3746
        %v3748 = vlaneseq
        %v3749 = vshrl.u32 %v3748, 7
        %v3750 = vsub.s32 %v3747, %v3749
        %v3751 = vrot.slane %v3737, %v3750
        %v3752 = vcombine.low %v3351, %v3357
        %v3753 = vcombine.high %v3351, %v3357
        %v3755 = vunpack.c.l.s4 1983009808
        %v3756 = vunpack.c.0.s8 %v3755
        %v3757 = vlaneseq
        %v3758 = vshrl.u32 %v3757, 7
        %v3759 = vsub.s32 %v3756, %v3758
        %v3760 = vrot.slane %v3752, %v3759
        %v3762 = vunpack.c.l.s4 1983009808
        %v3763 = vunpack.c.0.s8 %v3762
        %v3764 = vlaneseq
        %v3765 = vshrl.u32 %v3764, 7
        %v3766 = vsub.s32 %v3763, %v3765
        %v3767 = vrot.slane %v3753, %v3766
        %v3768 = vcombine.low %v3354, %v3360
        %v3769 = vcombine.high %v3354, %v3360
        %v3771 = vunpack.c.l.s4 1983009808
        %v3772 = vunpack.c.0.s8 %v3771
        %v3773 = vlaneseq
        %v3774 = vshrl.u32 %v3773, 7
        %v3775 = vsub.s32 %v3772, %v3774
        %v3776 = vrot.slane %v3768, %v3775
        %v3778 = vunpack.c.l.s4 1983009808
        %v3779 = vunpack.c.0.s8 %v3778
        %v3780 = vlaneseq
        %v3781 = vshrl.u32 %v3780, 7
        %v3782 = vsub.s32 %v3779, %v3781
        %v3783 = vrot.slane %v3769, %v3782
        %v3784 = vcombine.low %v3728, %v3744
        %v3785 = vcombine.high %v3728, %v3744
        %v3787 = vunpack.c.l.s4 1934713408
        %v3788 = vunpack.c.0.s8 %v3787
        %v3789 = vlaneseq
        %v3790 = vshrl.u32 %v3789, 7
        %v3791 = vsub.s32 %v3788, %v3790
        %v3792 = vrot.slane %v3784, %v3791
        %v3794 = vunpack.c.l.s4 1934713408
        %v3795 = vunpack.c.0.s8 %v3794
        %v3796 = vlaneseq
        %v3797 = vshrl.u32 %v3796, 7
        %v3798 = vsub.s32 %v3795, %v3797
        %v3799 = vrot.slane %v3785, %v3798
        %v3800 = vcombine.low %v3735, %v3751
        %v3801 = vcombine.high %v3735, %v3751
        %v3803 = vunpack.c.l.s4 1934713408
        %v3804 = vunpack.c.0.s8 %v3803
        %v3805 = vlaneseq
        %v3806 = vshrl.u32 %v3805, 7
        %v3807 = vsub.s32 %v3804, %v3806
        %v3808 = vrot.slane %v3800, %v3807
        %v3810 = vunpack.c.l.s4 1934713408
        %v3811 = vunpack.c.0.s8 %v3810
        %v3812 = vlaneseq
        %v3813 = vshrl.u32 %v3812, 7
        %v3814 = vsub.s32 %v3811, %v3813
        %v3815 = vrot.slane %v3801, %v3814
        %v3816 = vcombine.low %v3760, %v3776
        %v3817 = vcombine.high %v3760, %v3776
        %v3819 = vunpack.c.l.s4 1934713408
        %v3820 = vunpack.c.0.s8 %v3819
        %v3821 = vlaneseq
        %v3822 = vshrl.u32 %v3821, 7
        %v3823 = vsub.s32 %v3820, %v3822
        %v3824 = vrot.slane %v3816, %v3823
        %v3826 = vunpack.c.l.s4 1934713408
        %v3827 = vunpack.c.0.s8 %v3826
        %v3828 = vlaneseq
        %v3829 = vshrl.u32 %v3828, 7
        %v3830 = vsub.s32 %v3827, %v3829
        %v3831 = vrot.slane %v3817, %v3830
        %v3832 = vcombine.low %v3767, %v3783
        %v3833 = vcombine.high %v3767, %v3783
        %v3835 = vunpack.c.l.s4 1934713408
        %v3836 = vunpack.c.0.s8 %v3835
        %v3837 = vlaneseq
        %v3838 = vshrl.u32 %v3837, 7
        %v3839 = vsub.s32 %v3836, %v3838
        %v3840 = vrot.slane %v3832, %v3839
        %v3842 = vunpack.c.l.s4 1934713408
        %v3843 = vunpack.c.0.s8 %v3842
        %v3844 = vlaneseq
        %v3845 = vshrl.u32 %v3844, 7
        %v3846 = vsub.s32 %v3843, %v3845
        %v3847 = vrot.slane %v3833, %v3846
        %v3848 = vcombine.low %v3792, %v3824
        %v3849 = vcombine.high %v3792, %v3824
        %v3850 = vcombine.low %v3799, %v3831
        %v3851 = vcombine.high %v3799, %v3831
        %v3852 = vcombine.low %v3808, %v3840
        %v3853 = vcombine.high %v3808, %v3840
        %v3854 = vcombine.low %v3815, %v3847
        %v3855 = vcombine.high %v3815, %v3847
        %v3856 = vcombine.low %v3363, %v3369
        %v3857 = vcombine.high %v3363, %v3369
        %v3859 = vunpack.c.l.s4 1983009808
        %v3860 = vunpack.c.0.s8 %v3859
        %v3861 = vlaneseq
        %v3862 = vshrl.u32 %v3861, 7
        %v3863 = vsub.s32 %v3860, %v3862
        %v3864 = vrot.slane %v3856, %v3863
        %v3866 = vunpack.c.l.s4 1983009808
        %v3867 = vunpack.c.0.s8 %v3866
        %v3868 = vlaneseq
        %v3869 = vshrl.u32 %v3868, 7
        %v3870 = vsub.s32 %v3867, %v3869
        %v3871 = vrot.slane %v3857, %v3870
        %v3872 = vcombine.low %v3366, %v3372
        %v3873 = vcombine.high %v3366, %v3372
        %v3875 = vunpack.c.l.s4 1983009808
        %v3876 = vunpack.c.0.s8 %v3875
        %v3877 = vlaneseq
        %v3878 = vshrl.u32 %v3877, 7
        %v3879 = vsub.s32 %v3876, %v3878
        %v3880 = vrot.slane %v3872, %v3879
        %v3882 = vunpack.c.l.s4 1983009808
        %v3883 = vunpack.c.0.s8 %v3882
        %v3884 = vlaneseq
        %v3885 = vshrl.u32 %v3884, 7
        %v3886 = vsub.s32 %v3883, %v3885
        %v3887 = vrot.slane %v3873, %v3886
        %v3888 = vcombine.low %v3375, %v3381
        %v3889 = vcombine.high %v3375, %v3381
        %v3891 = vunpack.c.l.s4 1983009808
        %v3892 = vunpack.c.0.s8 %v3891
        %v3893 = vlaneseq
        %v3894 = vshrl.u32 %v3893, 7
        %v3895 = vsub.s32 %v3892, %v3894
        %v3896 = vrot.slane %v3888, %v3895
        %v3898 = vunpack.c.l.s4 1983009808
        %v3899 = vunpack.c.0.s8 %v3898
        %v3900 = vlaneseq
        %v3901 = vshrl.u32 %v3900, 7
        %v3902 = vsub.s32 %v3899, %v3901
        %v3903 = vrot.slane %v3889, %v3902
        %v3904 = vcombine.low %v3378, %v3384
        %v3905 = vcombine.high %v3378, %v3384
        %v3907 = vunpack.c.l.s4 1983009808
        %v3908 = vunpack.c.0.s8 %v3907
        %v3909 = vlaneseq
        %v3910 = vshrl.u32 %v3909, 7
        %v3911 = vsub.s32 %v3908, %v3910
        %v3912 = vrot.slane %v3904, %v3911
        %v3914 = vunpack.c.l.s4 1983009808
        %v3915 = vunpack.c.0.s8 %v3914
        %v3916 = vlaneseq
        %v3917 = vshrl.u32 %v3916, 7
        %v3918 = vsub.s32 %v3915, %v3917
        %v3919 = vrot.slane %v3905, %v3918
        %v3920 = vcombine.low %v3864, %v3880
        %v3921 = vcombine.high %v3864, %v3880
        %v3923 = vunpack.c.l.s4 1934713408
        %v3924 = vunpack.c.0.s8 %v3923
        %v3925 = vlaneseq
        %v3926 = vshrl.u32 %v3925, 7
        %v3927 = vsub.s32 %v3924, %v3926
        %v3928 = vrot.slane %v3920, %v3927
        %v3930 = vunpack.c.l.s4 1934713408
        %v3931 = vunpack.c.0.s8 %v3930
        %v3932 = vlaneseq
        %v3933 = vshrl.u32 %v3932, 7
        %v3934 = vsub.s32 %v3931, %v3933
        %v3935 = vrot.slane %v3921, %v3934
        %v3936 = vcombine.low %v3871, %v3887
        %v3937 = vcombine.high %v3871, %v3887
        %v3939 = vunpack.c.l.s4 1934713408
        %v3940 = vunpack.c.0.s8 %v3939
        %v3941 = vlaneseq
        %v3942 = vshrl.u32 %v3941, 7
        %v3943 = vsub.s32 %v3940, %v3942
        %v3944 = vrot.slane %v3936, %v3943
        %v3946 = vunpack.c.l.s4 1934713408
        %v3947 = vunpack.c.0.s8 %v3946
        %v3948 = vlaneseq
        %v3949 = vshrl.u32 %v3948, 7
        %v3950 = vsub.s32 %v3947, %v3949
        %v3951 = vrot.slane %v3937, %v3950
        %v3952 = vcombine.low %v3896, %v3912
        %v3953 = vcombine.high %v3896, %v3912
        %v3955 = vunpack.c.l.s4 1934713408
        %v3956 = vunpack.c.0.s8 %v3955
        %v3957 = vlaneseq
        %v3958 = vshrl.u32 %v3957, 7
        %v3959 = vsub.s32 %v3956, %v3958
        %v3960 = vrot.slane %v3952, %v3959
        %v3962 = vunpack.c.l.s4 1934713408
        %v3963 = vunpack.c.0.s8 %v3962
        %v3964 = vlaneseq
        %v3965 = vshrl.u32 %v3964, 7
        %v3966 = vsub.s32 %v3963, %v3965
        %v3967 = vrot.slane %v3953, %v3966
        %v3968 = vcombine.low %v3903, %v3919
        %v3969 = vcombine.high %v3903, %v3919
        %v3971 = vunpack.c.l.s4 1934713408
        %v3972 = vunpack.c.0.s8 %v3971
        %v3973 = vlaneseq
        %v3974 = vshrl.u32 %v3973, 7
        %v3975 = vsub.s32 %v3972, %v3974
        %v3976 = vrot.slane %v3968, %v3975
        %v3978 = vunpack.c.l.s4 1934713408
        %v3979 = vunpack.c.0.s8 %v3978
        %v3980 = vlaneseq
        %v3981 = vshrl.u32 %v3980, 7
        %v3982 = vsub.s32 %v3979, %v3981
        %v3983 = vrot.slane %v3969, %v3982
        %v3984 = vcombine.low %v3928, %v3960
        %v3985 = vcombine.high %v3928, %v3960
        %v3986 = vcombine.low %v3935, %v3967
        %v3987 = vcombine.high %v3935, %v3967
        %v3988 = vcombine.low %v3944, %v3976
        %v3989 = vcombine.high %v3944, %v3976
        %v3990 = vcombine.low %v3951, %v3983
        %v3991 = vcombine.high %v3951, %v3983
        %v3992 = vcombine.low %v3387, %v3393
        %v3993 = vcombine.high %v3387, %v3393
        %v3995 = vunpack.c.l.s4 1983009808
        %v3996 = vunpack.c.0.s8 %v3995
        %v3997 = vlaneseq
        %v3998 = vshrl.u32 %v3997, 7
        %v3999 = vsub.s32 %v3996, %v3998
        %v4000 = vrot.slane %v3992, %v3999
        %v4002 = vunpack.c.l.s4 1983009808
        %v4003 = vunpack.c.0.s8 %v4002
        %v4004 = vlaneseq
        %v4005 = vshrl.u32 %v4004, 7
        %v4006 = vsub.s32 %v4003, %v4005
        %v4007 = vrot.slane %v3993, %v4006
        %v4008 = vcombine.low %v3390, %v3396
        %v4009 = vcombine.high %v3390, %v3396
        %v4011 = vunpack.c.l.s4 1983009808
        %v4012 = vunpack.c.0.s8 %v4011
        %v4013 = vlaneseq
        %v4014 = vshrl.u32 %v4013, 7
        %v4015 = vsub.s32 %v4012, %v4014
        %v4016 = vrot.slane %v4008, %v4015
        %v4018 = vunpack.c.l.s4 1983009808
        %v4019 = vunpack.c.0.s8 %v4018
        %v4020 = vlaneseq
        %v4021 = vshrl.u32 %v4020, 7
        %v4022 = vsub.s32 %v4019, %v4021
        %v4023 = vrot.slane %v4009, %v4022
        %v4024 = vcombine.low %v3399, %v3405
        %v4025 = vcombine.high %v3399, %v3405
        %v4027 = vunpack.c.l.s4 1983009808
        %v4028 = vunpack.c.0.s8 %v4027
        %v4029 = vlaneseq
        %v4030 = vshrl.u32 %v4029, 7
        %v4031 = vsub.s32 %v4028, %v4030
        %v4032 = vrot.slane %v4024, %v4031
        %v4034 = vunpack.c.l.s4 1983009808
        %v4035 = vunpack.c.0.s8 %v4034
        %v4036 = vlaneseq
        %v4037 = vshrl.u32 %v4036, 7
        %v4038 = vsub.s32 %v4035, %v4037
        %v4039 = vrot.slane %v4025, %v4038
        %v4040 = vcombine.low %v3402, %v3408
        %v4041 = vcombine.high %v3402, %v3408
        %v4043 = vunpack.c.l.s4 1983009808
        %v4044 = vunpack.c.0.s8 %v4043
        %v4045 = vlaneseq
        %v4046 = vshrl.u32 %v4045, 7
        %v4047 = vsub.s32 %v4044, %v4046
        %v4048 = vrot.slane %v4040, %v4047
        %v4050 = vunpack.c.l.s4 1983009808
        %v4051 = vunpack.c.0.s8 %v4050
        %v4052 = vlaneseq
        %v4053 = vshrl.u32 %v4052, 7
        %v4054 = vsub.s32 %v4051, %v4053
        %v4055 = vrot.slane %v4041, %v4054
        %v4056 = vcombine.low %v4000, %v4016
        %v4057 = vcombine.high %v4000, %v4016
        %v4059 = vunpack.c.l.s4 1934713408
        %v4060 = vunpack.c.0.s8 %v4059
        %v4061 = vlaneseq
        %v4062 = vshrl.u32 %v4061, 7
        %v4063 = vsub.s32 %v4060, %v4062
        %v4064 = vrot.slane %v4056, %v4063
        %v4066 = vunpack.c.l.s4 1934713408
        %v4067 = vunpack.c.0.s8 %v4066
        %v4068 = vlaneseq
        %v4069 = vshrl.u32 %v4068, 7
        %v4070 = vsub.s32 %v4067, %v4069
        %v4071 = vrot.slane %v4057, %v4070
        %v4072 = vcombine.low %v4007, %v4023
        %v4073 = vcombine.high %v4007, %v4023
        %v4075 = vunpack.c.l.s4 1934713408
        %v4076 = vunpack.c.0.s8 %v4075
        %v4077 = vlaneseq
        %v4078 = vshrl.u32 %v4077, 7
        %v4079 = vsub.s32 %v4076, %v4078
        %v4080 = vrot.slane %v4072, %v4079
        %v4082 = vunpack.c.l.s4 1934713408
        %v4083 = vunpack.c.0.s8 %v4082
        %v4084 = vlaneseq
        %v4085 = vshrl.u32 %v4084, 7
        %v4086 = vsub.s32 %v4083, %v4085
        %v4087 = vrot.slane %v4073, %v4086
        %v4088 = vcombine.low %v4032, %v4048
        %v4089 = vcombine.high %v4032, %v4048
        %v4091 = vunpack.c.l.s4 1934713408
        %v4092 = vunpack.c.0.s8 %v4091
        %v4093 = vlaneseq
        %v4094 = vshrl.u32 %v4093, 7
        %v4095 = vsub.s32 %v4092, %v4094
        %v4096 = vrot.slane %v4088, %v4095
        %v4098 = vunpack.c.l.s4 1934713408
        %v4099 = vunpack.c.0.s8 %v4098
        %v4100 = vlaneseq
        %v4101 = vshrl.u32 %v4100, 7
        %v4102 = vsub.s32 %v4099, %v4101
        %v4103 = vrot.slane %v4089, %v4102
        %v4104 = vcombine.low %v4039, %v4055
        %v4105 = vcombine.high %v4039, %v4055
        %v4107 = vunpack.c.l.s4 1934713408
        %v4108 = vunpack.c.0.s8 %v4107
        %v4109 = vlaneseq
        %v4110 = vshrl.u32 %v4109, 7
        %v4111 = vsub.s32 %v4108, %v4110
        %v4112 = vrot.slane %v4104, %v4111
        %v4114 = vunpack.c.l.s4 1934713408
        %v4115 = vunpack.c.0.s8 %v4114
        %v4116 = vlaneseq
        %v4117 = vshrl.u32 %v4116, 7
        %v4118 = vsub.s32 %v4115, %v4117
        %v4119 = vrot.slane %v4105, %v4118
        %v4120 = vcombine.low %v4064, %v4096
        %v4121 = vcombine.high %v4064, %v4096
        %v4122 = vcombine.low %v4071, %v4103
        %v4123 = vcombine.high %v4071, %v4103
        %v4124 = vcombine.low %v4080, %v4112
        %v4125 = vcombine.high %v4080, %v4112
        %v4126 = vcombine.low %v4087, %v4119
        %v4127 = vcombine.high %v4087, %v4119
        %v4128 = vcombine.low %v3411, %v3417
        %v4129 = vcombine.high %v3411, %v3417
        %v4131 = vunpack.c.l.s4 1983009808
        %v4132 = vunpack.c.0.s8 %v4131
        %v4133 = vlaneseq
        %v4134 = vshrl.u32 %v4133, 7
        %v4135 = vsub.s32 %v4132, %v4134
        %v4136 = vrot.slane %v4128, %v4135
        %v4138 = vunpack.c.l.s4 1983009808
        %v4139 = vunpack.c.0.s8 %v4138
        %v4140 = vlaneseq
        %v4141 = vshrl.u32 %v4140, 7
        %v4142 = vsub.s32 %v4139, %v4141
        %v4143 = vrot.slane %v4129, %v4142
        %v4144 = vcombine.low %v3414, %v3420
        %v4145 = vcombine.high %v3414, %v3420
        %v4147 = vunpack.c.l.s4 1983009808
        %v4148 = vunpack.c.0.s8 %v4147
        %v4149 = vlaneseq
        %v4150 = vshrl.u32 %v4149, 7
        %v4151 = vsub.s32 %v4148, %v4150
        %v4152 = vrot.slane %v4144, %v4151
        %v4154 = vunpack.c.l.s4 1983009808
        %v4155 = vunpack.c.0.s8 %v4154
        %v4156 = vlaneseq
        %v4157 = vshrl.u32 %v4156, 7
        %v4158 = vsub.s32 %v4155, %v4157
        %v4159 = vrot.slane %v4145, %v4158
        %v4160 = vcombine.low %v3423, %v3429
        %v4161 = vcombine.high %v3423, %v3429
        %v4163 = vunpack.c.l.s4 1983009808
        %v4164 = vunpack.c.0.s8 %v4163
        %v4165 = vlaneseq
        %v4166 = vshrl.u32 %v4165, 7
        %v4167 = vsub.s32 %v4164, %v4166
        %v4168 = vrot.slane %v4160, %v4167
        %v4170 = vunpack.c.l.s4 1983009808
        %v4171 = vunpack.c.0.s8 %v4170
        %v4172 = vlaneseq
        %v4173 = vshrl.u32 %v4172, 7
        %v4174 = vsub.s32 %v4171, %v4173
        %v4175 = vrot.slane %v4161, %v4174
        %v4176 = vcombine.low %v3426, %v3432
        %v4177 = vcombine.high %v3426, %v3432
        %v4179 = vunpack.c.l.s4 1983009808
        %v4180 = vunpack.c.0.s8 %v4179
        %v4181 = vlaneseq
        %v4182 = vshrl.u32 %v4181, 7
        %v4183 = vsub.s32 %v4180, %v4182
        %v4184 = vrot.slane %v4176, %v4183
        %v4186 = vunpack.c.l.s4 1983009808
        %v4187 = vunpack.c.0.s8 %v4186
        %v4188 = vlaneseq
        %v4189 = vshrl.u32 %v4188, 7
        %v4190 = vsub.s32 %v4187, %v4189
        %v4191 = vrot.slane %v4177, %v4190
        %v4192 = vcombine.low %v4136, %v4152
        %v4193 = vcombine.high %v4136, %v4152
        %v4195 = vunpack.c.l.s4 1934713408
        %v4196 = vunpack.c.0.s8 %v4195
        %v4197 = vlaneseq
        %v4198 = vshrl.u32 %v4197, 7
        %v4199 = vsub.s32 %v4196, %v4198
        %v4200 = vrot.slane %v4192, %v4199
        %v4202 = vunpack.c.l.s4 1934713408
        %v4203 = vunpack.c.0.s8 %v4202
        %v4204 = vlaneseq
        %v4205 = vshrl.u32 %v4204, 7
        %v4206 = vsub.s32 %v4203, %v4205
        %v4207 = vrot.slane %v4193, %v4206
        %v4208 = vcombine.low %v4143, %v4159
        %v4209 = vcombine.high %v4143, %v4159
        %v4211 = vunpack.c.l.s4 1934713408
        %v4212 = vunpack.c.0.s8 %v4211
        %v4213 = vlaneseq
        %v4214 = vshrl.u32 %v4213, 7
        %v4215 = vsub.s32 %v4212, %v4214
        %v4216 = vrot.slane %v4208, %v4215
        %v4218 = vunpack.c.l.s4 1934713408
        %v4219 = vunpack.c.0.s8 %v4218
        %v4220 = vlaneseq
        %v4221 = vshrl.u32 %v4220, 7
        %v4222 = vsub.s32 %v4219, %v4221
        %v4223 = vrot.slane %v4209, %v4222
        %v4224 = vcombine.low %v4168, %v4184
        %v4225 = vcombine.high %v4168, %v4184
        %v4227 = vunpack.c.l.s4 1934713408
        %v4228 = vunpack.c.0.s8 %v4227
        %v4229 = vlaneseq
        %v4230 = vshrl.u32 %v4229, 7
        %v4231 = vsub.s32 %v4228, %v4230
        %v4232 = vrot.slane %v4224, %v4231
        %v4234 = vunpack.c.l.s4 1934713408
        %v4235 = vunpack.c.0.s8 %v4234
        %v4236 = vlaneseq
        %v4237 = vshrl.u32 %v4236, 7
        %v4238 = vsub.s32 %v4235, %v4237
        %v4239 = vrot.slane %v4225, %v4238
        %v4240 = vcombine.low %v4175, %v4191
        %v4241 = vcombine.high %v4175, %v4191
        %v4243 = vunpack.c.l.s4 1934713408
        %v4244 = vunpack.c.0.s8 %v4243
        %v4245 = vlaneseq
        %v4246 = vshrl.u32 %v4245, 7
        %v4247 = vsub.s32 %v4244, %v4246
        %v4248 = vrot.slane %v4240, %v4247
        %v4250 = vunpack.c.l.s4 1934713408
        %v4251 = vunpack.c.0.s8 %v4250
        %v4252 = vlaneseq
        %v4253 = vshrl.u32 %v4252, 7
        %v4254 = vsub.s32 %v4251, %v4253
        %v4255 = vrot.slane %v4241, %v4254
        %v4256 = vcombine.low %v4200, %v4232
        %v4257 = vcombine.high %v4200, %v4232
        %v4258 = vcombine.low %v4207, %v4239
        %v4259 = vcombine.high %v4207, %v4239
        %v4260 = vcombine.low %v4216, %v4248
        %v4261 = vcombine.high %v4216, %v4248
        %v4262 = vcombine.low %v4223, %v4255
        %v4263 = vcombine.high %v4223, %v4255
        %v4264 = vcombine.low %v3435, %v3441
        %v4265 = vcombine.high %v3435, %v3441
        %v4267 = vunpack.c.l.s4 1983009808
        %v4268 = vunpack.c.0.s8 %v4267
        %v4269 = vlaneseq
        %v4270 = vshrl.u32 %v4269, 7
        %v4271 = vsub.s32 %v4268, %v4270
        %v4272 = vrot.slane %v4264, %v4271
        %v4274 = vunpack.c.l.s4 1983009808
        %v4275 = vunpack.c.0.s8 %v4274
        %v4276 = vlaneseq
        %v4277 = vshrl.u32 %v4276, 7
        %v4278 = vsub.s32 %v4275, %v4277
        %v4279 = vrot.slane %v4265, %v4278
        %v4280 = vcombine.low %v3438, %v3444
        %v4281 = vcombine.high %v3438, %v3444
        %v4283 = vunpack.c.l.s4 1983009808
        %v4284 = vunpack.c.0.s8 %v4283
        %v4285 = vlaneseq
        %v4286 = vshrl.u32 %v4285, 7
        %v4287 = vsub.s32 %v4284, %v4286
        %v4288 = vrot.slane %v4280, %v4287
        %v4290 = vunpack.c.l.s4 1983009808
        %v4291 = vunpack.c.0.s8 %v4290
        %v4292 = vlaneseq
        %v4293 = vshrl.u32 %v4292, 7
        %v4294 = vsub.s32 %v4291, %v4293
        %v4295 = vrot.slane %v4281, %v4294
        %v4296 = vcombine.low %v3447, %v3453
        %v4297 = vcombine.high %v3447, %v3453
        %v4299 = vunpack.c.l.s4 1983009808
        %v4300 = vunpack.c.0.s8 %v4299
        %v4301 = vlaneseq
        %v4302 = vshrl.u32 %v4301, 7
        %v4303 = vsub.s32 %v4300, %v4302
        %v4304 = vrot.slane %v4296, %v4303
        %v4306 = vunpack.c.l.s4 1983009808
        %v4307 = vunpack.c.0.s8 %v4306
        %v4308 = vlaneseq
        %v4309 = vshrl.u32 %v4308, 7
        %v4310 = vsub.s32 %v4307, %v4309
        %v4311 = vrot.slane %v4297, %v4310
        %v4312 = vcombine.low %v3450, %v3456
        %v4313 = vcombine.high %v3450, %v3456
        %v4315 = vunpack.c.l.s4 1983009808
        %v4316 = vunpack.c.0.s8 %v4315
        %v4317 = vlaneseq
        %v4318 = vshrl.u32 %v4317, 7
        %v4319 = vsub.s32 %v4316, %v4318
        %v4320 = vrot.slane %v4312, %v4319
        %v4322 = vunpack.c.l.s4 1983009808
        %v4323 = vunpack.c.0.s8 %v4322
        %v4324 = vlaneseq
        %v4325 = vshrl.u32 %v4324, 7
        %v4326 = vsub.s32 %v4323, %v4325
        %v4327 = vrot.slane %v4313, %v4326
        %v4328 = vcombine.low %v4272, %v4288
        %v4329 = vcombine.high %v4272, %v4288
        %v4331 = vunpack.c.l.s4 1934713408
        %v4332 = vunpack.c.0.s8 %v4331
        %v4333 = vlaneseq
        %v4334 = vshrl.u32 %v4333, 7
        %v4335 = vsub.s32 %v4332, %v4334
        %v4336 = vrot.slane %v4328, %v4335
        %v4338 = vunpack.c.l.s4 1934713408
        %v4339 = vunpack.c.0.s8 %v4338
        %v4340 = vlaneseq
        %v4341 = vshrl.u32 %v4340, 7
        %v4342 = vsub.s32 %v4339, %v4341
        %v4343 = vrot.slane %v4329, %v4342
        %v4344 = vcombine.low %v4279, %v4295
        %v4345 = vcombine.high %v4279, %v4295
        %v4347 = vunpack.c.l.s4 1934713408
        %v4348 = vunpack.c.0.s8 %v4347
        %v4349 = vlaneseq
        %v4350 = vshrl.u32 %v4349, 7
        %v4351 = vsub.s32 %v4348, %v4350
        %v4352 = vrot.slane %v4344, %v4351
        %v4354 = vunpack.c.l.s4 1934713408
        %v4355 = vunpack.c.0.s8 %v4354
        %v4356 = vlaneseq
        %v4357 = vshrl.u32 %v4356, 7
        %v4358 = vsub.s32 %v4355, %v4357
        %v4359 = vrot.slane %v4345, %v4358
        %v4360 = vcombine.low %v4304, %v4320
        %v4361 = vcombine.high %v4304, %v4320
        %v4363 = vunpack.c.l.s4 1934713408
        %v4364 = vunpack.c.0.s8 %v4363
        %v4365 = vlaneseq
        %v4366 = vshrl.u32 %v4365, 7
        %v4367 = vsub.s32 %v4364, %v4366
        %v4368 = vrot.slane %v4360, %v4367
        %v4370 = vunpack.c.l.s4 1934713408
        %v4371 = vunpack.c.0.s8 %v4370
        %v4372 = vlaneseq
        %v4373 = vshrl.u32 %v4372, 7
        %v4374 = vsub.s32 %v4371, %v4373
        %v4375 = vrot.slane %v4361, %v4374
        %v4376 = vcombine.low %v4311, %v4327
        %v4377 = vcombine.high %v4311, %v4327
        %v4379 = vunpack.c.l.s4 1934713408
        %v4380 = vunpack.c.0.s8 %v4379
        %v4381 = vlaneseq
        %v4382 = vshrl.u32 %v4381, 7
        %v4383 = vsub.s32 %v4380, %v4382
        %v4384 = vrot.slane %v4376, %v4383
        %v4386 = vunpack.c.l.s4 1934713408
        %v4387 = vunpack.c.0.s8 %v4386
        %v4388 = vlaneseq
        %v4389 = vshrl.u32 %v4388, 7
        %v4390 = vsub.s32 %v4387, %v4389
        %v4391 = vrot.slane %v4377, %v4390
        %v4392 = vcombine.low %v4336, %v4368
        %v4393 = vcombine.high %v4336, %v4368
        %v4394 = vcombine.low %v4343, %v4375
        %v4395 = vcombine.high %v4343, %v4375
        %v4396 = vcombine.low %v4352, %v4384
        %v4397 = vcombine.high %v4352, %v4384
        %v4398 = vcombine.low %v4359, %v4391
        %v4399 = vcombine.high %v4359, %v4391
        %v4400 = vcombine.low %v3459, %v3465
        %v4401 = vcombine.high %v3459, %v3465
        %v4403 = vunpack.c.l.s4 1983009808
        %v4404 = vunpack.c.0.s8 %v4403
        %v4405 = vlaneseq
        %v4406 = vshrl.u32 %v4405, 7
        %v4407 = vsub.s32 %v4404, %v4406
        %v4408 = vrot.slane %v4400, %v4407
        %v4410 = vunpack.c.l.s4 1983009808
        %v4411 = vunpack.c.0.s8 %v4410
        %v4412 = vlaneseq
        %v4413 = vshrl.u32 %v4412, 7
        %v4414 = vsub.s32 %v4411, %v4413
        %v4415 = vrot.slane %v4401, %v4414
        %v4416 = vcombine.low %v3462, %v3468
        %v4417 = vcombine.high %v3462, %v3468
        %v4419 = vunpack.c.l.s4 1983009808
        %v4420 = vunpack.c.0.s8 %v4419
        %v4421 = vlaneseq
        %v4422 = vshrl.u32 %v4421, 7
        %v4423 = vsub.s32 %v4420, %v4422
        %v4424 = vrot.slane %v4416, %v4423
        %v4426 = vunpack.c.l.s4 1983009808
        %v4427 = vunpack.c.0.s8 %v4426
        %v4428 = vlaneseq
        %v4429 = vshrl.u32 %v4428, 7
        %v4430 = vsub.s32 %v4427, %v4429
        %v4431 = vrot.slane %v4417, %v4430
        %v4432 = vcombine.low %v3471, %v3477
        %v4433 = vcombine.high %v3471, %v3477
        %v4435 = vunpack.c.l.s4 1983009808
        %v4436 = vunpack.c.0.s8 %v4435
        %v4437 = vlaneseq
        %v4438 = vshrl.u32 %v4437, 7
        %v4439 = vsub.s32 %v4436, %v4438
        %v4440 = vrot.slane %v4432, %v4439
        %v4442 = vunpack.c.l.s4 1983009808
        %v4443 = vunpack.c.0.s8 %v4442
        %v4444 = vlaneseq
        %v4445 = vshrl.u32 %v4444, 7
        %v4446 = vsub.s32 %v4443, %v4445
        %v4447 = vrot.slane %v4433, %v4446
        %v4448 = vcombine.low %v3474, %v3480
        %v4449 = vcombine.high %v3474, %v3480
        %v4451 = vunpack.c.l.s4 1983009808
        %v4452 = vunpack.c.0.s8 %v4451
        %v4453 = vlaneseq
        %v4454 = vshrl.u32 %v4453, 7
        %v4455 = vsub.s32 %v4452, %v4454
        %v4456 = vrot.slane %v4448, %v4455
        %v4458 = vunpack.c.l.s4 1983009808
        %v4459 = vunpack.c.0.s8 %v4458
        %v4460 = vlaneseq
        %v4461 = vshrl.u32 %v4460, 7
        %v4462 = vsub.s32 %v4459, %v4461
        %v4463 = vrot.slane %v4449, %v4462
        %v4464 = vcombine.low %v4408, %v4424
        %v4465 = vcombine.high %v4408, %v4424
        %v4467 = vunpack.c.l.s4 1934713408
        %v4468 = vunpack.c.0.s8 %v4467
        %v4469 = vlaneseq
        %v4470 = vshrl.u32 %v4469, 7
        %v4471 = vsub.s32 %v4468, %v4470
        %v4472 = vrot.slane %v4464, %v4471
        %v4474 = vunpack.c.l.s4 1934713408
        %v4475 = vunpack.c.0.s8 %v4474
        %v4476 = vlaneseq
        %v4477 = vshrl.u32 %v4476, 7
        %v4478 = vsub.s32 %v4475, %v4477
        %v4479 = vrot.slane %v4465, %v4478
        %v4480 = vcombine.low %v4415, %v4431
        %v4481 = vcombine.high %v4415, %v4431
        %v4483 = vunpack.c.l.s4 1934713408
        %v4484 = vunpack.c.0.s8 %v4483
        %v4485 = vlaneseq
        %v4486 = vshrl.u32 %v4485, 7
        %v4487 = vsub.s32 %v4484, %v4486
        %v4488 = vrot.slane %v4480, %v4487
        %v4490 = vunpack.c.l.s4 1934713408
        %v4491 = vunpack.c.0.s8 %v4490
        %v4492 = vlaneseq
        %v4493 = vshrl.u32 %v4492, 7
        %v4494 = vsub.s32 %v4491, %v4493
        %v4495 = vrot.slane %v4481, %v4494
        %v4496 = vcombine.low %v4440, %v4456
        %v4497 = vcombine.high %v4440, %v4456
        %v4499 = vunpack.c.l.s4 1934713408
        %v4500 = vunpack.c.0.s8 %v4499
        %v4501 = vlaneseq
        %v4502 = vshrl.u32 %v4501, 7
        %v4503 = vsub.s32 %v4500, %v4502
        %v4504 = vrot.slane %v4496, %v4503
        %v4506 = vunpack.c.l.s4 1934713408
        %v4507 = vunpack.c.0.s8 %v4506
        %v4508 = vlaneseq
        %v4509 = vshrl.u32 %v4508, 7
        %v4510 = vsub.s32 %v4507, %v4509
        %v4511 = vrot.slane %v4497, %v4510
        %v4512 = vcombine.low %v4447, %v4463
        %v4513 = vcombine.high %v4447, %v4463
        %v4515 = vunpack.c.l.s4 1934713408
        %v4516 = vunpack.c.0.s8 %v4515
        %v4517 = vlaneseq
        %v4518 = vshrl.u32 %v4517, 7
        %v4519 = vsub.s32 %v4516, %v4518
        %v4520 = vrot.slane %v4512, %v4519
        %v4522 = vunpack.c.l.s4 1934713408
        %v4523 = vunpack.c.0.s8 %v4522
        %v4524 = vlaneseq
        %v4525 = vshrl.u32 %v4524, 7
        %v4526 = vsub.s32 %v4523, %v4525
        %v4527 = vrot.slane %v4513, %v4526
        %v4528 = vcombine.low %v4472, %v4504
        %v4529 = vcombine.high %v4472, %v4504
        %v4530 = vcombine.low %v4479, %v4511
        %v4531 = vcombine.high %v4479, %v4511
        %v4532 = vcombine.low %v4488, %v4520
        %v4533 = vcombine.high %v4488, %v4520
        %v4534 = vcombine.low %v4495, %v4527
        %v4535 = vcombine.high %v4495, %v4527
        %v4536 = vcombine.low %v3483, %v3489
        %v4537 = vcombine.high %v3483, %v3489
        %v4539 = vunpack.c.l.s4 1983009808
        %v4540 = vunpack.c.0.s8 %v4539
        %v4541 = vlaneseq
        %v4542 = vshrl.u32 %v4541, 7
        %v4543 = vsub.s32 %v4540, %v4542
        %v4544 = vrot.slane %v4536, %v4543
        %v4546 = vunpack.c.l.s4 1983009808
        %v4547 = vunpack.c.0.s8 %v4546
        %v4548 = vlaneseq
        %v4549 = vshrl.u32 %v4548, 7
        %v4550 = vsub.s32 %v4547, %v4549
        %v4551 = vrot.slane %v4537, %v4550
        %v4552 = vcombine.low %v3486, %v3492
        %v4553 = vcombine.high %v3486, %v3492
        %v4555 = vunpack.c.l.s4 1983009808
        %v4556 = vunpack.c.0.s8 %v4555
        %v4557 = vlaneseq
        %v4558 = vshrl.u32 %v4557, 7
        %v4559 = vsub.s32 %v4556, %v4558
        %v4560 = vrot.slane %v4552, %v4559
        %v4562 = vunpack.c.l.s4 1983009808
        %v4563 = vunpack.c.0.s8 %v4562
        %v4564 = vlaneseq
        %v4565 = vshrl.u32 %v4564, 7
        %v4566 = vsub.s32 %v4563, %v4565
        %v4567 = vrot.slane %v4553, %v4566
        %v4568 = vcombine.low %v3495, %v3501
        %v4569 = vcombine.high %v3495, %v3501
        %v4571 = vunpack.c.l.s4 1983009808
        %v4572 = vunpack.c.0.s8 %v4571
        %v4573 = vlaneseq
        %v4574 = vshrl.u32 %v4573, 7
        %v4575 = vsub.s32 %v4572, %v4574
        %v4576 = vrot.slane %v4568, %v4575
        %v4578 = vunpack.c.l.s4 1983009808
        %v4579 = vunpack.c.0.s8 %v4578
        %v4580 = vlaneseq
        %v4581 = vshrl.u32 %v4580, 7
        %v4582 = vsub.s32 %v4579, %v4581
        %v4583 = vrot.slane %v4569, %v4582
        %v4584 = vcombine.low %v3498, %v3504
        %v4585 = vcombine.high %v3498, %v3504
        %v4587 = vunpack.c.l.s4 1983009808
        %v4588 = vunpack.c.0.s8 %v4587
        %v4589 = vlaneseq
        %v4590 = vshrl.u32 %v4589, 7
        %v4591 = vsub.s32 %v4588, %v4590
        %v4592 = vrot.slane %v4584, %v4591
        %v4594 = vunpack.c.l.s4 1983009808
        %v4595 = vunpack.c.0.s8 %v4594
        %v4596 = vlaneseq
        %v4597 = vshrl.u32 %v4596, 7
        %v4598 = vsub.s32 %v4595, %v4597
        %v4599 = vrot.slane %v4585, %v4598
        %v4600 = vcombine.low %v4544, %v4560
        %v4601 = vcombine.high %v4544, %v4560
        %v4603 = vunpack.c.l.s4 1934713408
        %v4604 = vunpack.c.0.s8 %v4603
        %v4605 = vlaneseq
        %v4606 = vshrl.u32 %v4605, 7
        %v4607 = vsub.s32 %v4604, %v4606
        %v4608 = vrot.slane %v4600, %v4607
        %v4610 = vunpack.c.l.s4 1934713408
        %v4611 = vunpack.c.0.s8 %v4610
        %v4612 = vlaneseq
        %v4613 = vshrl.u32 %v4612, 7
        %v4614 = vsub.s32 %v4611, %v4613
        %v4615 = vrot.slane %v4601, %v4614
        %v4616 = vcombine.low %v4551, %v4567
        %v4617 = vcombine.high %v4551, %v4567
        %v4619 = vunpack.c.l.s4 1934713408
        %v4620 = vunpack.c.0.s8 %v4619
        %v4621 = vlaneseq
        %v4622 = vshrl.u32 %v4621, 7
        %v4623 = vsub.s32 %v4620, %v4622
        %v4624 = vrot.slane %v4616, %v4623
        %v4626 = vunpack.c.l.s4 1934713408
        %v4627 = vunpack.c.0.s8 %v4626
        %v4628 = vlaneseq
        %v4629 = vshrl.u32 %v4628, 7
        %v4630 = vsub.s32 %v4627, %v4629
        %v4631 = vrot.slane %v4617, %v4630
        %v4632 = vcombine.low %v4576, %v4592
        %v4633 = vcombine.high %v4576, %v4592
        %v4635 = vunpack.c.l.s4 1934713408
        %v4636 = vunpack.c.0.s8 %v4635
        %v4637 = vlaneseq
        %v4638 = vshrl.u32 %v4637, 7
        %v4639 = vsub.s32 %v4636, %v4638
        %v4640 = vrot.slane %v4632, %v4639
        %v4642 = vunpack.c.l.s4 1934713408
        %v4643 = vunpack.c.0.s8 %v4642
        %v4644 = vlaneseq
        %v4645 = vshrl.u32 %v4644, 7
        %v4646 = vsub.s32 %v4643, %v4645
        %v4647 = vrot.slane %v4633, %v4646
        %v4648 = vcombine.low %v4583, %v4599
        %v4649 = vcombine.high %v4583, %v4599
        %v4651 = vunpack.c.l.s4 1934713408
        %v4652 = vunpack.c.0.s8 %v4651
        %v4653 = vlaneseq
        %v4654 = vshrl.u32 %v4653, 7
        %v4655 = vsub.s32 %v4652, %v4654
        %v4656 = vrot.slane %v4648, %v4655
        %v4658 = vunpack.c.l.s4 1934713408
        %v4659 = vunpack.c.0.s8 %v4658
        %v4660 = vlaneseq
        %v4661 = vshrl.u32 %v4660, 7
        %v4662 = vsub.s32 %v4659, %v4661
        %v4663 = vrot.slane %v4649, %v4662
        %v4664 = vcombine.low %v4608, %v4640
        %v4665 = vcombine.high %v4608, %v4640
        %v4666 = vcombine.low %v4615, %v4647
        %v4667 = vcombine.high %v4615, %v4647
        %v4668 = vcombine.low %v4624, %v4656
        %v4669 = vcombine.high %v4624, %v4656
        %v4670 = vcombine.low %v4631, %v4663
        %v4671 = vcombine.high %v4631, %v4663
        %v4672 = vcombine.low %v3507, %v3513
        %v4673 = vcombine.high %v3507, %v3513
        %v4675 = vunpack.c.l.s4 1983009808
        %v4676 = vunpack.c.0.s8 %v4675
        %v4677 = vlaneseq
        %v4678 = vshrl.u32 %v4677, 7
        %v4679 = vsub.s32 %v4676, %v4678
        %v4680 = vrot.slane %v4672, %v4679
        %v4682 = vunpack.c.l.s4 1983009808
        %v4683 = vunpack.c.0.s8 %v4682
        %v4684 = vlaneseq
        %v4685 = vshrl.u32 %v4684, 7
        %v4686 = vsub.s32 %v4683, %v4685
        %v4687 = vrot.slane %v4673, %v4686
        %v4688 = vcombine.low %v3510, %v3516
        %v4689 = vcombine.high %v3510, %v3516
        %v4691 = vunpack.c.l.s4 1983009808
        %v4692 = vunpack.c.0.s8 %v4691
        %v4693 = vlaneseq
        %v4694 = vshrl.u32 %v4693, 7
        %v4695 = vsub.s32 %v4692, %v4694
        %v4696 = vrot.slane %v4688, %v4695
        %v4698 = vunpack.c.l.s4 1983009808
        %v4699 = vunpack.c.0.s8 %v4698
        %v4700 = vlaneseq
        %v4701 = vshrl.u32 %v4700, 7
        %v4702 = vsub.s32 %v4699, %v4701
        %v4703 = vrot.slane %v4689, %v4702
        %v4704 = vcombine.low %v3519, %v3525
        %v4705 = vcombine.high %v3519, %v3525
        %v4707 = vunpack.c.l.s4 1983009808
        %v4708 = vunpack.c.0.s8 %v4707
        %v4709 = vlaneseq
        %v4710 = vshrl.u32 %v4709, 7
        %v4711 = vsub.s32 %v4708, %v4710
        %v4712 = vrot.slane %v4704, %v4711
        %v4714 = vunpack.c.l.s4 1983009808
        %v4715 = vunpack.c.0.s8 %v4714
        %v4716 = vlaneseq
        %v4717 = vshrl.u32 %v4716, 7
        %v4718 = vsub.s32 %v4715, %v4717
        %v4719 = vrot.slane %v4705, %v4718
        %v4720 = vcombine.low %v3522, %v3528
        %v4721 = vcombine.high %v3522, %v3528
        %v4723 = vunpack.c.l.s4 1983009808
        %v4724 = vunpack.c.0.s8 %v4723
        %v4725 = vlaneseq
        %v4726 = vshrl.u32 %v4725, 7
        %v4727 = vsub.s32 %v4724, %v4726
        %v4728 = vrot.slane %v4720, %v4727
        %v4730 = vunpack.c.l.s4 1983009808
        %v4731 = vunpack.c.0.s8 %v4730
        %v4732 = vlaneseq
        %v4733 = vshrl.u32 %v4732, 7
        %v4734 = vsub.s32 %v4731, %v4733
        %v4735 = vrot.slane %v4721, %v4734
        %v4736 = vcombine.low %v4680, %v4696
        %v4737 = vcombine.high %v4680, %v4696
        %v4739 = vunpack.c.l.s4 1934713408
        %v4740 = vunpack.c.0.s8 %v4739
        %v4741 = vlaneseq
        %v4742 = vshrl.u32 %v4741, 7
        %v4743 = vsub.s32 %v4740, %v4742
        %v4744 = vrot.slane %v4736, %v4743
        %v4746 = vunpack.c.l.s4 1934713408
        %v4747 = vunpack.c.0.s8 %v4746
        %v4748 = vlaneseq
        %v4749 = vshrl.u32 %v4748, 7
        %v4750 = vsub.s32 %v4747, %v4749
        %v4751 = vrot.slane %v4737, %v4750
        %v4752 = vcombine.low %v4687, %v4703
        %v4753 = vcombine.high %v4687, %v4703
        %v4755 = vunpack.c.l.s4 1934713408
        %v4756 = vunpack.c.0.s8 %v4755
        %v4757 = vlaneseq
        %v4758 = vshrl.u32 %v4757, 7
        %v4759 = vsub.s32 %v4756, %v4758
        %v4760 = vrot.slane %v4752, %v4759
        %v4762 = vunpack.c.l.s4 1934713408
        %v4763 = vunpack.c.0.s8 %v4762
        %v4764 = vlaneseq
        %v4765 = vshrl.u32 %v4764, 7
        %v4766 = vsub.s32 %v4763, %v4765
        %v4767 = vrot.slane %v4753, %v4766
        %v4768 = vcombine.low %v4712, %v4728
        %v4769 = vcombine.high %v4712, %v4728
        %v4771 = vunpack.c.l.s4 1934713408
        %v4772 = vunpack.c.0.s8 %v4771
        %v4773 = vlaneseq
        %v4774 = vshrl.u32 %v4773, 7
        %v4775 = vsub.s32 %v4772, %v4774
        %v4776 = vrot.slane %v4768, %v4775
        %v4778 = vunpack.c.l.s4 1934713408
        %v4779 = vunpack.c.0.s8 %v4778
        %v4780 = vlaneseq
        %v4781 = vshrl.u32 %v4780, 7
        %v4782 = vsub.s32 %v4779, %v4781
        %v4783 = vrot.slane %v4769, %v4782
        %v4784 = vcombine.low %v4719, %v4735
        %v4785 = vcombine.high %v4719, %v4735
        %v4787 = vunpack.c.l.s4 1934713408
        %v4788 = vunpack.c.0.s8 %v4787
        %v4789 = vlaneseq
        %v4790 = vshrl.u32 %v4789, 7
        %v4791 = vsub.s32 %v4788, %v4790
        %v4792 = vrot.slane %v4784, %v4791
        %v4794 = vunpack.c.l.s4 1934713408
        %v4795 = vunpack.c.0.s8 %v4794
        %v4796 = vlaneseq
        %v4797 = vshrl.u32 %v4796, 7
        %v4798 = vsub.s32 %v4795, %v4797
        %v4799 = vrot.slane %v4785, %v4798
        %v4800 = vcombine.low %v4744, %v4776
        %v4801 = vcombine.high %v4744, %v4776
        %v4802 = vcombine.low %v4751, %v4783
        %v4803 = vcombine.high %v4751, %v4783
        %v4804 = vcombine.low %v4760, %v4792
        %v4805 = vcombine.high %v4760, %v4792
        %v4806 = vcombine.low %v4767, %v4799
        %v4807 = vcombine.high %v4767, %v4799
        %v4808 = vcombine.low %v396, %v3535
        %v4809 = vcombine.high %v396, %v3535
        %v4811 = vunpack.c.l.s4 1983009808
        %v4812 = vunpack.c.0.s8 %v4811
        %v4813 = vlaneseq
        %v4814 = vshrl.u32 %v4813, 7
        %v4815 = vsub.s32 %v4812, %v4814
        %v4816 = vrot.slane %v4808, %v4815
        %v4818 = vunpack.c.l.s4 1983009808
        %v4819 = vunpack.c.0.s8 %v4818
        %v4820 = vlaneseq
        %v4821 = vshrl.u32 %v4820, 7
        %v4822 = vsub.s32 %v4819, %v4821
        %v4823 = vrot.slane %v4809, %v4822
        %v4824 = vcombine.low %v3532, %v3538
        %v4825 = vcombine.high %v3532, %v3538
        %v4827 = vunpack.c.l.s4 1983009808
        %v4828 = vunpack.c.0.s8 %v4827
        %v4829 = vlaneseq
        %v4830 = vshrl.u32 %v4829, 7
        %v4831 = vsub.s32 %v4828, %v4830
        %v4832 = vrot.slane %v4824, %v4831
        %v4834 = vunpack.c.l.s4 1983009808
        %v4835 = vunpack.c.0.s8 %v4834
        %v4836 = vlaneseq
        %v4837 = vshrl.u32 %v4836, 7
        %v4838 = vsub.s32 %v4835, %v4837
        %v4839 = vrot.slane %v4825, %v4838
        %v4840 = vcombine.low %v3541, %v3547
        %v4841 = vcombine.high %v3541, %v3547
        %v4843 = vunpack.c.l.s4 1983009808
        %v4844 = vunpack.c.0.s8 %v4843
        %v4845 = vlaneseq
        %v4846 = vshrl.u32 %v4845, 7
        %v4847 = vsub.s32 %v4844, %v4846
        %v4848 = vrot.slane %v4840, %v4847
        %v4850 = vunpack.c.l.s4 1983009808
        %v4851 = vunpack.c.0.s8 %v4850
        %v4852 = vlaneseq
        %v4853 = vshrl.u32 %v4852, 7
        %v4854 = vsub.s32 %v4851, %v4853
        %v4855 = vrot.slane %v4841, %v4854
        %v4856 = vcombine.low %v3544, %v3550
        %v4857 = vcombine.high %v3544, %v3550
        %v4859 = vunpack.c.l.s4 1983009808
        %v4860 = vunpack.c.0.s8 %v4859
        %v4861 = vlaneseq
        %v4862 = vshrl.u32 %v4861, 7
        %v4863 = vsub.s32 %v4860, %v4862
        %v4864 = vrot.slane %v4856, %v4863
        %v4866 = vunpack.c.l.s4 1983009808
        %v4867 = vunpack.c.0.s8 %v4866
        %v4868 = vlaneseq
        %v4869 = vshrl.u32 %v4868, 7
        %v4870 = vsub.s32 %v4867, %v4869
        %v4871 = vrot.slane %v4857, %v4870
        %v4872 = vcombine.low %v4816, %v4832
        %v4873 = vcombine.high %v4816, %v4832
        %v4875 = vunpack.c.l.s4 1934713408
        %v4876 = vunpack.c.0.s8 %v4875
        %v4877 = vlaneseq
        %v4878 = vshrl.u32 %v4877, 7
        %v4879 = vsub.s32 %v4876, %v4878
        %v4880 = vrot.slane %v4872, %v4879
        %v4882 = vunpack.c.l.s4 1934713408
        %v4883 = vunpack.c.0.s8 %v4882
        %v4884 = vlaneseq
        %v4885 = vshrl.u32 %v4884, 7
        %v4886 = vsub.s32 %v4883, %v4885
        %v4887 = vrot.slane %v4873, %v4886
        %v4888 = vcombine.low %v4823, %v4839
        %v4889 = vcombine.high %v4823, %v4839
        %v4891 = vunpack.c.l.s4 1934713408
        %v4892 = vunpack.c.0.s8 %v4891
        %v4893 = vlaneseq
        %v4894 = vshrl.u32 %v4893, 7
        %v4895 = vsub.s32 %v4892, %v4894
        %v4896 = vrot.slane %v4888, %v4895
        %v4898 = vunpack.c.l.s4 1934713408
        %v4899 = vunpack.c.0.s8 %v4898
        %v4900 = vlaneseq
        %v4901 = vshrl.u32 %v4900, 7
        %v4902 = vsub.s32 %v4899, %v4901
        %v4903 = vrot.slane %v4889, %v4902
        %v4904 = vcombine.low %v4848, %v4864
        %v4905 = vcombine.high %v4848, %v4864
        %v4907 = vunpack.c.l.s4 1934713408
        %v4908 = vunpack.c.0.s8 %v4907
        %v4909 = vlaneseq
        %v4910 = vshrl.u32 %v4909, 7
        %v4911 = vsub.s32 %v4908, %v4910
        %v4912 = vrot.slane %v4904, %v4911
        %v4914 = vunpack.c.l.s4 1934713408
        %v4915 = vunpack.c.0.s8 %v4914
        %v4916 = vlaneseq
        %v4917 = vshrl.u32 %v4916, 7
        %v4918 = vsub.s32 %v4915, %v4917
        %v4919 = vrot.slane %v4905, %v4918
        %v4920 = vcombine.low %v4855, %v4871
        %v4921 = vcombine.high %v4855, %v4871
        %v4923 = vunpack.c.l.s4 1934713408
        %v4924 = vunpack.c.0.s8 %v4923
        %v4925 = vlaneseq
        %v4926 = vshrl.u32 %v4925, 7
        %v4927 = vsub.s32 %v4924, %v4926
        %v4928 = vrot.slane %v4920, %v4927
        %v4930 = vunpack.c.l.s4 1934713408
        %v4931 = vunpack.c.0.s8 %v4930
        %v4932 = vlaneseq
        %v4933 = vshrl.u32 %v4932, 7
        %v4934 = vsub.s32 %v4931, %v4933
        %v4935 = vrot.slane %v4921, %v4934
        %v4936 = vcombine.low %v4880, %v4912
        %v4937 = vcombine.high %v4880, %v4912
        %v4938 = vcombine.low %v4887, %v4919
        %v4939 = vcombine.high %v4887, %v4919
        %v4940 = vcombine.low %v4896, %v4928
        %v4941 = vcombine.high %v4896, %v4928
        %v4942 = vcombine.low %v4903, %v4935
        %v4943 = vcombine.high %v4903, %v4935
        %v4944 = vcombine.low %v3553, %v3559
        %v4945 = vcombine.high %v3553, %v3559
        %v4947 = vunpack.c.l.s4 1983009808
        %v4948 = vunpack.c.0.s8 %v4947
        %v4949 = vlaneseq
        %v4950 = vshrl.u32 %v4949, 7
        %v4951 = vsub.s32 %v4948, %v4950
        %v4952 = vrot.slane %v4944, %v4951
        %v4954 = vunpack.c.l.s4 1983009808
        %v4955 = vunpack.c.0.s8 %v4954
        %v4956 = vlaneseq
        %v4957 = vshrl.u32 %v4956, 7
        %v4958 = vsub.s32 %v4955, %v4957
        %v4959 = vrot.slane %v4945, %v4958
        %v4960 = vcombine.low %v3556, %v3562
        %v4961 = vcombine.high %v3556, %v3562
        %v4963 = vunpack.c.l.s4 1983009808
        %v4964 = vunpack.c.0.s8 %v4963
        %v4965 = vlaneseq
        %v4966 = vshrl.u32 %v4965, 7
        %v4967 = vsub.s32 %v4964, %v4966
        %v4968 = vrot.slane %v4960, %v4967
        %v4970 = vunpack.c.l.s4 1983009808
        %v4971 = vunpack.c.0.s8 %v4970
        %v4972 = vlaneseq
        %v4973 = vshrl.u32 %v4972, 7
        %v4974 = vsub.s32 %v4971, %v4973
        %v4975 = vrot.slane %v4961, %v4974
        %v4976 = vcombine.low %v3565, %v3571
        %v4977 = vcombine.high %v3565, %v3571
        %v4979 = vunpack.c.l.s4 1983009808
        %v4980 = vunpack.c.0.s8 %v4979
        %v4981 = vlaneseq
        %v4982 = vshrl.u32 %v4981, 7
        %v4983 = vsub.s32 %v4980, %v4982
        %v4984 = vrot.slane %v4976, %v4983
        %v4986 = vunpack.c.l.s4 1983009808
        %v4987 = vunpack.c.0.s8 %v4986
        %v4988 = vlaneseq
        %v4989 = vshrl.u32 %v4988, 7
        %v4990 = vsub.s32 %v4987, %v4989
        %v4991 = vrot.slane %v4977, %v4990
        %v4992 = vcombine.low %v3568, %v3574
        %v4993 = vcombine.high %v3568, %v3574
        %v4995 = vunpack.c.l.s4 1983009808
        %v4996 = vunpack.c.0.s8 %v4995
        %v4997 = vlaneseq
        %v4998 = vshrl.u32 %v4997, 7
        %v4999 = vsub.s32 %v4996, %v4998
        %v5000 = vrot.slane %v4992, %v4999
        %v5002 = vunpack.c.l.s4 1983009808
        %v5003 = vunpack.c.0.s8 %v5002
        %v5004 = vlaneseq
        %v5005 = vshrl.u32 %v5004, 7
        %v5006 = vsub.s32 %v5003, %v5005
        %v5007 = vrot.slane %v4993, %v5006
        %v5008 = vcombine.low %v4952, %v4968
        %v5009 = vcombine.high %v4952, %v4968
        %v5011 = vunpack.c.l.s4 1934713408
        %v5012 = vunpack.c.0.s8 %v5011
        %v5013 = vlaneseq
        %v5014 = vshrl.u32 %v5013, 7
        %v5015 = vsub.s32 %v5012, %v5014
        %v5016 = vrot.slane %v5008, %v5015
        %v5018 = vunpack.c.l.s4 1934713408
        %v5019 = vunpack.c.0.s8 %v5018
        %v5020 = vlaneseq
        %v5021 = vshrl.u32 %v5020, 7
        %v5022 = vsub.s32 %v5019, %v5021
        %v5023 = vrot.slane %v5009, %v5022
        %v5024 = vcombine.low %v4959, %v4975
        %v5025 = vcombine.high %v4959, %v4975
        %v5027 = vunpack.c.l.s4 1934713408
        %v5028 = vunpack.c.0.s8 %v5027
        %v5029 = vlaneseq
        %v5030 = vshrl.u32 %v5029, 7
        %v5031 = vsub.s32 %v5028, %v5030
        %v5032 = vrot.slane %v5024, %v5031
        %v5034 = vunpack.c.l.s4 1934713408
        %v5035 = vunpack.c.0.s8 %v5034
        %v5036 = vlaneseq
        %v5037 = vshrl.u32 %v5036, 7
        %v5038 = vsub.s32 %v5035, %v5037
        %v5039 = vrot.slane %v5025, %v5038
        %v5040 = vcombine.low %v4984, %v5000
        %v5041 = vcombine.high %v4984, %v5000
        %v5043 = vunpack.c.l.s4 1934713408
        %v5044 = vunpack.c.0.s8 %v5043
        %v5045 = vlaneseq
        %v5046 = vshrl.u32 %v5045, 7
        %v5047 = vsub.s32 %v5044, %v5046
        %v5048 = vrot.slane %v5040, %v5047
        %v5050 = vunpack.c.l.s4 1934713408
        %v5051 = vunpack.c.0.s8 %v5050
        %v5052 = vlaneseq
        %v5053 = vshrl.u32 %v5052, 7
        %v5054 = vsub.s32 %v5051, %v5053
        %v5055 = vrot.slane %v5041, %v5054
        %v5056 = vcombine.low %v4991, %v5007
        %v5057 = vcombine.high %v4991, %v5007
        %v5059 = vunpack.c.l.s4 1934713408
        %v5060 = vunpack.c.0.s8 %v5059
        %v5061 = vlaneseq
        %v5062 = vshrl.u32 %v5061, 7
        %v5063 = vsub.s32 %v5060, %v5062
        %v5064 = vrot.slane %v5056, %v5063
        %v5066 = vunpack.c.l.s4 1934713408
        %v5067 = vunpack.c.0.s8 %v5066
        %v5068 = vlaneseq
        %v5069 = vshrl.u32 %v5068, 7
        %v5070 = vsub.s32 %v5067, %v5069
        %v5071 = vrot.slane %v5057, %v5070
        %v5072 = vcombine.low %v5016, %v5048
        %v5073 = vcombine.high %v5016, %v5048
        %v5074 = vcombine.low %v5023, %v5055
        %v5075 = vcombine.high %v5023, %v5055
        %v5076 = vcombine.low %v5032, %v5064
        %v5077 = vcombine.high %v5032, %v5064
        %v5078 = vcombine.low %v5039, %v5071
        %v5079 = vcombine.high %v5039, %v5071
        %v5080 = vcombine.low %v3577, %v3583
        %v5081 = vcombine.high %v3577, %v3583
        %v5083 = vunpack.c.l.s4 1983009808
        %v5084 = vunpack.c.0.s8 %v5083
        %v5085 = vlaneseq
        %v5086 = vshrl.u32 %v5085, 7
        %v5087 = vsub.s32 %v5084, %v5086
        %v5088 = vrot.slane %v5080, %v5087
        %v5090 = vunpack.c.l.s4 1983009808
        %v5091 = vunpack.c.0.s8 %v5090
        %v5092 = vlaneseq
        %v5093 = vshrl.u32 %v5092, 7
        %v5094 = vsub.s32 %v5091, %v5093
        %v5095 = vrot.slane %v5081, %v5094
        %v5096 = vcombine.low %v3580, %v3586
        %v5097 = vcombine.high %v3580, %v3586
        %v5099 = vunpack.c.l.s4 1983009808
        %v5100 = vunpack.c.0.s8 %v5099
        %v5101 = vlaneseq
        %v5102 = vshrl.u32 %v5101, 7
        %v5103 = vsub.s32 %v5100, %v5102
        %v5104 = vrot.slane %v5096, %v5103
        %v5106 = vunpack.c.l.s4 1983009808
        %v5107 = vunpack.c.0.s8 %v5106
        %v5108 = vlaneseq
        %v5109 = vshrl.u32 %v5108, 7
        %v5110 = vsub.s32 %v5107, %v5109
        %v5111 = vrot.slane %v5097, %v5110
        %v5112 = vcombine.low %v3589, %v3595
        %v5113 = vcombine.high %v3589, %v3595
        %v5115 = vunpack.c.l.s4 1983009808
        %v5116 = vunpack.c.0.s8 %v5115
        %v5117 = vlaneseq
        %v5118 = vshrl.u32 %v5117, 7
        %v5119 = vsub.s32 %v5116, %v5118
        %v5120 = vrot.slane %v5112, %v5119
        %v5122 = vunpack.c.l.s4 1983009808
        %v5123 = vunpack.c.0.s8 %v5122
        %v5124 = vlaneseq
        %v5125 = vshrl.u32 %v5124, 7
        %v5126 = vsub.s32 %v5123, %v5125
        %v5127 = vrot.slane %v5113, %v5126
        %v5128 = vcombine.low %v3592, %v3598
        %v5129 = vcombine.high %v3592, %v3598
        %v5131 = vunpack.c.l.s4 1983009808
        %v5132 = vunpack.c.0.s8 %v5131
        %v5133 = vlaneseq
        %v5134 = vshrl.u32 %v5133, 7
        %v5135 = vsub.s32 %v5132, %v5134
        %v5136 = vrot.slane %v5128, %v5135
        %v5138 = vunpack.c.l.s4 1983009808
        %v5139 = vunpack.c.0.s8 %v5138
        %v5140 = vlaneseq
        %v5141 = vshrl.u32 %v5140, 7
        %v5142 = vsub.s32 %v5139, %v5141
        %v5143 = vrot.slane %v5129, %v5142
        %v5144 = vcombine.low %v5088, %v5104
        %v5145 = vcombine.high %v5088, %v5104
        %v5147 = vunpack.c.l.s4 1934713408
        %v5148 = vunpack.c.0.s8 %v5147
        %v5149 = vlaneseq
        %v5150 = vshrl.u32 %v5149, 7
        %v5151 = vsub.s32 %v5148, %v5150
        %v5152 = vrot.slane %v5144, %v5151
        %v5154 = vunpack.c.l.s4 1934713408
        %v5155 = vunpack.c.0.s8 %v5154
        %v5156 = vlaneseq
        %v5157 = vshrl.u32 %v5156, 7
        %v5158 = vsub.s32 %v5155, %v5157
        %v5159 = vrot.slane %v5145, %v5158
        %v5160 = vcombine.low %v5095, %v5111
        %v5161 = vcombine.high %v5095, %v5111
        %v5163 = vunpack.c.l.s4 1934713408
        %v5164 = vunpack.c.0.s8 %v5163
        %v5165 = vlaneseq
        %v5166 = vshrl.u32 %v5165, 7
        %v5167 = vsub.s32 %v5164, %v5166
        %v5168 = vrot.slane %v5160, %v5167
        %v5170 = vunpack.c.l.s4 1934713408
        %v5171 = vunpack.c.0.s8 %v5170
        %v5172 = vlaneseq
        %v5173 = vshrl.u32 %v5172, 7
        %v5174 = vsub.s32 %v5171, %v5173
        %v5175 = vrot.slane %v5161, %v5174
        %v5176 = vcombine.low %v5120, %v5136
        %v5177 = vcombine.high %v5120, %v5136
        %v5179 = vunpack.c.l.s4 1934713408
        %v5180 = vunpack.c.0.s8 %v5179
        %v5181 = vlaneseq
        %v5182 = vshrl.u32 %v5181, 7
        %v5183 = vsub.s32 %v5180, %v5182
        %v5184 = vrot.slane %v5176, %v5183
        %v5186 = vunpack.c.l.s4 1934713408
        %v5187 = vunpack.c.0.s8 %v5186
        %v5188 = vlaneseq
        %v5189 = vshrl.u32 %v5188, 7
        %v5190 = vsub.s32 %v5187, %v5189
        %v5191 = vrot.slane %v5177, %v5190
        %v5192 = vcombine.low %v5127, %v5143
        %v5193 = vcombine.high %v5127, %v5143
        %v5195 = vunpack.c.l.s4 1934713408
        %v5196 = vunpack.c.0.s8 %v5195
        %v5197 = vlaneseq
        %v5198 = vshrl.u32 %v5197, 7
        %v5199 = vsub.s32 %v5196, %v5198
        %v5200 = vrot.slane %v5192, %v5199
        %v5202 = vunpack.c.l.s4 1934713408
        %v5203 = vunpack.c.0.s8 %v5202
        %v5204 = vlaneseq
        %v5205 = vshrl.u32 %v5204, 7
        %v5206 = vsub.s32 %v5203, %v5205
        %v5207 = vrot.slane %v5193, %v5206
        %v5208 = vcombine.low %v5152, %v5184
        %v5209 = vcombine.high %v5152, %v5184
        %v5210 = vcombine.low %v5159, %v5191
        %v5211 = vcombine.high %v5159, %v5191
        %v5212 = vcombine.low %v5168, %v5200
        %v5213 = vcombine.high %v5168, %v5200
        %v5214 = vcombine.low %v5175, %v5207
        %v5215 = vcombine.high %v5175, %v5207
        %v5216 = vcombine.low %v3601, %v3607
        %v5217 = vcombine.high %v3601, %v3607
        %v5219 = vunpack.c.l.s4 1983009808
        %v5220 = vunpack.c.0.s8 %v5219
        %v5221 = vlaneseq
        %v5222 = vshrl.u32 %v5221, 7
        %v5223 = vsub.s32 %v5220, %v5222
        %v5224 = vrot.slane %v5216, %v5223
        %v5226 = vunpack.c.l.s4 1983009808
        %v5227 = vunpack.c.0.s8 %v5226
        %v5228 = vlaneseq
        %v5229 = vshrl.u32 %v5228, 7
        %v5230 = vsub.s32 %v5227, %v5229
        %v5231 = vrot.slane %v5217, %v5230
        %v5232 = vcombine.low %v3604, %v3610
        %v5233 = vcombine.high %v3604, %v3610
        %v5235 = vunpack.c.l.s4 1983009808
        %v5236 = vunpack.c.0.s8 %v5235
        %v5237 = vlaneseq
        %v5238 = vshrl.u32 %v5237, 7
        %v5239 = vsub.s32 %v5236, %v5238
        %v5240 = vrot.slane %v5232, %v5239
        %v5242 = vunpack.c.l.s4 1983009808
        %v5243 = vunpack.c.0.s8 %v5242
        %v5244 = vlaneseq
        %v5245 = vshrl.u32 %v5244, 7
        %v5246 = vsub.s32 %v5243, %v5245
        %v5247 = vrot.slane %v5233, %v5246
        %v5248 = vcombine.low %v3613, %v3619
        %v5249 = vcombine.high %v3613, %v3619
        %v5251 = vunpack.c.l.s4 1983009808
        %v5252 = vunpack.c.0.s8 %v5251
        %v5253 = vlaneseq
        %v5254 = vshrl.u32 %v5253, 7
        %v5255 = vsub.s32 %v5252, %v5254
        %v5256 = vrot.slane %v5248, %v5255
        %v5258 = vunpack.c.l.s4 1983009808
        %v5259 = vunpack.c.0.s8 %v5258
        %v5260 = vlaneseq
        %v5261 = vshrl.u32 %v5260, 7
        %v5262 = vsub.s32 %v5259, %v5261
        %v5263 = vrot.slane %v5249, %v5262
        %v5264 = vcombine.low %v3616, %v3622
        %v5265 = vcombine.high %v3616, %v3622
        %v5267 = vunpack.c.l.s4 1983009808
        %v5268 = vunpack.c.0.s8 %v5267
        %v5269 = vlaneseq
        %v5270 = vshrl.u32 %v5269, 7
        %v5271 = vsub.s32 %v5268, %v5270
        %v5272 = vrot.slane %v5264, %v5271
        %v5274 = vunpack.c.l.s4 1983009808
        %v5275 = vunpack.c.0.s8 %v5274
        %v5276 = vlaneseq
        %v5277 = vshrl.u32 %v5276, 7
        %v5278 = vsub.s32 %v5275, %v5277
        %v5279 = vrot.slane %v5265, %v5278
        %v5280 = vcombine.low %v5224, %v5240
        %v5281 = vcombine.high %v5224, %v5240
        %v5283 = vunpack.c.l.s4 1934713408
        %v5284 = vunpack.c.0.s8 %v5283
        %v5285 = vlaneseq
        %v5286 = vshrl.u32 %v5285, 7
        %v5287 = vsub.s32 %v5284, %v5286
        %v5288 = vrot.slane %v5280, %v5287
        %v5290 = vunpack.c.l.s4 1934713408
        %v5291 = vunpack.c.0.s8 %v5290
        %v5292 = vlaneseq
        %v5293 = vshrl.u32 %v5292, 7
        %v5294 = vsub.s32 %v5291, %v5293
        %v5295 = vrot.slane %v5281, %v5294
        %v5296 = vcombine.low %v5231, %v5247
        %v5297 = vcombine.high %v5231, %v5247
        %v5299 = vunpack.c.l.s4 1934713408
        %v5300 = vunpack.c.0.s8 %v5299
        %v5301 = vlaneseq
        %v5302 = vshrl.u32 %v5301, 7
        %v5303 = vsub.s32 %v5300, %v5302
        %v5304 = vrot.slane %v5296, %v5303
        %v5306 = vunpack.c.l.s4 1934713408
        %v5307 = vunpack.c.0.s8 %v5306
        %v5308 = vlaneseq
        %v5309 = vshrl.u32 %v5308, 7
        %v5310 = vsub.s32 %v5307, %v5309
        %v5311 = vrot.slane %v5297, %v5310
        %v5312 = vcombine.low %v5256, %v5272
        %v5313 = vcombine.high %v5256, %v5272
        %v5315 = vunpack.c.l.s4 1934713408
        %v5316 = vunpack.c.0.s8 %v5315
        %v5317 = vlaneseq
        %v5318 = vshrl.u32 %v5317, 7
        %v5319 = vsub.s32 %v5316, %v5318
        %v5320 = vrot.slane %v5312, %v5319
        %v5322 = vunpack.c.l.s4 1934713408
        %v5323 = vunpack.c.0.s8 %v5322
        %v5324 = vlaneseq
        %v5325 = vshrl.u32 %v5324, 7
        %v5326 = vsub.s32 %v5323, %v5325
        %v5327 = vrot.slane %v5313, %v5326
        %v5328 = vcombine.low %v5263, %v5279
        %v5329 = vcombine.high %v5263, %v5279
        %v5331 = vunpack.c.l.s4 1934713408
        %v5332 = vunpack.c.0.s8 %v5331
        %v5333 = vlaneseq
        %v5334 = vshrl.u32 %v5333, 7
        %v5335 = vsub.s32 %v5332, %v5334
        %v5336 = vrot.slane %v5328, %v5335
        %v5338 = vunpack.c.l.s4 1934713408
        %v5339 = vunpack.c.0.s8 %v5338
        %v5340 = vlaneseq
        %v5341 = vshrl.u32 %v5340, 7
        %v5342 = vsub.s32 %v5339, %v5341
        %v5343 = vrot.slane %v5329, %v5342
        %v5344 = vcombine.low %v5288, %v5320
        %v5345 = vcombine.high %v5288, %v5320
        %v5346 = vcombine.low %v5295, %v5327
        %v5347 = vcombine.high %v5295, %v5327
        %v5348 = vcombine.low %v5304, %v5336
        %v5349 = vcombine.high %v5304, %v5336
        %v5350 = vcombine.low %v5311, %v5343
        %v5351 = vcombine.high %v5311, %v5343
        %v5352 = vcombine.low %v3625, %v3631
        %v5353 = vcombine.high %v3625, %v3631
        %v5355 = vunpack.c.l.s4 1983009808
        %v5356 = vunpack.c.0.s8 %v5355
        %v5357 = vlaneseq
        %v5358 = vshrl.u32 %v5357, 7
        %v5359 = vsub.s32 %v5356, %v5358
        %v5360 = vrot.slane %v5352, %v5359
        %v5362 = vunpack.c.l.s4 1983009808
        %v5363 = vunpack.c.0.s8 %v5362
        %v5364 = vlaneseq
        %v5365 = vshrl.u32 %v5364, 7
        %v5366 = vsub.s32 %v5363, %v5365
        %v5367 = vrot.slane %v5353, %v5366
        %v5368 = vcombine.low %v3628, %v3634
        %v5369 = vcombine.high %v3628, %v3634
        %v5371 = vunpack.c.l.s4 1983009808
        %v5372 = vunpack.c.0.s8 %v5371
        %v5373 = vlaneseq
        %v5374 = vshrl.u32 %v5373, 7
        %v5375 = vsub.s32 %v5372, %v5374
        %v5376 = vrot.slane %v5368, %v5375
        %v5378 = vunpack.c.l.s4 1983009808
        %v5379 = vunpack.c.0.s8 %v5378
        %v5380 = vlaneseq
        %v5381 = vshrl.u32 %v5380, 7
        %v5382 = vsub.s32 %v5379, %v5381
        %v5383 = vrot.slane %v5369, %v5382
        %v5384 = vcombine.low %v3637, %v3643
        %v5385 = vcombine.high %v3637, %v3643
        %v5387 = vunpack.c.l.s4 1983009808
        %v5388 = vunpack.c.0.s8 %v5387
        %v5389 = vlaneseq
        %v5390 = vshrl.u32 %v5389, 7
        %v5391 = vsub.s32 %v5388, %v5390
        %v5392 = vrot.slane %v5384, %v5391
        %v5394 = vunpack.c.l.s4 1983009808
        %v5395 = vunpack.c.0.s8 %v5394
        %v5396 = vlaneseq
        %v5397 = vshrl.u32 %v5396, 7
        %v5398 = vsub.s32 %v5395, %v5397
        %v5399 = vrot.slane %v5385, %v5398
        %v5400 = vcombine.low %v3640, %v3646
        %v5401 = vcombine.high %v3640, %v3646
        %v5403 = vunpack.c.l.s4 1983009808
        %v5404 = vunpack.c.0.s8 %v5403
        %v5405 = vlaneseq
        %v5406 = vshrl.u32 %v5405, 7
        %v5407 = vsub.s32 %v5404, %v5406
        %v5408 = vrot.slane %v5400, %v5407
        %v5410 = vunpack.c.l.s4 1983009808
        %v5411 = vunpack.c.0.s8 %v5410
        %v5412 = vlaneseq
        %v5413 = vshrl.u32 %v5412, 7
        %v5414 = vsub.s32 %v5411, %v5413
        %v5415 = vrot.slane %v5401, %v5414
        %v5416 = vcombine.low %v5360, %v5376
        %v5417 = vcombine.high %v5360, %v5376
        %v5419 = vunpack.c.l.s4 1934713408
        %v5420 = vunpack.c.0.s8 %v5419
        %v5421 = vlaneseq
        %v5422 = vshrl.u32 %v5421, 7
        %v5423 = vsub.s32 %v5420, %v5422
        %v5424 = vrot.slane %v5416, %v5423
        %v5426 = vunpack.c.l.s4 1934713408
        %v5427 = vunpack.c.0.s8 %v5426
        %v5428 = vlaneseq
        %v5429 = vshrl.u32 %v5428, 7
        %v5430 = vsub.s32 %v5427, %v5429
        %v5431 = vrot.slane %v5417, %v5430
        %v5432 = vcombine.low %v5367, %v5383
        %v5433 = vcombine.high %v5367, %v5383
        %v5435 = vunpack.c.l.s4 1934713408
        %v5436 = vunpack.c.0.s8 %v5435
        %v5437 = vlaneseq
        %v5438 = vshrl.u32 %v5437, 7
        %v5439 = vsub.s32 %v5436, %v5438
        %v5440 = vrot.slane %v5432, %v5439
        %v5442 = vunpack.c.l.s4 1934713408
        %v5443 = vunpack.c.0.s8 %v5442
        %v5444 = vlaneseq
        %v5445 = vshrl.u32 %v5444, 7
        %v5446 = vsub.s32 %v5443, %v5445
        %v5447 = vrot.slane %v5433, %v5446
        %v5448 = vcombine.low %v5392, %v5408
        %v5449 = vcombine.high %v5392, %v5408
        %v5451 = vunpack.c.l.s4 1934713408
        %v5452 = vunpack.c.0.s8 %v5451
        %v5453 = vlaneseq
        %v5454 = vshrl.u32 %v5453, 7
        %v5455 = vsub.s32 %v5452, %v5454
        %v5456 = vrot.slane %v5448, %v5455
        %v5458 = vunpack.c.l.s4 1934713408
        %v5459 = vunpack.c.0.s8 %v5458
        %v5460 = vlaneseq
        %v5461 = vshrl.u32 %v5460, 7
        %v5462 = vsub.s32 %v5459, %v5461
        %v5463 = vrot.slane %v5449, %v5462
        %v5464 = vcombine.low %v5399, %v5415
        %v5465 = vcombine.high %v5399, %v5415
        %v5467 = vunpack.c.l.s4 1934713408
        %v5468 = vunpack.c.0.s8 %v5467
        %v5469 = vlaneseq
        %v5470 = vshrl.u32 %v5469, 7
        %v5471 = vsub.s32 %v5468, %v5470
        %v5472 = vrot.slane %v5464, %v5471
        %v5474 = vunpack.c.l.s4 1934713408
        %v5475 = vunpack.c.0.s8 %v5474
        %v5476 = vlaneseq
        %v5477 = vshrl.u32 %v5476, 7
        %v5478 = vsub.s32 %v5475, %v5477
        %v5479 = vrot.slane %v5465, %v5478
        %v5480 = vcombine.low %v5424, %v5456
        %v5481 = vcombine.high %v5424, %v5456
        %v5482 = vcombine.low %v5431, %v5463
        %v5483 = vcombine.high %v5431, %v5463
        %v5484 = vcombine.low %v5440, %v5472
        %v5485 = vcombine.high %v5440, %v5472
        %v5486 = vcombine.low %v5447, %v5479
        %v5487 = vcombine.high %v5447, %v5479
        %v5488 = vcombine.low %v3649, %v3655
        %v5489 = vcombine.high %v3649, %v3655
        %v5491 = vunpack.c.l.s4 1983009808
        %v5492 = vunpack.c.0.s8 %v5491
        %v5493 = vlaneseq
        %v5494 = vshrl.u32 %v5493, 7
        %v5495 = vsub.s32 %v5492, %v5494
        %v5496 = vrot.slane %v5488, %v5495
        %v5498 = vunpack.c.l.s4 1983009808
        %v5499 = vunpack.c.0.s8 %v5498
        %v5500 = vlaneseq
        %v5501 = vshrl.u32 %v5500, 7
        %v5502 = vsub.s32 %v5499, %v5501
        %v5503 = vrot.slane %v5489, %v5502
        %v5504 = vcombine.low %v3652, %v3658
        %v5505 = vcombine.high %v3652, %v3658
        %v5507 = vunpack.c.l.s4 1983009808
        %v5508 = vunpack.c.0.s8 %v5507
        %v5509 = vlaneseq
        %v5510 = vshrl.u32 %v5509, 7
        %v5511 = vsub.s32 %v5508, %v5510
        %v5512 = vrot.slane %v5504, %v5511
        %v5514 = vunpack.c.l.s4 1983009808
        %v5515 = vunpack.c.0.s8 %v5514
        %v5516 = vlaneseq
        %v5517 = vshrl.u32 %v5516, 7
        %v5518 = vsub.s32 %v5515, %v5517
        %v5519 = vrot.slane %v5505, %v5518
        %v5520 = vcombine.low %v3661, %v3667
        %v5521 = vcombine.high %v3661, %v3667
        %v5523 = vunpack.c.l.s4 1983009808
        %v5524 = vunpack.c.0.s8 %v5523
        %v5525 = vlaneseq
        %v5526 = vshrl.u32 %v5525, 7
        %v5527 = vsub.s32 %v5524, %v5526
        %v5528 = vrot.slane %v5520, %v5527
        %v5530 = vunpack.c.l.s4 1983009808
        %v5531 = vunpack.c.0.s8 %v5530
        %v5532 = vlaneseq
        %v5533 = vshrl.u32 %v5532, 7
        %v5534 = vsub.s32 %v5531, %v5533
        %v5535 = vrot.slane %v5521, %v5534
        %v5536 = vcombine.low %v3664, %v3670
        %v5537 = vcombine.high %v3664, %v3670
        %v5539 = vunpack.c.l.s4 1983009808
        %v5540 = vunpack.c.0.s8 %v5539
        %v5541 = vlaneseq
        %v5542 = vshrl.u32 %v5541, 7
        %v5543 = vsub.s32 %v5540, %v5542
        %v5544 = vrot.slane %v5536, %v5543
        %v5546 = vunpack.c.l.s4 1983009808
        %v5547 = vunpack.c.0.s8 %v5546
        %v5548 = vlaneseq
        %v5549 = vshrl.u32 %v5548, 7
        %v5550 = vsub.s32 %v5547, %v5549
        %v5551 = vrot.slane %v5537, %v5550
        %v5552 = vcombine.low %v5496, %v5512
        %v5553 = vcombine.high %v5496, %v5512
        %v5555 = vunpack.c.l.s4 1934713408
        %v5556 = vunpack.c.0.s8 %v5555
        %v5557 = vlaneseq
        %v5558 = vshrl.u32 %v5557, 7
        %v5559 = vsub.s32 %v5556, %v5558
        %v5560 = vrot.slane %v5552, %v5559
        %v5562 = vunpack.c.l.s4 1934713408
        %v5563 = vunpack.c.0.s8 %v5562
        %v5564 = vlaneseq
        %v5565 = vshrl.u32 %v5564, 7
        %v5566 = vsub.s32 %v5563, %v5565
        %v5567 = vrot.slane %v5553, %v5566
        %v5568 = vcombine.low %v5503, %v5519
        %v5569 = vcombine.high %v5503, %v5519
        %v5571 = vunpack.c.l.s4 1934713408
        %v5572 = vunpack.c.0.s8 %v5571
        %v5573 = vlaneseq
        %v5574 = vshrl.u32 %v5573, 7
        %v5575 = vsub.s32 %v5572, %v5574
        %v5576 = vrot.slane %v5568, %v5575
        %v5578 = vunpack.c.l.s4 1934713408
        %v5579 = vunpack.c.0.s8 %v5578
        %v5580 = vlaneseq
        %v5581 = vshrl.u32 %v5580, 7
        %v5582 = vsub.s32 %v5579, %v5581
        %v5583 = vrot.slane %v5569, %v5582
        %v5584 = vcombine.low %v5528, %v5544
        %v5585 = vcombine.high %v5528, %v5544
        %v5587 = vunpack.c.l.s4 1934713408
        %v5588 = vunpack.c.0.s8 %v5587
        %v5589 = vlaneseq
        %v5590 = vshrl.u32 %v5589, 7
        %v5591 = vsub.s32 %v5588, %v5590
        %v5592 = vrot.slane %v5584, %v5591
        %v5594 = vunpack.c.l.s4 1934713408
        %v5595 = vunpack.c.0.s8 %v5594
        %v5596 = vlaneseq
        %v5597 = vshrl.u32 %v5596, 7
        %v5598 = vsub.s32 %v5595, %v5597
        %v5599 = vrot.slane %v5585, %v5598
        %v5600 = vcombine.low %v5535, %v5551
        %v5601 = vcombine.high %v5535, %v5551
        %v5603 = vunpack.c.l.s4 1934713408
        %v5604 = vunpack.c.0.s8 %v5603
        %v5605 = vlaneseq
        %v5606 = vshrl.u32 %v5605, 7
        %v5607 = vsub.s32 %v5604, %v5606
        %v5608 = vrot.slane %v5600, %v5607
        %v5610 = vunpack.c.l.s4 1934713408
        %v5611 = vunpack.c.0.s8 %v5610
        %v5612 = vlaneseq
        %v5613 = vshrl.u32 %v5612, 7
        %v5614 = vsub.s32 %v5611, %v5613
        %v5615 = vrot.slane %v5601, %v5614
        %v5616 = vcombine.low %v5560, %v5592
        %v5617 = vcombine.high %v5560, %v5592
        %v5618 = vcombine.low %v5567, %v5599
        %v5619 = vcombine.high %v5567, %v5599
        %v5620 = vcombine.low %v5576, %v5608
        %v5621 = vcombine.high %v5576, %v5608
        %v5622 = vcombine.low %v5583, %v5615
        %v5623 = vcombine.high %v5583, %v5615
        %v5624 = vcombine.low %v3673, %v3679
        %v5625 = vcombine.high %v3673, %v3679
        %v5627 = vunpack.c.l.s4 1983009808
        %v5628 = vunpack.c.0.s8 %v5627
        %v5629 = vlaneseq
        %v5630 = vshrl.u32 %v5629, 7
        %v5631 = vsub.s32 %v5628, %v5630
        %v5632 = vrot.slane %v5624, %v5631
        %v5634 = vunpack.c.l.s4 1983009808
        %v5635 = vunpack.c.0.s8 %v5634
        %v5636 = vlaneseq
        %v5637 = vshrl.u32 %v5636, 7
        %v5638 = vsub.s32 %v5635, %v5637
        %v5639 = vrot.slane %v5625, %v5638
        %v5640 = vcombine.low %v3676, %v3682
        %v5641 = vcombine.high %v3676, %v3682
        %v5643 = vunpack.c.l.s4 1983009808
        %v5644 = vunpack.c.0.s8 %v5643
        %v5645 = vlaneseq
        %v5646 = vshrl.u32 %v5645, 7
        %v5647 = vsub.s32 %v5644, %v5646
        %v5648 = vrot.slane %v5640, %v5647
        %v5650 = vunpack.c.l.s4 1983009808
        %v5651 = vunpack.c.0.s8 %v5650
        %v5652 = vlaneseq
        %v5653 = vshrl.u32 %v5652, 7
        %v5654 = vsub.s32 %v5651, %v5653
        %v5655 = vrot.slane %v5641, %v5654
        %v5656 = vcombine.low %v3685, %v3691
        %v5657 = vcombine.high %v3685, %v3691
        %v5659 = vunpack.c.l.s4 1983009808
        %v5660 = vunpack.c.0.s8 %v5659
        %v5661 = vlaneseq
        %v5662 = vshrl.u32 %v5661, 7
        %v5663 = vsub.s32 %v5660, %v5662
        %v5664 = vrot.slane %v5656, %v5663
        %v5666 = vunpack.c.l.s4 1983009808
        %v5667 = vunpack.c.0.s8 %v5666
        %v5668 = vlaneseq
        %v5669 = vshrl.u32 %v5668, 7
        %v5670 = vsub.s32 %v5667, %v5669
        %v5671 = vrot.slane %v5657, %v5670
        %v5672 = vcombine.low %v3688, %v3694
        %v5673 = vcombine.high %v3688, %v3694
        %v5675 = vunpack.c.l.s4 1983009808
        %v5676 = vunpack.c.0.s8 %v5675
        %v5677 = vlaneseq
        %v5678 = vshrl.u32 %v5677, 7
        %v5679 = vsub.s32 %v5676, %v5678
        %v5680 = vrot.slane %v5672, %v5679
        %v5682 = vunpack.c.l.s4 1983009808
        %v5683 = vunpack.c.0.s8 %v5682
        %v5684 = vlaneseq
        %v5685 = vshrl.u32 %v5684, 7
        %v5686 = vsub.s32 %v5683, %v5685
        %v5687 = vrot.slane %v5673, %v5686
        %v5688 = vcombine.low %v5632, %v5648
        %v5689 = vcombine.high %v5632, %v5648
        %v5691 = vunpack.c.l.s4 1934713408
        %v5692 = vunpack.c.0.s8 %v5691
        %v5693 = vlaneseq
        %v5694 = vshrl.u32 %v5693, 7
        %v5695 = vsub.s32 %v5692, %v5694
        %v5696 = vrot.slane %v5688, %v5695
        %v5698 = vunpack.c.l.s4 1934713408
        %v5699 = vunpack.c.0.s8 %v5698
        %v5700 = vlaneseq
        %v5701 = vshrl.u32 %v5700, 7
        %v5702 = vsub.s32 %v5699, %v5701
        %v5703 = vrot.slane %v5689, %v5702
        %v5704 = vcombine.low %v5639, %v5655
        %v5705 = vcombine.high %v5639, %v5655
        %v5707 = vunpack.c.l.s4 1934713408
        %v5708 = vunpack.c.0.s8 %v5707
        %v5709 = vlaneseq
        %v5710 = vshrl.u32 %v5709, 7
        %v5711 = vsub.s32 %v5708, %v5710
        %v5712 = vrot.slane %v5704, %v5711
        %v5714 = vunpack.c.l.s4 1934713408
        %v5715 = vunpack.c.0.s8 %v5714
        %v5716 = vlaneseq
        %v5717 = vshrl.u32 %v5716, 7
        %v5718 = vsub.s32 %v5715, %v5717
        %v5719 = vrot.slane %v5705, %v5718
        %v5720 = vcombine.low %v5664, %v5680
        %v5721 = vcombine.high %v5664, %v5680
        %v5723 = vunpack.c.l.s4 1934713408
        %v5724 = vunpack.c.0.s8 %v5723
        %v5725 = vlaneseq
        %v5726 = vshrl.u32 %v5725, 7
        %v5727 = vsub.s32 %v5724, %v5726
        %v5728 = vrot.slane %v5720, %v5727
        %v5730 = vunpack.c.l.s4 1934713408
        %v5731 = vunpack.c.0.s8 %v5730
        %v5732 = vlaneseq
        %v5733 = vshrl.u32 %v5732, 7
        %v5734 = vsub.s32 %v5731, %v5733
        %v5735 = vrot.slane %v5721, %v5734
        %v5736 = vcombine.low %v5671, %v5687
        %v5737 = vcombine.high %v5671, %v5687
        %v5739 = vunpack.c.l.s4 1934713408
        %v5740 = vunpack.c.0.s8 %v5739
        %v5741 = vlaneseq
        %v5742 = vshrl.u32 %v5741, 7
        %v5743 = vsub.s32 %v5740, %v5742
        %v5744 = vrot.slane %v5736, %v5743
        %v5746 = vunpack.c.l.s4 1934713408
        %v5747 = vunpack.c.0.s8 %v5746
        %v5748 = vlaneseq
        %v5749 = vshrl.u32 %v5748, 7
        %v5750 = vsub.s32 %v5747, %v5749
        %v5751 = vrot.slane %v5737, %v5750
        %v5752 = vcombine.low %v5696, %v5728
        %v5753 = vcombine.high %v5696, %v5728
        %v5754 = vcombine.low %v5703, %v5735
        %v5755 = vcombine.high %v5703, %v5735
        %v5756 = vcombine.low %v5712, %v5744
        %v5757 = vcombine.high %v5712, %v5744
        %v5758 = vcombine.low %v5719, %v5751
        %v5759 = vcombine.high %v5719, %v5751
        %v5760 = vcombine.low %v3697, %v3703
        %v5761 = vcombine.high %v3697, %v3703
        %v5763 = vunpack.c.l.s4 1983009808
        %v5764 = vunpack.c.0.s8 %v5763
        %v5765 = vlaneseq
        %v5766 = vshrl.u32 %v5765, 7
        %v5767 = vsub.s32 %v5764, %v5766
        %v5768 = vrot.slane %v5760, %v5767
        %v5770 = vunpack.c.l.s4 1983009808
        %v5771 = vunpack.c.0.s8 %v5770
        %v5772 = vlaneseq
        %v5773 = vshrl.u32 %v5772, 7
        %v5774 = vsub.s32 %v5771, %v5773
        %v5775 = vrot.slane %v5761, %v5774
        %v5776 = vcombine.low %v3700, %v3706
        %v5777 = vcombine.high %v3700, %v3706
        %v5779 = vunpack.c.l.s4 1983009808
        %v5780 = vunpack.c.0.s8 %v5779
        %v5781 = vlaneseq
        %v5782 = vshrl.u32 %v5781, 7
        %v5783 = vsub.s32 %v5780, %v5782
        %v5784 = vrot.slane %v5776, %v5783
        %v5786 = vunpack.c.l.s4 1983009808
        %v5787 = vunpack.c.0.s8 %v5786
        %v5788 = vlaneseq
        %v5789 = vshrl.u32 %v5788, 7
        %v5790 = vsub.s32 %v5787, %v5789
        %v5791 = vrot.slane %v5777, %v5790
        %v5792 = vcombine.low %v3709, %v3715
        %v5793 = vcombine.high %v3709, %v3715
        %v5795 = vunpack.c.l.s4 1983009808
        %v5796 = vunpack.c.0.s8 %v5795
        %v5797 = vlaneseq
        %v5798 = vshrl.u32 %v5797, 7
        %v5799 = vsub.s32 %v5796, %v5798
        %v5800 = vrot.slane %v5792, %v5799
        %v5802 = vunpack.c.l.s4 1983009808
        %v5803 = vunpack.c.0.s8 %v5802
        %v5804 = vlaneseq
        %v5805 = vshrl.u32 %v5804, 7
        %v5806 = vsub.s32 %v5803, %v5805
        %v5807 = vrot.slane %v5793, %v5806
        %v5808 = vcombine.low %v3712, %v3718
        %v5809 = vcombine.high %v3712, %v3718
        %v5811 = vunpack.c.l.s4 1983009808
        %v5812 = vunpack.c.0.s8 %v5811
        %v5813 = vlaneseq
        %v5814 = vshrl.u32 %v5813, 7
        %v5815 = vsub.s32 %v5812, %v5814
        %v5816 = vrot.slane %v5808, %v5815
        %v5818 = vunpack.c.l.s4 1983009808
        %v5819 = vunpack.c.0.s8 %v5818
        %v5820 = vlaneseq
        %v5821 = vshrl.u32 %v5820, 7
        %v5822 = vsub.s32 %v5819, %v5821
        %v5823 = vrot.slane %v5809, %v5822
        %v5824 = vcombine.low %v5768, %v5784
        %v5825 = vcombine.high %v5768, %v5784
        %v5827 = vunpack.c.l.s4 1934713408
        %v5828 = vunpack.c.0.s8 %v5827
        %v5829 = vlaneseq
        %v5830 = vshrl.u32 %v5829, 7
        %v5831 = vsub.s32 %v5828, %v5830
        %v5832 = vrot.slane %v5824, %v5831
        %v5834 = vunpack.c.l.s4 1934713408
        %v5835 = vunpack.c.0.s8 %v5834
        %v5836 = vlaneseq
        %v5837 = vshrl.u32 %v5836, 7
        %v5838 = vsub.s32 %v5835, %v5837
        %v5839 = vrot.slane %v5825, %v5838
        %v5840 = vcombine.low %v5775, %v5791
        %v5841 = vcombine.high %v5775, %v5791
        %v5843 = vunpack.c.l.s4 1934713408
        %v5844 = vunpack.c.0.s8 %v5843
        %v5845 = vlaneseq
        %v5846 = vshrl.u32 %v5845, 7
        %v5847 = vsub.s32 %v5844, %v5846
        %v5848 = vrot.slane %v5840, %v5847
        %v5850 = vunpack.c.l.s4 1934713408
        %v5851 = vunpack.c.0.s8 %v5850
        %v5852 = vlaneseq
        %v5853 = vshrl.u32 %v5852, 7
        %v5854 = vsub.s32 %v5851, %v5853
        %v5855 = vrot.slane %v5841, %v5854
        %v5856 = vcombine.low %v5800, %v5816
        %v5857 = vcombine.high %v5800, %v5816
        %v5859 = vunpack.c.l.s4 1934713408
        %v5860 = vunpack.c.0.s8 %v5859
        %v5861 = vlaneseq
        %v5862 = vshrl.u32 %v5861, 7
        %v5863 = vsub.s32 %v5860, %v5862
        %v5864 = vrot.slane %v5856, %v5863
        %v5866 = vunpack.c.l.s4 1934713408
        %v5867 = vunpack.c.0.s8 %v5866
        %v5868 = vlaneseq
        %v5869 = vshrl.u32 %v5868, 7
        %v5870 = vsub.s32 %v5867, %v5869
        %v5871 = vrot.slane %v5857, %v5870
        %v5872 = vcombine.low %v5807, %v5823
        %v5873 = vcombine.high %v5807, %v5823
        %v5875 = vunpack.c.l.s4 1934713408
        %v5876 = vunpack.c.0.s8 %v5875
        %v5877 = vlaneseq
        %v5878 = vshrl.u32 %v5877, 7
        %v5879 = vsub.s32 %v5876, %v5878
        %v5880 = vrot.slane %v5872, %v5879
        %v5882 = vunpack.c.l.s4 1934713408
        %v5883 = vunpack.c.0.s8 %v5882
        %v5884 = vlaneseq
        %v5885 = vshrl.u32 %v5884, 7
        %v5886 = vsub.s32 %v5883, %v5885
        %v5887 = vrot.slane %v5873, %v5886
        %v5888 = vcombine.low %v5832, %v5864
        %v5889 = vcombine.high %v5832, %v5864
        %v5890 = vcombine.low %v5839, %v5871
        %v5891 = vcombine.high %v5839, %v5871
        %v5892 = vcombine.low %v5848, %v5880
        %v5893 = vcombine.high %v5848, %v5880
        %v5894 = vcombine.low %v5855, %v5887
        %v5895 = vcombine.high %v5855, %v5887
        %v5896 = vsel %vm2955, %v3848, 0.0
        %5897 = vadd.xlane.f32.xlu0 %v5896
        %v5898 = vpop.xlane.xlu0 %5897
        %v5899 = vsel %vm2955, %v3984, 0.0
        %5900 = vadd.xlane.f32.xlu0 %v5899
        %v5901 = vpop.xlane.xlu0 %5900
        %v5902 = vsel %vm2955, %v4120, 0.0
        %5903 = vadd.xlane.f32.xlu0 %v5902
        %v5904 = vpop.xlane.xlu0 %5903
        %v5905 = vsel %vm2955, %v4256, 0.0
        %5906 = vadd.xlane.f32.xlu0 %v5905
        %v5907 = vpop.xlane.xlu0 %5906
        %v5908 = vsel %vm2955, %v4392, 0.0
        %5909 = vadd.xlane.f32.xlu0 %v5908
        %v5910 = vpop.xlane.xlu0 %5909
        %v5911 = vsel %vm2955, %v4528, 0.0
        %5912 = vadd.xlane.f32.xlu0 %v5911
        %v5913 = vpop.xlane.xlu0 %5912
        %v5914 = vsel %vm2955, %v4664, 0.0
        %5915 = vadd.xlane.f32.xlu0 %v5914
        %v5916 = vpop.xlane.xlu0 %5915
        %v5917 = vsel %vm2955, %v4800, 0.0
        %5918 = vadd.xlane.f32.xlu0 %v5917
        %v5919 = vpop.xlane.xlu0 %5918
        %v5920 = vsel %vm2955, %v4936, 0.0
        %5921 = vadd.xlane.f32.xlu0 %v5920
        %v5922 = vpop.xlane.xlu0 %5921
        %v5923 = vsel %vm2955, %v5072, 0.0
        %5924 = vadd.xlane.f32.xlu0 %v5923
        %v5925 = vpop.xlane.xlu0 %5924
        %v5926 = vsel %vm2955, %v5208, 0.0
        %5927 = vadd.xlane.f32.xlu0 %v5926
        %v5928 = vpop.xlane.xlu0 %5927
        %v5929 = vsel %vm2955, %v5344, 0.0
        %5930 = vadd.xlane.f32.xlu0 %v5929
        %v5931 = vpop.xlane.xlu0 %5930
        %v5932 = vsel %vm2955, %v5480, 0.0
        %5933 = vadd.xlane.f32.xlu0 %v5932
        %v5934 = vpop.xlane.xlu0 %5933
        %v5935 = vsel %vm2955, %v5616, 0.0
        %5936 = vadd.xlane.f32.xlu0 %v5935
        %v5937 = vpop.xlane.xlu0 %5936
        %v5938 = vsel %vm2955, %v5752, 0.0
        %5939 = vadd.xlane.f32.xlu0 %v5938
        %v5940 = vpop.xlane.xlu0 %5939
        %v5941 = vsel %vm2955, %v5888, 0.0
        %5942 = vadd.xlane.f32.xlu0 %v5941
        %v5943 = vpop.xlane.xlu0 %5942
        %v5944 = vsel %vm2955, %v3849, 0.0
        %5945 = vadd.xlane.f32.xlu0 %v5944
        %v5946 = vpop.xlane.xlu0 %5945
        %v5947 = vsel %vm2955, %v3985, 0.0
        %5948 = vadd.xlane.f32.xlu0 %v5947
        %v5949 = vpop.xlane.xlu0 %5948
        %v5950 = vsel %vm2955, %v4121, 0.0
        %5951 = vadd.xlane.f32.xlu0 %v5950
        %v5952 = vpop.xlane.xlu0 %5951
        %v5953 = vsel %vm2955, %v4257, 0.0
        %5954 = vadd.xlane.f32.xlu0 %v5953
        %v5955 = vpop.xlane.xlu0 %5954
        %v5956 = vsel %vm2955, %v4393, 0.0
        %5957 = vadd.xlane.f32.xlu0 %v5956
        %v5958 = vpop.xlane.xlu0 %5957
        %v5959 = vsel %vm2955, %v4529, 0.0
        %5960 = vadd.xlane.f32.xlu0 %v5959
        %v5961 = vpop.xlane.xlu0 %5960
        %v5962 = vsel %vm2955, %v4665, 0.0
        %5963 = vadd.xlane.f32.xlu0 %v5962
        %v5964 = vpop.xlane.xlu0 %5963
        %v5965 = vsel %vm2955, %v4801, 0.0
        %5966 = vadd.xlane.f32.xlu0 %v5965
        %v5967 = vpop.xlane.xlu0 %5966
        %v5968 = vsel %vm2955, %v4937, 0.0
        %5969 = vadd.xlane.f32.xlu0 %v5968
        %v5970 = vpop.xlane.xlu0 %5969
        %v5971 = vsel %vm2955, %v5073, 0.0
        %5972 = vadd.xlane.f32.xlu0 %v5971
        %v5973 = vpop.xlane.xlu0 %5972
        %v5974 = vsel %vm2955, %v5209, 0.0
        %5975 = vadd.xlane.f32.xlu0 %v5974
        %v5976 = vpop.xlane.xlu0 %5975
        %v5977 = vsel %vm2955, %v5345, 0.0
        %5978 = vadd.xlane.f32.xlu0 %v5977
        %v5979 = vpop.xlane.xlu0 %5978
        %v5980 = vsel %vm2955, %v5481, 0.0
        %5981 = vadd.xlane.f32.xlu0 %v5980
        %v5982 = vpop.xlane.xlu0 %5981
        %v5983 = vsel %vm2955, %v5617, 0.0
        %5984 = vadd.xlane.f32.xlu0 %v5983
        %v5985 = vpop.xlane.xlu0 %5984
        %v5986 = vsel %vm2955, %v5753, 0.0
        %5987 = vadd.xlane.f32.xlu0 %v5986
        %v5988 = vpop.xlane.xlu0 %5987
        %v5989 = vsel %vm2955, %v5889, 0.0
        %5990 = vadd.xlane.f32.xlu0 %v5989
        %v5991 = vpop.xlane.xlu0 %5990
        %v5992 = vsel %vm2955, %v3850, 0.0
        %5993 = vadd.xlane.f32.xlu0 %v5992
        %v5994 = vpop.xlane.xlu0 %5993
        %v5995 = vsel %vm2955, %v3986, 0.0
        %5996 = vadd.xlane.f32.xlu0 %v5995
        %v5997 = vpop.xlane.xlu0 %5996
        %v5998 = vsel %vm2955, %v4122, 0.0
        %5999 = vadd.xlane.f32.xlu0 %v5998
        %v6000 = vpop.xlane.xlu0 %5999
        %v6001 = vsel %vm2955, %v4258, 0.0
        %6002 = vadd.xlane.f32.xlu0 %v6001
        %v6003 = vpop.xlane.xlu0 %6002
        %v6004 = vsel %vm2955, %v4394, 0.0
        %6005 = vadd.xlane.f32.xlu0 %v6004
        %v6006 = vpop.xlane.xlu0 %6005
        %v6007 = vsel %vm2955, %v4530, 0.0
        %6008 = vadd.xlane.f32.xlu0 %v6007
        %v6009 = vpop.xlane.xlu0 %6008
        %v6010 = vsel %vm2955, %v4666, 0.0
        %6011 = vadd.xlane.f32.xlu0 %v6010
        %v6012 = vpop.xlane.xlu0 %6011
        %v6013 = vsel %vm2955, %v4802, 0.0
        %6014 = vadd.xlane.f32.xlu0 %v6013
        %v6015 = vpop.xlane.xlu0 %6014
        %v6016 = vsel %vm2955, %v4938, 0.0
        %6017 = vadd.xlane.f32.xlu0 %v6016
        %v6018 = vpop.xlane.xlu0 %6017
        %v6019 = vsel %vm2955, %v5074, 0.0
        %6020 = vadd.xlane.f32.xlu0 %v6019
        %v6021 = vpop.xlane.xlu0 %6020
        %v6022 = vsel %vm2955, %v5210, 0.0
        %6023 = vadd.xlane.f32.xlu0 %v6022
        %v6024 = vpop.xlane.xlu0 %6023
        %v6025 = vsel %vm2955, %v5346, 0.0
        %6026 = vadd.xlane.f32.xlu0 %v6025
        %v6027 = vpop.xlane.xlu0 %6026
        %v6028 = vsel %vm2955, %v5482, 0.0
        %6029 = vadd.xlane.f32.xlu0 %v6028
        %v6030 = vpop.xlane.xlu0 %6029
        %v6031 = vsel %vm2955, %v5618, 0.0
        %6032 = vadd.xlane.f32.xlu0 %v6031
        %v6033 = vpop.xlane.xlu0 %6032
        %v6034 = vsel %vm2955, %v5754, 0.0
        %6035 = vadd.xlane.f32.xlu0 %v6034
        %v6036 = vpop.xlane.xlu0 %6035
        %v6037 = vsel %vm2955, %v5890, 0.0
        %6038 = vadd.xlane.f32.xlu0 %v6037
        %v6039 = vpop.xlane.xlu0 %6038
        %v6040 = vsel %vm2955, %v3851, 0.0
        %6041 = vadd.xlane.f32.xlu0 %v6040
        %v6042 = vpop.xlane.xlu0 %6041
        %v6043 = vsel %vm2955, %v3987, 0.0
        %6044 = vadd.xlane.f32.xlu0 %v6043
        %v6045 = vpop.xlane.xlu0 %6044
        %v6046 = vsel %vm2955, %v4123, 0.0
        %6047 = vadd.xlane.f32.xlu0 %v6046
        %v6048 = vpop.xlane.xlu0 %6047
        %v6049 = vsel %vm2955, %v4259, 0.0
        %6050 = vadd.xlane.f32.xlu0 %v6049
        %v6051 = vpop.xlane.xlu0 %6050
        %v6052 = vsel %vm2955, %v4395, 0.0
        %6053 = vadd.xlane.f32.xlu0 %v6052
        %v6054 = vpop.xlane.xlu0 %6053
        %v6055 = vsel %vm2955, %v4531, 0.0
        %6056 = vadd.xlane.f32.xlu0 %v6055
        %v6057 = vpop.xlane.xlu0 %6056
        %v6058 = vsel %vm2955, %v4667, 0.0
        %6059 = vadd.xlane.f32.xlu0 %v6058
        %v6060 = vpop.xlane.xlu0 %6059
        %v6061 = vsel %vm2955, %v4803, 0.0
        %6062 = vadd.xlane.f32.xlu0 %v6061
        %v6063 = vpop.xlane.xlu0 %6062
        %v6064 = vsel %vm2955, %v4939, 0.0
        %6065 = vadd.xlane.f32.xlu0 %v6064
        %v6066 = vpop.xlane.xlu0 %6065
        %v6067 = vsel %vm2955, %v5075, 0.0
        %6068 = vadd.xlane.f32.xlu0 %v6067
        %v6069 = vpop.xlane.xlu0 %6068
        %v6070 = vsel %vm2955, %v5211, 0.0
        %6071 = vadd.xlane.f32.xlu0 %v6070
        %v6072 = vpop.xlane.xlu0 %6071
        %v6073 = vsel %vm2955, %v5347, 0.0
        %6074 = vadd.xlane.f32.xlu0 %v6073
        %v6075 = vpop.xlane.xlu0 %6074
        %v6076 = vsel %vm2955, %v5483, 0.0
        %6077 = vadd.xlane.f32.xlu0 %v6076
        %v6078 = vpop.xlane.xlu0 %6077
        %v6079 = vsel %vm2955, %v5619, 0.0
        %6080 = vadd.xlane.f32.xlu0 %v6079
        %v6081 = vpop.xlane.xlu0 %6080
        %v6082 = vsel %vm2955, %v5755, 0.0
        %6083 = vadd.xlane.f32.xlu0 %v6082
        %v6084 = vpop.xlane.xlu0 %6083
        %v6085 = vsel %vm2955, %v5891, 0.0
        %6086 = vadd.xlane.f32.xlu0 %v6085
        %v6087 = vpop.xlane.xlu0 %6086
        %v6088 = vsel %vm2955, %v3852, 0.0
        %6089 = vadd.xlane.f32.xlu0 %v6088
        %v6090 = vpop.xlane.xlu0 %6089
        %v6091 = vsel %vm2955, %v3988, 0.0
        %6092 = vadd.xlane.f32.xlu0 %v6091
        %v6093 = vpop.xlane.xlu0 %6092
        %v6094 = vsel %vm2955, %v4124, 0.0
        %6095 = vadd.xlane.f32.xlu0 %v6094
        %v6096 = vpop.xlane.xlu0 %6095
        %v6097 = vsel %vm2955, %v4260, 0.0
        %6098 = vadd.xlane.f32.xlu0 %v6097
        %v6099 = vpop.xlane.xlu0 %6098
        %v6100 = vsel %vm2955, %v4396, 0.0
        %6101 = vadd.xlane.f32.xlu0 %v6100
        %v6102 = vpop.xlane.xlu0 %6101
        %v6103 = vsel %vm2955, %v4532, 0.0
        %6104 = vadd.xlane.f32.xlu0 %v6103
        %v6105 = vpop.xlane.xlu0 %6104
        %v6106 = vsel %vm2955, %v4668, 0.0
        %6107 = vadd.xlane.f32.xlu0 %v6106
        %v6108 = vpop.xlane.xlu0 %6107
        %v6109 = vsel %vm2955, %v4804, 0.0
        %6110 = vadd.xlane.f32.xlu0 %v6109
        %v6111 = vpop.xlane.xlu0 %6110
        %v6112 = vsel %vm2955, %v4940, 0.0
        %6113 = vadd.xlane.f32.xlu0 %v6112
        %v6114 = vpop.xlane.xlu0 %6113
        %v6115 = vsel %vm2955, %v5076, 0.0
        %6116 = vadd.xlane.f32.xlu0 %v6115
        %v6117 = vpop.xlane.xlu0 %6116
        %v6118 = vsel %vm2955, %v5212, 0.0
        %6119 = vadd.xlane.f32.xlu0 %v6118
        %v6120 = vpop.xlane.xlu0 %6119
        %v6121 = vsel %vm2955, %v5348, 0.0
        %6122 = vadd.xlane.f32.xlu0 %v6121
        %v6123 = vpop.xlane.xlu0 %6122
        %v6124 = vsel %vm2955, %v5484, 0.0
        %6125 = vadd.xlane.f32.xlu0 %v6124
        %v6126 = vpop.xlane.xlu0 %6125
        %v6127 = vsel %vm2955, %v5620, 0.0
        %6128 = vadd.xlane.f32.xlu0 %v6127
        %v6129 = vpop.xlane.xlu0 %6128
        %v6130 = vsel %vm2955, %v5756, 0.0
        %6131 = vadd.xlane.f32.xlu0 %v6130
        %v6132 = vpop.xlane.xlu0 %6131
        %v6133 = vsel %vm2955, %v5892, 0.0
        %6134 = vadd.xlane.f32.xlu0 %v6133
        %v6135 = vpop.xlane.xlu0 %6134
        %v6136 = vsel %vm2955, %v3853, 0.0
        %6137 = vadd.xlane.f32.xlu0 %v6136
        %v6138 = vpop.xlane.xlu0 %6137
        %v6139 = vsel %vm2955, %v3989, 0.0
        %6140 = vadd.xlane.f32.xlu0 %v6139
        %v6141 = vpop.xlane.xlu0 %6140
        %v6142 = vsel %vm2955, %v4125, 0.0
        %6143 = vadd.xlane.f32.xlu0 %v6142
        %v6144 = vpop.xlane.xlu0 %6143
        %v6145 = vsel %vm2955, %v4261, 0.0
        %6146 = vadd.xlane.f32.xlu0 %v6145
        %v6147 = vpop.xlane.xlu0 %6146
        %v6148 = vsel %vm2955, %v4397, 0.0
        %6149 = vadd.xlane.f32.xlu0 %v6148
        %v6150 = vpop.xlane.xlu0 %6149
        %v6151 = vsel %vm2955, %v4533, 0.0
        %6152 = vadd.xlane.f32.xlu0 %v6151
        %v6153 = vpop.xlane.xlu0 %6152
        %v6154 = vsel %vm2955, %v4669, 0.0
        %6155 = vadd.xlane.f32.xlu0 %v6154
        %v6156 = vpop.xlane.xlu0 %6155
        %v6157 = vsel %vm2955, %v4805, 0.0
        %6158 = vadd.xlane.f32.xlu0 %v6157
        %v6159 = vpop.xlane.xlu0 %6158
        %v6160 = vsel %vm2955, %v4941, 0.0
        %6161 = vadd.xlane.f32.xlu0 %v6160
        %v6162 = vpop.xlane.xlu0 %6161
        %v6163 = vsel %vm2955, %v5077, 0.0
        %6164 = vadd.xlane.f32.xlu0 %v6163
        %v6165 = vpop.xlane.xlu0 %6164
        %v6166 = vsel %vm2955, %v5213, 0.0
        %6167 = vadd.xlane.f32.xlu0 %v6166
        %v6168 = vpop.xlane.xlu0 %6167
        %v6169 = vsel %vm2955, %v5349, 0.0
        %6170 = vadd.xlane.f32.xlu0 %v6169
        %v6171 = vpop.xlane.xlu0 %6170
        %v6172 = vsel %vm2955, %v5485, 0.0
        %6173 = vadd.xlane.f32.xlu0 %v6172
        %v6174 = vpop.xlane.xlu0 %6173
        %v6175 = vsel %vm2955, %v5621, 0.0
        %6176 = vadd.xlane.f32.xlu0 %v6175
        %v6177 = vpop.xlane.xlu0 %6176
        %v6178 = vsel %vm2955, %v5757, 0.0
        %6179 = vadd.xlane.f32.xlu0 %v6178
        %v6180 = vpop.xlane.xlu0 %6179
        %v6181 = vsel %vm2955, %v5893, 0.0
        %6182 = vadd.xlane.f32.xlu0 %v6181
        %v6183 = vpop.xlane.xlu0 %6182
        %v6184 = vsel %vm2955, %v3854, 0.0
        %6185 = vadd.xlane.f32.xlu0 %v6184
        %v6186 = vpop.xlane.xlu0 %6185
        %v6187 = vsel %vm2955, %v3990, 0.0
        %6188 = vadd.xlane.f32.xlu0 %v6187
        %v6189 = vpop.xlane.xlu0 %6188
        %v6190 = vsel %vm2955, %v4126, 0.0
        %6191 = vadd.xlane.f32.xlu0 %v6190
        %v6192 = vpop.xlane.xlu0 %6191
        %v6193 = vsel %vm2955, %v4262, 0.0
        %6194 = vadd.xlane.f32.xlu0 %v6193
        %v6195 = vpop.xlane.xlu0 %6194
        %v6196 = vsel %vm2955, %v4398, 0.0
        %6197 = vadd.xlane.f32.xlu0 %v6196
        %v6198 = vpop.xlane.xlu0 %6197
        %v6199 = vsel %vm2955, %v4534, 0.0
        %6200 = vadd.xlane.f32.xlu0 %v6199
        %v6201 = vpop.xlane.xlu0 %6200
        %v6202 = vsel %vm2955, %v4670, 0.0
        %6203 = vadd.xlane.f32.xlu0 %v6202
        %v6204 = vpop.xlane.xlu0 %6203
        %v6205 = vsel %vm2955, %v4806, 0.0
        %6206 = vadd.xlane.f32.xlu0 %v6205
        %v6207 = vpop.xlane.xlu0 %6206
        %v6208 = vsel %vm2955, %v4942, 0.0
        %6209 = vadd.xlane.f32.xlu0 %v6208
        %v6210 = vpop.xlane.xlu0 %6209
        %v6211 = vsel %vm2955, %v5078, 0.0
        %6212 = vadd.xlane.f32.xlu0 %v6211
        %v6213 = vpop.xlane.xlu0 %6212
        %v6214 = vsel %vm2955, %v5214, 0.0
        %6215 = vadd.xlane.f32.xlu0 %v6214
        %v6216 = vpop.xlane.xlu0 %6215
        %v6217 = vsel %vm2955, %v5350, 0.0
        %6218 = vadd.xlane.f32.xlu0 %v6217
        %v6219 = vpop.xlane.xlu0 %6218
        %v6220 = vsel %vm2955, %v5486, 0.0
        %6221 = vadd.xlane.f32.xlu0 %v6220
        %v6222 = vpop.xlane.xlu0 %6221
        %v6223 = vsel %vm2955, %v5622, 0.0
        %6224 = vadd.xlane.f32.xlu0 %v6223
        %v6225 = vpop.xlane.xlu0 %6224
        %v6226 = vsel %vm2955, %v5758, 0.0
        %6227 = vadd.xlane.f32.xlu0 %v6226
        %v6228 = vpop.xlane.xlu0 %6227
        %v6229 = vsel %vm2955, %v5894, 0.0
        %6230 = vadd.xlane.f32.xlu0 %v6229
        %v6231 = vpop.xlane.xlu0 %6230
        %v6232 = vsel %vm2955, %v3855, 0.0
        %6233 = vadd.xlane.f32.xlu0 %v6232
        %v6234 = vpop.xlane.xlu0 %6233
        %v6235 = vsel %vm2955, %v3991, 0.0
        %6236 = vadd.xlane.f32.xlu0 %v6235
        %v6237 = vpop.xlane.xlu0 %6236
        %v6238 = vsel %vm2955, %v4127, 0.0
        %6239 = vadd.xlane.f32.xlu0 %v6238
        %v6240 = vpop.xlane.xlu0 %6239
        %v6241 = vsel %vm2955, %v4263, 0.0
        %6242 = vadd.xlane.f32.xlu0 %v6241
        %v6243 = vpop.xlane.xlu0 %6242
        %v6244 = vsel %vm2955, %v4399, 0.0
        %6245 = vadd.xlane.f32.xlu0 %v6244
        %v6246 = vpop.xlane.xlu0 %6245
        %v6247 = vsel %vm2955, %v4535, 0.0
        %6248 = vadd.xlane.f32.xlu0 %v6247
        %v6249 = vpop.xlane.xlu0 %6248
        %v6250 = vsel %vm2955, %v4671, 0.0
        %6251 = vadd.xlane.f32.xlu0 %v6250
        %v6252 = vpop.xlane.xlu0 %6251
        %v6253 = vsel %vm2955, %v4807, 0.0
        %6254 = vadd.xlane.f32.xlu0 %v6253
        %v6255 = vpop.xlane.xlu0 %6254
        %v6256 = vsel %vm2955, %v4943, 0.0
        %6257 = vadd.xlane.f32.xlu0 %v6256
        %v6258 = vpop.xlane.xlu0 %6257
        %v6259 = vsel %vm2955, %v5079, 0.0
        %6260 = vadd.xlane.f32.xlu0 %v6259
        %v6261 = vpop.xlane.xlu0 %6260
        %v6262 = vsel %vm2955, %v5215, 0.0
        %6263 = vadd.xlane.f32.xlu0 %v6262
        %v6264 = vpop.xlane.xlu0 %6263
        %v6265 = vsel %vm2955, %v5351, 0.0
        %6266 = vadd.xlane.f32.xlu0 %v6265
        %v6267 = vpop.xlane.xlu0 %6266
        %v6268 = vsel %vm2955, %v5487, 0.0
        %6269 = vadd.xlane.f32.xlu0 %v6268
        %v6270 = vpop.xlane.xlu0 %6269
        %v6271 = vsel %vm2955, %v5623, 0.0
        %6272 = vadd.xlane.f32.xlu0 %v6271
        %v6273 = vpop.xlane.xlu0 %6272
        %v6274 = vsel %vm2955, %v5759, 0.0
        %6275 = vadd.xlane.f32.xlu0 %v6274
        %v6276 = vpop.xlane.xlu0 %6275
        %v6277 = vsel %vm2955, %v5895, 0.0
        %6278 = vadd.xlane.f32.xlu0 %v6277
        %v6279 = vpop.xlane.xlu0 %6278
        %v6280 = vrcp.pop %v5898
        %v6281 = vrcp.pop %v5901
        %v6282 = vrcp.pop %v5904
        %v6283 = vrcp.pop %v5907
        %v6284 = vrcp.pop %v5910
        %v6285 = vrcp.pop %v5913
        %v6286 = vrcp.pop %v5916
        %v6287 = vrcp.pop %v5919
        %v6288 = vrcp.pop %v5922
        %v6289 = vrcp.pop %v5925
        %v6290 = vrcp.pop %v5928
        %v6291 = vrcp.pop %v5931
        %v6292 = vrcp.pop %v5934
        %v6293 = vrcp.pop %v5937
        %v6294 = vrcp.pop %v5940
        %v6295 = vrcp.pop %v5943
        %v6296 = vrcp.pop %v5946
        %v6297 = vrcp.pop %v5949
        %v6298 = vrcp.pop %v5952
        %v6299 = vrcp.pop %v5955
        %v6300 = vrcp.pop %v5958
        %v6301 = vrcp.pop %v5961
        %v6302 = vrcp.pop %v5964
        %v6303 = vrcp.pop %v5967
        %v6304 = vrcp.pop %v5970
        %v6305 = vrcp.pop %v5973
        %v6306 = vrcp.pop %v5976
        %v6307 = vrcp.pop %v5979
        %v6308 = vrcp.pop %v5982
        %v6309 = vrcp.pop %v5985
        %v6310 = vrcp.pop %v5988
        %v6311 = vrcp.pop %v5991
        %v6312 = vrcp.pop %v5994
        %v6313 = vrcp.pop %v5997
        %v6314 = vrcp.pop %v6000
        %v6315 = vrcp.pop %v6003
        %v6316 = vrcp.pop %v6006
        %v6317 = vrcp.pop %v6009
        %v6318 = vrcp.pop %v6012
        %v6319 = vrcp.pop %v6015
        %v6320 = vrcp.pop %v6018
        %v6321 = vrcp.pop %v6021
        %v6322 = vrcp.pop %v6024
        %v6323 = vrcp.pop %v6027
        %v6324 = vrcp.pop %v6030
        %v6325 = vrcp.pop %v6033
        %v6326 = vrcp.pop %v6036
        %v6327 = vrcp.pop %v6039
        %v6328 = vrcp.pop %v6042
        %v6329 = vrcp.pop %v6045
        %v6330 = vrcp.pop %v6048
        %v6331 = vrcp.pop %v6051
        %v6332 = vrcp.pop %v6054
        %v6333 = vrcp.pop %v6057
        %v6334 = vrcp.pop %v6060
        %v6335 = vrcp.pop %v6063
        %v6336 = vrcp.pop %v6066
        %v6337 = vrcp.pop %v6069
        %v6338 = vrcp.pop %v6072
        %v6339 = vrcp.pop %v6075
        %v6340 = vrcp.pop %v6078
        %v6341 = vrcp.pop %v6081
        %v6342 = vrcp.pop %v6084
        %v6343 = vrcp.pop %v6087
        %v6344 = vrcp.pop %v6090
        %v6345 = vrcp.pop %v6093
        %v6346 = vrcp.pop %v6096
        %v6347 = vrcp.pop %v6099
        %v6348 = vrcp.pop %v6102
        %v6349 = vrcp.pop %v6105
        %v6350 = vrcp.pop %v6108
        %v6351 = vrcp.pop %v6111
        %v6352 = vrcp.pop %v6114
        %v6353 = vrcp.pop %v6117
        %v6354 = vrcp.pop %v6120
        %v6355 = vrcp.pop %v6123
        %v6356 = vrcp.pop %v6126
        %v6357 = vrcp.pop %v6129
        %v6358 = vrcp.pop %v6132
        %v6359 = vrcp.pop %v6135
        %v6360 = vrcp.pop %v6138
        %v6361 = vrcp.pop %v6141
        %v6362 = vrcp.pop %v6144
        %v6363 = vrcp.pop %v6147
        %v6364 = vrcp.pop %v6150
        %v6365 = vrcp.pop %v6153
        %v6366 = vrcp.pop %v6156
        %v6367 = vrcp.pop %v6159
        %v6368 = vrcp.pop %v6162
        %v6369 = vrcp.pop %v6165
        %v6370 = vrcp.pop %v6168
        %v6371 = vrcp.pop %v6171
        %v6372 = vrcp.pop %v6174
        %v6373 = vrcp.pop %v6177
        %v6374 = vrcp.pop %v6180
        %v6375 = vrcp.pop %v6183
        %v6376 = vrcp.pop %v6186
        %v6377 = vrcp.pop %v6189
        %v6378 = vrcp.pop %v6192
        %v6379 = vrcp.pop %v6195
        %v6380 = vrcp.pop %v6198
        %v6381 = vrcp.pop %v6201
        %v6382 = vrcp.pop %v6204
        %v6383 = vrcp.pop %v6207
        %v6384 = vrcp.pop %v6210
        %v6385 = vrcp.pop %v6213
        %v6386 = vrcp.pop %v6216
        %v6387 = vrcp.pop %v6219
        %v6388 = vrcp.pop %v6222
        %v6389 = vrcp.pop %v6225
        %v6390 = vrcp.pop %v6228
        %v6391 = vrcp.pop %v6231
        %v6392 = vrcp.pop %v6234
        %v6393 = vrcp.pop %v6237
        %v6394 = vrcp.pop %v6240
        %v6395 = vrcp.pop %v6243
        %v6396 = vrcp.pop %v6246
        %v6397 = vrcp.pop %v6249
        %v6398 = vrcp.pop %v6252
        %v6399 = vrcp.pop %v6255
        %v6400 = vrcp.pop %v6258
        %v6401 = vrcp.pop %v6261
        %v6402 = vrcp.pop %v6264
        %v6403 = vrcp.pop %v6267
        %v6404 = vrcp.pop %v6270
        %v6405 = vrcp.pop %v6273
        %v6406 = vrcp.pop %v6276
        %v6407 = vrcp.pop %v6279
        %v6408 = vmul.f32 %v2958, %v6280
        %v6409 = vmul.f32 %v2961, %v6281
        %v6410 = vmul.f32 %v2964, %v6282
        %v6411 = vmul.f32 %v2967, %v6283
        %v6412 = vmul.f32 %v2970, %v6284
        %v6413 = vmul.f32 %v2973, %v6285
        %v6414 = vmul.f32 %v2976, %v6286
        %v6415 = vmul.f32 %v2979, %v6287
        %v6416 = vmul.f32 %v2982, %v6288
        %v6417 = vmul.f32 %v2985, %v6289
        %v6418 = vmul.f32 %v2988, %v6290
        %v6419 = vmul.f32 %v2991, %v6291
        %v6420 = vmul.f32 %v2994, %v6292
        %v6421 = vmul.f32 %v2997, %v6293
        %v6422 = vmul.f32 %v3000, %v6294
        %v6423 = vmul.f32 %v3003, %v6295
        %v6424 = vmul.f32 %v3006, %v6296
        %v6425 = vmul.f32 %v3009, %v6297
        %v6426 = vmul.f32 %v3012, %v6298
        %v6427 = vmul.f32 %v3015, %v6299
        %v6428 = vmul.f32 %v3018, %v6300
        %v6429 = vmul.f32 %v3021, %v6301
        %v6430 = vmul.f32 %v3024, %v6302
        %v6431 = vmul.f32 %v3027, %v6303
        %v6432 = vmul.f32 %v3030, %v6304
        %v6433 = vmul.f32 %v3033, %v6305
        %v6434 = vmul.f32 %v3036, %v6306
        %v6435 = vmul.f32 %v3039, %v6307
        %v6436 = vmul.f32 %v3042, %v6308
        %v6437 = vmul.f32 %v3045, %v6309
        %v6438 = vmul.f32 %v3048, %v6310
        %v6439 = vmul.f32 %v3051, %v6311
        %v6440 = vmul.f32 %v3054, %v6312
        %v6441 = vmul.f32 %v3057, %v6313
        %v6442 = vmul.f32 %v3060, %v6314
        %v6443 = vmul.f32 %v3063, %v6315
        %v6444 = vmul.f32 %v3066, %v6316
        %v6445 = vmul.f32 %v3069, %v6317
        %v6446 = vmul.f32 %v3072, %v6318
        %v6447 = vmul.f32 %v3075, %v6319
        %v6448 = vmul.f32 %v3078, %v6320
        %v6449 = vmul.f32 %v3081, %v6321
        %v6450 = vmul.f32 %v3084, %v6322
        %v6451 = vmul.f32 %v3087, %v6323
        %v6452 = vmul.f32 %v3090, %v6324
        %v6453 = vmul.f32 %v3093, %v6325
        %v6454 = vmul.f32 %v3096, %v6326
        %v6455 = vmul.f32 %v3099, %v6327
        %v6456 = vmul.f32 %v3102, %v6328
        %v6457 = vmul.f32 %v3105, %v6329
        %v6458 = vmul.f32 %v3108, %v6330
        %v6459 = vmul.f32 %v3111, %v6331
        %v6460 = vmul.f32 %v3114, %v6332
        %v6461 = vmul.f32 %v3117, %v6333
        %v6462 = vmul.f32 %v3120, %v6334
        %v6463 = vmul.f32 %v3123, %v6335
        %v6464 = vmul.f32 %v3126, %v6336
        %v6465 = vmul.f32 %v3129, %v6337
        %v6466 = vmul.f32 %v3132, %v6338
        %v6467 = vmul.f32 %v3135, %v6339
        %v6468 = vmul.f32 %v3138, %v6340
        %v6469 = vmul.f32 %v3141, %v6341
        %v6470 = vmul.f32 %v3144, %v6342
        %v6471 = vmul.f32 %v3147, %v6343
        %v6472 = vmul.f32 %v3150, %v6344
        %v6473 = vmul.f32 %v3153, %v6345
        %v6474 = vmul.f32 %v3156, %v6346
        %v6475 = vmul.f32 %v3159, %v6347
        %v6476 = vmul.f32 %v3162, %v6348
        %v6477 = vmul.f32 %v3165, %v6349
        %v6478 = vmul.f32 %v3168, %v6350
        %v6479 = vmul.f32 %v3171, %v6351
        %v6480 = vmul.f32 %v3174, %v6352
        %v6481 = vmul.f32 %v3177, %v6353
        %v6482 = vmul.f32 %v3180, %v6354
        %v6483 = vmul.f32 %v3183, %v6355
        %v6484 = vmul.f32 %v3186, %v6356
        %v6485 = vmul.f32 %v3189, %v6357
        %v6486 = vmul.f32 %v3192, %v6358
        %v6487 = vmul.f32 %v3195, %v6359
        %v6488 = vmul.f32 %v3198, %v6360
        %v6489 = vmul.f32 %v3201, %v6361
        %v6490 = vmul.f32 %v3204, %v6362
        %v6491 = vmul.f32 %v3207, %v6363
        %v6492 = vmul.f32 %v3210, %v6364
        %v6493 = vmul.f32 %v3213, %v6365
        %v6494 = vmul.f32 %v3216, %v6366
        %v6495 = vmul.f32 %v3219, %v6367
        %v6496 = vmul.f32 %v3222, %v6368
        %v6497 = vmul.f32 %v3225, %v6369
        %v6498 = vmul.f32 %v3228, %v6370
        %v6499 = vmul.f32 %v3231, %v6371
        %v6500 = vmul.f32 %v3234, %v6372
        %v6501 = vmul.f32 %v3237, %v6373
        %v6502 = vmul.f32 %v3240, %v6374
        %v6503 = vmul.f32 %v3243, %v6375
        %v6504 = vmul.f32 %v3246, %v6376
        %v6505 = vmul.f32 %v3249, %v6377
        %v6506 = vmul.f32 %v3252, %v6378
        %v6507 = vmul.f32 %v3255, %v6379
        %v6508 = vmul.f32 %v3258, %v6380
        %v6509 = vmul.f32 %v3261, %v6381
        %v6510 = vmul.f32 %v3264, %v6382
        %v6511 = vmul.f32 %v3267, %v6383
        %v6512 = vmul.f32 %v3270, %v6384
        %v6513 = vmul.f32 %v3273, %v6385
        %v6514 = vmul.f32 %v3276, %v6386
        %v6515 = vmul.f32 %v3279, %v6387
        %v6516 = vmul.f32 %v3282, %v6388
        %v6517 = vmul.f32 %v3285, %v6389
        %v6518 = vmul.f32 %v3288, %v6390
        %v6519 = vmul.f32 %v3291, %v6391
        %v6520 = vmul.f32 %v3294, %v6392
        %v6521 = vmul.f32 %v3297, %v6393
        %v6522 = vmul.f32 %v3300, %v6394
        %v6523 = vmul.f32 %v3303, %v6395
        %v6524 = vmul.f32 %v3306, %v6396
        %v6525 = vmul.f32 %v3309, %v6397
        %v6526 = vmul.f32 %v3312, %v6398
        %v6527 = vmul.f32 %v3315, %v6399
        %v6528 = vmul.f32 %v3318, %v6400
        %v6529 = vmul.f32 %v3321, %v6401
        %v6530 = vmul.f32 %v3324, %v6402
        %v6531 = vmul.f32 %v3327, %v6403
        %v6532 = vmul.f32 %v3330, %v6404
        %v6533 = vmul.f32 %v3333, %v6405
        %v6534 = vmul.f32 %v3336, %v6406
        %v6535 = vmul.f32 %v3339, %v6407
        %v6664 = vlaneseq
        %v6665 = vand.u32 %v6664, 127
        %v6666 = vlaneseq
        %v6667 = vshrl.u32 %v6666, 7
        %v6668 = vsub.s32 %v6665, %v6667
        %v6669 = vrot.slane %v6408, %v6668
        %v6670 = vadd.s32 %v6665, 4294967288
        %v6671 = vlaneseq
        %v6672 = vshrl.u32 %v6671, 7
        %v6673 = vsub.s32 %v6670, %v6672
        %v6674 = vrot.slane %v6409, %v6673
        %vm6675 = vcmask 130112
        %v6676 = vsel %vm6675, %v6674, %v6669
        %v6677 = vadd.s32 %v6665, 4294967280
        %v6678 = vlaneseq
        %v6679 = vshrl.u32 %v6678, 7
        %v6680 = vsub.s32 %v6677, %v6679
        %v6681 = vrot.slane %v6410, %v6680
        %vm6682 = vcmask 195712
        %v6683 = vsel %vm6682, %v6681, %v6676
        %v6684 = vadd.s32 %v6665, 4294967272
        %v6685 = vlaneseq
        %v6686 = vshrl.u32 %v6685, 7
        %v6687 = vsub.s32 %v6684, %v6686
        %v6688 = vrot.slane %v6411, %v6687
        %vm6689 = vcmask 261312
        %v6690 = vsel %vm6689, %v6688, %v6683
        %v6691 = vadd.s32 %v6665, 4294967264
        %v6692 = vlaneseq
        %v6693 = vshrl.u32 %v6692, 7
        %v6694 = vsub.s32 %v6691, %v6693
        %v6695 = vrot.slane %v6412, %v6694
        %vm6696 = vcmask 326912
        %v6697 = vsel %vm6696, %v6695, %v6690
        %v6698 = vadd.s32 %v6665, 4294967256
        %v6699 = vlaneseq
        %v6700 = vshrl.u32 %v6699, 7
        %v6701 = vsub.s32 %v6698, %v6700
        %v6702 = vrot.slane %v6413, %v6701
        %vm6703 = vcmask 392512
        %v6704 = vsel %vm6703, %v6702, %v6697
        %v6705 = vadd.s32 %v6665, 4294967248
        %v6706 = vlaneseq
        %v6707 = vshrl.u32 %v6706, 7
        %v6708 = vsub.s32 %v6705, %v6707
        %v6709 = vrot.slane %v6414, %v6708
        %vm6710 = vcmask 458112
        %v6711 = vsel %vm6710, %v6709, %v6704
        %v6712 = vadd.s32 %v6665, 4294967240
        %v6713 = vlaneseq
        %v6714 = vshrl.u32 %v6713, 7
        %v6715 = vsub.s32 %v6712, %v6714
        %v6716 = vrot.slane %v6415, %v6715
        %vm6717 = vcmask 523712
        %v6718 = vsel %vm6717, %v6716, %v6711
        %v6719 = vadd.s32 %v6665, 4294967232
        %v6720 = vlaneseq
        %v6721 = vshrl.u32 %v6720, 7
        %v6722 = vsub.s32 %v6719, %v6721
        %v6723 = vrot.slane %v6416, %v6722
        %vm6724 = vcmask 589312
        %v6725 = vsel %vm6724, %v6723, %v6718
        %v6726 = vadd.s32 %v6665, 4294967224
        %v6727 = vlaneseq
        %v6728 = vshrl.u32 %v6727, 7
        %v6729 = vsub.s32 %v6726, %v6728
        %v6730 = vrot.slane %v6417, %v6729
        %vm6731 = vcmask 654912
        %v6732 = vsel %vm6731, %v6730, %v6725
        %v6733 = vadd.s32 %v6665, 4294967216
        %v6734 = vlaneseq
        %v6735 = vshrl.u32 %v6734, 7
        %v6736 = vsub.s32 %v6733, %v6735
        %v6737 = vrot.slane %v6418, %v6736
        %vm6738 = vcmask 720512
        %v6739 = vsel %vm6738, %v6737, %v6732
        %v6740 = vadd.s32 %v6665, 4294967208
        %v6741 = vlaneseq
        %v6742 = vshrl.u32 %v6741, 7
        %v6743 = vsub.s32 %v6740, %v6742
        %v6744 = vrot.slane %v6419, %v6743
        %vm6745 = vcmask 786112
        %v6746 = vsel %vm6745, %v6744, %v6739
        %v6747 = vadd.s32 %v6665, 4294967200
        %v6748 = vlaneseq
        %v6749 = vshrl.u32 %v6748, 7
        %v6750 = vsub.s32 %v6747, %v6749
        %v6751 = vrot.slane %v6420, %v6750
        %vm6752 = vcmask 851712
        %v6753 = vsel %vm6752, %v6751, %v6746
        %v6754 = vadd.s32 %v6665, 4294967192
        %v6755 = vlaneseq
        %v6756 = vshrl.u32 %v6755, 7
        %v6757 = vsub.s32 %v6754, %v6756
        %v6758 = vrot.slane %v6421, %v6757
        %vm6759 = vcmask 917312
        %v6760 = vsel %vm6759, %v6758, %v6753
        %v6761 = vadd.s32 %v6665, 4294967184
        %v6762 = vlaneseq
        %v6763 = vshrl.u32 %v6762, 7
        %v6764 = vsub.s32 %v6761, %v6763
        %v6765 = vrot.slane %v6422, %v6764
        %vm6766 = vcmask 982912
        %v6767 = vsel %vm6766, %v6765, %v6760
        %v6768 = vadd.s32 %v6665, 4294967176
        %v6769 = vlaneseq
        %v6770 = vshrl.u32 %v6769, 7
        %v6771 = vsub.s32 %v6768, %v6770
        %v6772 = vrot.slane %v6423, %v6771
        %vm6773 = vcmask 1048512
        %v6774 = vsel %vm6773, %v6772, %v6767
        %v6775 = vlaneseq
        %v6776 = vshrl.u32 %v6775, 7
        %v6777 = vsub.s32 %v6665, %v6776
        %v6778 = vrot.slane %v6424, %v6777
        %v6779 = vlaneseq
        %v6780 = vshrl.u32 %v6779, 7
        %v6781 = vsub.s32 %v6670, %v6780
        %v6782 = vrot.slane %v6425, %v6781
        %v6783 = vsel %vm6675, %v6782, %v6778
        %v6784 = vlaneseq
        %v6785 = vshrl.u32 %v6784, 7
        %v6786 = vsub.s32 %v6677, %v6785
        %v6787 = vrot.slane %v6426, %v6786
        %v6788 = vsel %vm6682, %v6787, %v6783
        %v6789 = vlaneseq
        %v6790 = vshrl.u32 %v6789, 7
        %v6791 = vsub.s32 %v6684, %v6790
        %v6792 = vrot.slane %v6427, %v6791
        %v6793 = vsel %vm6689, %v6792, %v6788
        %v6794 = vlaneseq
        %v6795 = vshrl.u32 %v6794, 7
        %v6796 = vsub.s32 %v6691, %v6795
        %v6797 = vrot.slane %v6428, %v6796
        %v6798 = vsel %vm6696, %v6797, %v6793
        %v6799 = vlaneseq
        %v6800 = vshrl.u32 %v6799, 7
        %v6801 = vsub.s32 %v6698, %v6800
        %v6802 = vrot.slane %v6429, %v6801
        %v6803 = vsel %vm6703, %v6802, %v6798
        %v6804 = vlaneseq
        %v6805 = vshrl.u32 %v6804, 7
        %v6806 = vsub.s32 %v6705, %v6805
        %v6807 = vrot.slane %v6430, %v6806
        %v6808 = vsel %vm6710, %v6807, %v6803
        %v6809 = vlaneseq
        %v6810 = vshrl.u32 %v6809, 7
        %v6811 = vsub.s32 %v6712, %v6810
        %v6812 = vrot.slane %v6431, %v6811
        %v6813 = vsel %vm6717, %v6812, %v6808
        %v6814 = vlaneseq
        %v6815 = vshrl.u32 %v6814, 7
        %v6816 = vsub.s32 %v6719, %v6815
        %v6817 = vrot.slane %v6432, %v6816
        %v6818 = vsel %vm6724, %v6817, %v6813
        %v6819 = vlaneseq
        %v6820 = vshrl.u32 %v6819, 7
        %v6821 = vsub.s32 %v6726, %v6820
        %v6822 = vrot.slane %v6433, %v6821
        %v6823 = vsel %vm6731, %v6822, %v6818
        %v6824 = vlaneseq
        %v6825 = vshrl.u32 %v6824, 7
        %v6826 = vsub.s32 %v6733, %v6825
        %v6827 = vrot.slane %v6434, %v6826
        %v6828 = vsel %vm6738, %v6827, %v6823
        %v6829 = vlaneseq
        %v6830 = vshrl.u32 %v6829, 7
        %v6831 = vsub.s32 %v6740, %v6830
        %v6832 = vrot.slane %v6435, %v6831
        %v6833 = vsel %vm6745, %v6832, %v6828
        %v6834 = vlaneseq
        %v6835 = vshrl.u32 %v6834, 7
        %v6836 = vsub.s32 %v6747, %v6835
        %v6837 = vrot.slane %v6436, %v6836
        %v6838 = vsel %vm6752, %v6837, %v6833
        %v6839 = vlaneseq
        %v6840 = vshrl.u32 %v6839, 7
        %v6841 = vsub.s32 %v6754, %v6840
        %v6842 = vrot.slane %v6437, %v6841
        %v6843 = vsel %vm6759, %v6842, %v6838
        %v6844 = vlaneseq
        %v6845 = vshrl.u32 %v6844, 7
        %v6846 = vsub.s32 %v6761, %v6845
        %v6847 = vrot.slane %v6438, %v6846
        %v6848 = vsel %vm6766, %v6847, %v6843
        %v6849 = vlaneseq
        %v6850 = vshrl.u32 %v6849, 7
        %v6851 = vsub.s32 %v6768, %v6850
        %v6852 = vrot.slane %v6439, %v6851
        %v6853 = vsel %vm6773, %v6852, %v6848
        %v6854 = vlaneseq
        %v6855 = vshrl.u32 %v6854, 7
        %v6856 = vsub.s32 %v6665, %v6855
        %v6857 = vrot.slane %v6440, %v6856
        %v6858 = vlaneseq
        %v6859 = vshrl.u32 %v6858, 7
        %v6860 = vsub.s32 %v6670, %v6859
        %v6861 = vrot.slane %v6441, %v6860
        %v6862 = vsel %vm6675, %v6861, %v6857
        %v6863 = vlaneseq
        %v6864 = vshrl.u32 %v6863, 7
        %v6865 = vsub.s32 %v6677, %v6864
        %v6866 = vrot.slane %v6442, %v6865
        %v6867 = vsel %vm6682, %v6866, %v6862
        %v6868 = vlaneseq
        %v6869 = vshrl.u32 %v6868, 7
        %v6870 = vsub.s32 %v6684, %v6869
        %v6871 = vrot.slane %v6443, %v6870
        %v6872 = vsel %vm6689, %v6871, %v6867
        %v6873 = vlaneseq
        %v6874 = vshrl.u32 %v6873, 7
        %v6875 = vsub.s32 %v6691, %v6874
        %v6876 = vrot.slane %v6444, %v6875
        %v6877 = vsel %vm6696, %v6876, %v6872
        %v6878 = vlaneseq
        %v6879 = vshrl.u32 %v6878, 7
        %v6880 = vsub.s32 %v6698, %v6879
        %v6881 = vrot.slane %v6445, %v6880
        %v6882 = vsel %vm6703, %v6881, %v6877
        %v6883 = vlaneseq
        %v6884 = vshrl.u32 %v6883, 7
        %v6885 = vsub.s32 %v6705, %v6884
        %v6886 = vrot.slane %v6446, %v6885
        %v6887 = vsel %vm6710, %v6886, %v6882
        %v6888 = vlaneseq
        %v6889 = vshrl.u32 %v6888, 7
        %v6890 = vsub.s32 %v6712, %v6889
        %v6891 = vrot.slane %v6447, %v6890
        %v6892 = vsel %vm6717, %v6891, %v6887
        %v6893 = vlaneseq
        %v6894 = vshrl.u32 %v6893, 7
        %v6895 = vsub.s32 %v6719, %v6894
        %v6896 = vrot.slane %v6448, %v6895
        %v6897 = vsel %vm6724, %v6896, %v6892
        %v6898 = vlaneseq
        %v6899 = vshrl.u32 %v6898, 7
        %v6900 = vsub.s32 %v6726, %v6899
        %v6901 = vrot.slane %v6449, %v6900
        %v6902 = vsel %vm6731, %v6901, %v6897
        %v6903 = vlaneseq
        %v6904 = vshrl.u32 %v6903, 7
        %v6905 = vsub.s32 %v6733, %v6904
        %v6906 = vrot.slane %v6450, %v6905
        %v6907 = vsel %vm6738, %v6906, %v6902
        %v6908 = vlaneseq
        %v6909 = vshrl.u32 %v6908, 7
        %v6910 = vsub.s32 %v6740, %v6909
        %v6911 = vrot.slane %v6451, %v6910
        %v6912 = vsel %vm6745, %v6911, %v6907
        %v6913 = vlaneseq
        %v6914 = vshrl.u32 %v6913, 7
        %v6915 = vsub.s32 %v6747, %v6914
        %v6916 = vrot.slane %v6452, %v6915
        %v6917 = vsel %vm6752, %v6916, %v6912
        %v6918 = vlaneseq
        %v6919 = vshrl.u32 %v6918, 7
        %v6920 = vsub.s32 %v6754, %v6919
        %v6921 = vrot.slane %v6453, %v6920
        %v6922 = vsel %vm6759, %v6921, %v6917
        %v6923 = vlaneseq
        %v6924 = vshrl.u32 %v6923, 7
        %v6925 = vsub.s32 %v6761, %v6924
        %v6926 = vrot.slane %v6454, %v6925
        %v6927 = vsel %vm6766, %v6926, %v6922
        %v6928 = vlaneseq
        %v6929 = vshrl.u32 %v6928, 7
        %v6930 = vsub.s32 %v6768, %v6929
        %v6931 = vrot.slane %v6455, %v6930
        %v6932 = vsel %vm6773, %v6931, %v6927
        %v6933 = vlaneseq
        %v6934 = vshrl.u32 %v6933, 7
        %v6935 = vsub.s32 %v6665, %v6934
        %v6936 = vrot.slane %v6456, %v6935
        %v6937 = vlaneseq
        %v6938 = vshrl.u32 %v6937, 7
        %v6939 = vsub.s32 %v6670, %v6938
        %v6940 = vrot.slane %v6457, %v6939
        %v6941 = vsel %vm6675, %v6940, %v6936
        %v6942 = vlaneseq
        %v6943 = vshrl.u32 %v6942, 7
        %v6944 = vsub.s32 %v6677, %v6943
        %v6945 = vrot.slane %v6458, %v6944
        %v6946 = vsel %vm6682, %v6945, %v6941
        %v6947 = vlaneseq
        %v6948 = vshrl.u32 %v6947, 7
        %v6949 = vsub.s32 %v6684, %v6948
        %v6950 = vrot.slane %v6459, %v6949
        %v6951 = vsel %vm6689, %v6950, %v6946
        %v6952 = vlaneseq
        %v6953 = vshrl.u32 %v6952, 7
        %v6954 = vsub.s32 %v6691, %v6953
        %v6955 = vrot.slane %v6460, %v6954
        %v6956 = vsel %vm6696, %v6955, %v6951
        %v6957 = vlaneseq
        %v6958 = vshrl.u32 %v6957, 7
        %v6959 = vsub.s32 %v6698, %v6958
        %v6960 = vrot.slane %v6461, %v6959
        %v6961 = vsel %vm6703, %v6960, %v6956
        %v6962 = vlaneseq
        %v6963 = vshrl.u32 %v6962, 7
        %v6964 = vsub.s32 %v6705, %v6963
        %v6965 = vrot.slane %v6462, %v6964
        %v6966 = vsel %vm6710, %v6965, %v6961
        %v6967 = vlaneseq
        %v6968 = vshrl.u32 %v6967, 7
        %v6969 = vsub.s32 %v6712, %v6968
        %v6970 = vrot.slane %v6463, %v6969
        %v6971 = vsel %vm6717, %v6970, %v6966
        %v6972 = vlaneseq
        %v6973 = vshrl.u32 %v6972, 7
        %v6974 = vsub.s32 %v6719, %v6973
        %v6975 = vrot.slane %v6464, %v6974
        %v6976 = vsel %vm6724, %v6975, %v6971
        %v6977 = vlaneseq
        %v6978 = vshrl.u32 %v6977, 7
        %v6979 = vsub.s32 %v6726, %v6978
        %v6980 = vrot.slane %v6465, %v6979
        %v6981 = vsel %vm6731, %v6980, %v6976
        %v6982 = vlaneseq
        %v6983 = vshrl.u32 %v6982, 7
        %v6984 = vsub.s32 %v6733, %v6983
        %v6985 = vrot.slane %v6466, %v6984
        %v6986 = vsel %vm6738, %v6985, %v6981
        %v6987 = vlaneseq
        %v6988 = vshrl.u32 %v6987, 7
        %v6989 = vsub.s32 %v6740, %v6988
        %v6990 = vrot.slane %v6467, %v6989
        %v6991 = vsel %vm6745, %v6990, %v6986
        %v6992 = vlaneseq
        %v6993 = vshrl.u32 %v6992, 7
        %v6994 = vsub.s32 %v6747, %v6993
        %v6995 = vrot.slane %v6468, %v6994
        %v6996 = vsel %vm6752, %v6995, %v6991
        %v6997 = vlaneseq
        %v6998 = vshrl.u32 %v6997, 7
        %v6999 = vsub.s32 %v6754, %v6998
        %v7000 = vrot.slane %v6469, %v6999
        %v7001 = vsel %vm6759, %v7000, %v6996
        %v7002 = vlaneseq
        %v7003 = vshrl.u32 %v7002, 7
        %v7004 = vsub.s32 %v6761, %v7003
        %v7005 = vrot.slane %v6470, %v7004
        %v7006 = vsel %vm6766, %v7005, %v7001
        %v7007 = vlaneseq
        %v7008 = vshrl.u32 %v7007, 7
        %v7009 = vsub.s32 %v6768, %v7008
        %v7010 = vrot.slane %v6471, %v7009
        %v7011 = vsel %vm6773, %v7010, %v7006
        %v7012 = vlaneseq
        %v7013 = vshrl.u32 %v7012, 7
        %v7014 = vsub.s32 %v6665, %v7013
        %v7015 = vrot.slane %v6472, %v7014
        %v7016 = vlaneseq
        %v7017 = vshrl.u32 %v7016, 7
        %v7018 = vsub.s32 %v6670, %v7017
        %v7019 = vrot.slane %v6473, %v7018
        %v7020 = vsel %vm6675, %v7019, %v7015
        %v7021 = vlaneseq
        %v7022 = vshrl.u32 %v7021, 7
        %v7023 = vsub.s32 %v6677, %v7022
        %v7024 = vrot.slane %v6474, %v7023
        %v7025 = vsel %vm6682, %v7024, %v7020
        %v7026 = vlaneseq
        %v7027 = vshrl.u32 %v7026, 7
        %v7028 = vsub.s32 %v6684, %v7027
        %v7029 = vrot.slane %v6475, %v7028
        %v7030 = vsel %vm6689, %v7029, %v7025
        %v7031 = vlaneseq
        %v7032 = vshrl.u32 %v7031, 7
        %v7033 = vsub.s32 %v6691, %v7032
        %v7034 = vrot.slane %v6476, %v7033
        %v7035 = vsel %vm6696, %v7034, %v7030
        %v7036 = vlaneseq
        %v7037 = vshrl.u32 %v7036, 7
        %v7038 = vsub.s32 %v6698, %v7037
        %v7039 = vrot.slane %v6477, %v7038
        %v7040 = vsel %vm6703, %v7039, %v7035
        %v7041 = vlaneseq
        %v7042 = vshrl.u32 %v7041, 7
        %v7043 = vsub.s32 %v6705, %v7042
        %v7044 = vrot.slane %v6478, %v7043
        %v7045 = vsel %vm6710, %v7044, %v7040
        %v7046 = vlaneseq
        %v7047 = vshrl.u32 %v7046, 7
        %v7048 = vsub.s32 %v6712, %v7047
        %v7049 = vrot.slane %v6479, %v7048
        %v7050 = vsel %vm6717, %v7049, %v7045
        %v7051 = vlaneseq
        %v7052 = vshrl.u32 %v7051, 7
        %v7053 = vsub.s32 %v6719, %v7052
        %v7054 = vrot.slane %v6480, %v7053
        %v7055 = vsel %vm6724, %v7054, %v7050
        %v7056 = vlaneseq
        %v7057 = vshrl.u32 %v7056, 7
        %v7058 = vsub.s32 %v6726, %v7057
        %v7059 = vrot.slane %v6481, %v7058
        %v7060 = vsel %vm6731, %v7059, %v7055
        %v7061 = vlaneseq
        %v7062 = vshrl.u32 %v7061, 7
        %v7063 = vsub.s32 %v6733, %v7062
        %v7064 = vrot.slane %v6482, %v7063
        %v7065 = vsel %vm6738, %v7064, %v7060
        %v7066 = vlaneseq
        %v7067 = vshrl.u32 %v7066, 7
        %v7068 = vsub.s32 %v6740, %v7067
        %v7069 = vrot.slane %v6483, %v7068
        %v7070 = vsel %vm6745, %v7069, %v7065
        %v7071 = vlaneseq
        %v7072 = vshrl.u32 %v7071, 7
        %v7073 = vsub.s32 %v6747, %v7072
        %v7074 = vrot.slane %v6484, %v7073
        %v7075 = vsel %vm6752, %v7074, %v7070
        %v7076 = vlaneseq
        %v7077 = vshrl.u32 %v7076, 7
        %v7078 = vsub.s32 %v6754, %v7077
        %v7079 = vrot.slane %v6485, %v7078
        %v7080 = vsel %vm6759, %v7079, %v7075
        %v7081 = vlaneseq
        %v7082 = vshrl.u32 %v7081, 7
        %v7083 = vsub.s32 %v6761, %v7082
        %v7084 = vrot.slane %v6486, %v7083
        %v7085 = vsel %vm6766, %v7084, %v7080
        %v7086 = vlaneseq
        %v7087 = vshrl.u32 %v7086, 7
        %v7088 = vsub.s32 %v6768, %v7087
        %v7089 = vrot.slane %v6487, %v7088
        %v7090 = vsel %vm6773, %v7089, %v7085
        %v7091 = vlaneseq
        %v7092 = vshrl.u32 %v7091, 7
        %v7093 = vsub.s32 %v6665, %v7092
        %v7094 = vrot.slane %v6488, %v7093
        %v7095 = vlaneseq
        %v7096 = vshrl.u32 %v7095, 7
        %v7097 = vsub.s32 %v6670, %v7096
        %v7098 = vrot.slane %v6489, %v7097
        %v7099 = vsel %vm6675, %v7098, %v7094
        %v7100 = vlaneseq
        %v7101 = vshrl.u32 %v7100, 7
        %v7102 = vsub.s32 %v6677, %v7101
        %v7103 = vrot.slane %v6490, %v7102
        %v7104 = vsel %vm6682, %v7103, %v7099
        %v7105 = vlaneseq
        %v7106 = vshrl.u32 %v7105, 7
        %v7107 = vsub.s32 %v6684, %v7106
        %v7108 = vrot.slane %v6491, %v7107
        %v7109 = vsel %vm6689, %v7108, %v7104
        %v7110 = vlaneseq
        %v7111 = vshrl.u32 %v7110, 7
        %v7112 = vsub.s32 %v6691, %v7111
        %v7113 = vrot.slane %v6492, %v7112
        %v7114 = vsel %vm6696, %v7113, %v7109
        %v7115 = vlaneseq
        %v7116 = vshrl.u32 %v7115, 7
        %v7117 = vsub.s32 %v6698, %v7116
        %v7118 = vrot.slane %v6493, %v7117
        %v7119 = vsel %vm6703, %v7118, %v7114
        %v7120 = vlaneseq
        %v7121 = vshrl.u32 %v7120, 7
        %v7122 = vsub.s32 %v6705, %v7121
        %v7123 = vrot.slane %v6494, %v7122
        %v7124 = vsel %vm6710, %v7123, %v7119
        %v7125 = vlaneseq
        %v7126 = vshrl.u32 %v7125, 7
        %v7127 = vsub.s32 %v6712, %v7126
        %v7128 = vrot.slane %v6495, %v7127
        %v7129 = vsel %vm6717, %v7128, %v7124
        %v7130 = vlaneseq
        %v7131 = vshrl.u32 %v7130, 7
        %v7132 = vsub.s32 %v6719, %v7131
        %v7133 = vrot.slane %v6496, %v7132
        %v7134 = vsel %vm6724, %v7133, %v7129
        %v7135 = vlaneseq
        %v7136 = vshrl.u32 %v7135, 7
        %v7137 = vsub.s32 %v6726, %v7136
        %v7138 = vrot.slane %v6497, %v7137
        %v7139 = vsel %vm6731, %v7138, %v7134
        %v7140 = vlaneseq
        %v7141 = vshrl.u32 %v7140, 7
        %v7142 = vsub.s32 %v6733, %v7141
        %v7143 = vrot.slane %v6498, %v7142
        %v7144 = vsel %vm6738, %v7143, %v7139
        %v7145 = vlaneseq
        %v7146 = vshrl.u32 %v7145, 7
        %v7147 = vsub.s32 %v6740, %v7146
        %v7148 = vrot.slane %v6499, %v7147
        %v7149 = vsel %vm6745, %v7148, %v7144
        %v7150 = vlaneseq
        %v7151 = vshrl.u32 %v7150, 7
        %v7152 = vsub.s32 %v6747, %v7151
        %v7153 = vrot.slane %v6500, %v7152
        %v7154 = vsel %vm6752, %v7153, %v7149
        %v7155 = vlaneseq
        %v7156 = vshrl.u32 %v7155, 7
        %v7157 = vsub.s32 %v6754, %v7156
        %v7158 = vrot.slane %v6501, %v7157
        %v7159 = vsel %vm6759, %v7158, %v7154
        %v7160 = vlaneseq
        %v7161 = vshrl.u32 %v7160, 7
        %v7162 = vsub.s32 %v6761, %v7161
        %v7163 = vrot.slane %v6502, %v7162
        %v7164 = vsel %vm6766, %v7163, %v7159
        %v7165 = vlaneseq
        %v7166 = vshrl.u32 %v7165, 7
        %v7167 = vsub.s32 %v6768, %v7166
        %v7168 = vrot.slane %v6503, %v7167
        %v7169 = vsel %vm6773, %v7168, %v7164
        %v7170 = vlaneseq
        %v7171 = vshrl.u32 %v7170, 7
        %v7172 = vsub.s32 %v6665, %v7171
        %v7173 = vrot.slane %v6504, %v7172
        %v7174 = vlaneseq
        %v7175 = vshrl.u32 %v7174, 7
        %v7176 = vsub.s32 %v6670, %v7175
        %v7177 = vrot.slane %v6505, %v7176
        %v7178 = vsel %vm6675, %v7177, %v7173
        %v7179 = vlaneseq
        %v7180 = vshrl.u32 %v7179, 7
        %v7181 = vsub.s32 %v6677, %v7180
        %v7182 = vrot.slane %v6506, %v7181
        %v7183 = vsel %vm6682, %v7182, %v7178
        %v7184 = vlaneseq
        %v7185 = vshrl.u32 %v7184, 7
        %v7186 = vsub.s32 %v6684, %v7185
        %v7187 = vrot.slane %v6507, %v7186
        %v7188 = vsel %vm6689, %v7187, %v7183
        %v7189 = vlaneseq
        %v7190 = vshrl.u32 %v7189, 7
        %v7191 = vsub.s32 %v6691, %v7190
        %v7192 = vrot.slane %v6508, %v7191
        %v7193 = vsel %vm6696, %v7192, %v7188
        %v7194 = vlaneseq
        %v7195 = vshrl.u32 %v7194, 7
        %v7196 = vsub.s32 %v6698, %v7195
        %v7197 = vrot.slane %v6509, %v7196
        %v7198 = vsel %vm6703, %v7197, %v7193
        %v7199 = vlaneseq
        %v7200 = vshrl.u32 %v7199, 7
        %v7201 = vsub.s32 %v6705, %v7200
        %v7202 = vrot.slane %v6510, %v7201
        %v7203 = vsel %vm6710, %v7202, %v7198
        %v7204 = vlaneseq
        %v7205 = vshrl.u32 %v7204, 7
        %v7206 = vsub.s32 %v6712, %v7205
        %v7207 = vrot.slane %v6511, %v7206
        %v7208 = vsel %vm6717, %v7207, %v7203
        %v7209 = vlaneseq
        %v7210 = vshrl.u32 %v7209, 7
        %v7211 = vsub.s32 %v6719, %v7210
        %v7212 = vrot.slane %v6512, %v7211
        %v7213 = vsel %vm6724, %v7212, %v7208
        %v7214 = vlaneseq
        %v7215 = vshrl.u32 %v7214, 7
        %v7216 = vsub.s32 %v6726, %v7215
        %v7217 = vrot.slane %v6513, %v7216
        %v7218 = vsel %vm6731, %v7217, %v7213
        %v7219 = vlaneseq
        %v7220 = vshrl.u32 %v7219, 7
        %v7221 = vsub.s32 %v6733, %v7220
        %v7222 = vrot.slane %v6514, %v7221
        %v7223 = vsel %vm6738, %v7222, %v7218
        %v7224 = vlaneseq
        %v7225 = vshrl.u32 %v7224, 7
        %v7226 = vsub.s32 %v6740, %v7225
        %v7227 = vrot.slane %v6515, %v7226
        %v7228 = vsel %vm6745, %v7227, %v7223
        %v7229 = vlaneseq
        %v7230 = vshrl.u32 %v7229, 7
        %v7231 = vsub.s32 %v6747, %v7230
        %v7232 = vrot.slane %v6516, %v7231
        %v7233 = vsel %vm6752, %v7232, %v7228
        %v7234 = vlaneseq
        %v7235 = vshrl.u32 %v7234, 7
        %v7236 = vsub.s32 %v6754, %v7235
        %v7237 = vrot.slane %v6517, %v7236
        %v7238 = vsel %vm6759, %v7237, %v7233
        %v7239 = vlaneseq
        %v7240 = vshrl.u32 %v7239, 7
        %v7241 = vsub.s32 %v6761, %v7240
        %v7242 = vrot.slane %v6518, %v7241
        %v7243 = vsel %vm6766, %v7242, %v7238
        %v7244 = vlaneseq
        %v7245 = vshrl.u32 %v7244, 7
        %v7246 = vsub.s32 %v6768, %v7245
        %v7247 = vrot.slane %v6519, %v7246
        %v7248 = vsel %vm6773, %v7247, %v7243
        %v7249 = vlaneseq
        %v7250 = vshrl.u32 %v7249, 7
        %v7251 = vsub.s32 %v6665, %v7250
        %v7252 = vrot.slane %v6520, %v7251
        %v7253 = vlaneseq
        %v7254 = vshrl.u32 %v7253, 7
        %v7255 = vsub.s32 %v6670, %v7254
        %v7256 = vrot.slane %v6521, %v7255
        %v7257 = vsel %vm6675, %v7256, %v7252
        %v7258 = vlaneseq
        %v7259 = vshrl.u32 %v7258, 7
        %v7260 = vsub.s32 %v6677, %v7259
        %v7261 = vrot.slane %v6522, %v7260
        %v7262 = vsel %vm6682, %v7261, %v7257
        %v7263 = vlaneseq
        %v7264 = vshrl.u32 %v7263, 7
        %v7265 = vsub.s32 %v6684, %v7264
        %v7266 = vrot.slane %v6523, %v7265
        %v7267 = vsel %vm6689, %v7266, %v7262
        %v7268 = vlaneseq
        %v7269 = vshrl.u32 %v7268, 7
        %v7270 = vsub.s32 %v6691, %v7269
        %v7271 = vrot.slane %v6524, %v7270
        %v7272 = vsel %vm6696, %v7271, %v7267
        %v7273 = vlaneseq
        %v7274 = vshrl.u32 %v7273, 7
        %v7275 = vsub.s32 %v6698, %v7274
        %v7276 = vrot.slane %v6525, %v7275
        %v7277 = vsel %vm6703, %v7276, %v7272
        %v7278 = vlaneseq
        %v7279 = vshrl.u32 %v7278, 7
        %v7280 = vsub.s32 %v6705, %v7279
        %v7281 = vrot.slane %v6526, %v7280
        %v7282 = vsel %vm6710, %v7281, %v7277
        %v7283 = vlaneseq
        %v7284 = vshrl.u32 %v7283, 7
        %v7285 = vsub.s32 %v6712, %v7284
        %v7286 = vrot.slane %v6527, %v7285
        %v7287 = vsel %vm6717, %v7286, %v7282
        %v7288 = vlaneseq
        %v7289 = vshrl.u32 %v7288, 7
        %v7290 = vsub.s32 %v6719, %v7289
        %v7291 = vrot.slane %v6528, %v7290
        %v7292 = vsel %vm6724, %v7291, %v7287
        %v7293 = vlaneseq
        %v7294 = vshrl.u32 %v7293, 7
        %v7295 = vsub.s32 %v6726, %v7294
        %v7296 = vrot.slane %v6529, %v7295
        %v7297 = vsel %vm6731, %v7296, %v7292
        %v7298 = vlaneseq
        %v7299 = vshrl.u32 %v7298, 7
        %v7300 = vsub.s32 %v6733, %v7299
        %v7301 = vrot.slane %v6530, %v7300
        %v7302 = vsel %vm6738, %v7301, %v7297
        %v7303 = vlaneseq
        %v7304 = vshrl.u32 %v7303, 7
        %v7305 = vsub.s32 %v6740, %v7304
        %v7306 = vrot.slane %v6531, %v7305
        %v7307 = vsel %vm6745, %v7306, %v7302
        %v7308 = vlaneseq
        %v7309 = vshrl.u32 %v7308, 7
        %v7310 = vsub.s32 %v6747, %v7309
        %v7311 = vrot.slane %v6532, %v7310
        %v7312 = vsel %vm6752, %v7311, %v7307
        %v7313 = vlaneseq
        %v7314 = vshrl.u32 %v7313, 7
        %v7315 = vsub.s32 %v6754, %v7314
        %v7316 = vrot.slane %v6533, %v7315
        %v7317 = vsel %vm6759, %v7316, %v7312
        %v7318 = vlaneseq
        %v7319 = vshrl.u32 %v7318, 7
        %v7320 = vsub.s32 %v6761, %v7319
        %v7321 = vrot.slane %v6534, %v7320
        %v7322 = vsel %vm6766, %v7321, %v7317
        %v7323 = vlaneseq
        %v7324 = vshrl.u32 %v7323, 7
        %v7325 = vsub.s32 %v6768, %v7324
        %v7326 = vrot.slane %v6535, %v7325
        %v7327 = vsel %vm6773, %v7326, %v7322
        %vm7328 = vcmask 1041409
        %v7329 = vsel %vm7328, %v6853, %v6774
        %vm7330 = vcmask 1042434
        %v7331 = vsel %vm7330, %v6932, %v7329
        %vm7332 = vcmask 1043459
        %v7333 = vsel %vm7332, %v7011, %v7331
        %vm7334 = vcmask 1044484
        %v7335 = vsel %vm7334, %v7090, %v7333
        %vm7336 = vcmask 1045509
        %v7337 = vsel %vm7336, %v7169, %v7335
        %vm7338 = vcmask 1046534
        %v7339 = vsel %vm7338, %v7248, %v7337
        %vm7340 = vcmask 1047559
        %v7341 = vsel %vm7340, %v7327, %v7339
        %7343 = vst [vmem:[%s240] sm:$0xff] %v7341
        %s7344 = sand.u32 %s140, 1
        %s7345 = scalar_lea.sflag [#allocation4], %s7344
        %s7346 = sand.u32 %s140, 1
        %s7347 = smul.addr %s7346, 8
        %s7348 = scalar_lea.vmem [#allocation5], %s7347
        // Predicated region
        $region45: #{tpu_custom_call.1} parent=39 // pred_check
          %p7349 = pneg %p150
        $region46: #{tpu_custom_call.1} parent=39 // pred_check_branch
          %7351 = sbr.rel (%p7349) target = $region48
        $region47: #{tpu_custom_call.1} parent=39 // pred_region
          %s7353 = ssub.s32 128, 128
          %7354 = vsyncadd %s7345, %s7353
          %s7355 = smul.addr %s22, 128
          %s7356 = scalar_lea.hbm %s5, %s7355
          %s7358 = sshll.u32 %s7348, 4
          %s7359 = int_to_ptr.vmem [resolvable:$true] %s7358
          %7361 = dma.vmem_to_hbm [thread:$0]  %s7359, 128, %s7356, %s7345
        $region48: #{tpu_custom_call.1} parent=39 // pred_fallthru
          _
      $region40: #{tpu_custom_call.1} parent=5 // pred_fallthru
        _
      %p7362 = scmp.le.s32.totalorder 2, %s17
      // Predicated region
      $region49: #{tpu_custom_call.1} parent=5 // pred_check
        %p7363 = pneg %p7362
      $region50: #{tpu_custom_call.1} parent=5 // pred_check_branch
        %7365 = sbr.rel (%p7363) target = $region52
      $region51: #{tpu_custom_call.1} parent=5 // pred_region
        %s7366 = ssub.s32 %s17, 2
        // Predicated region
        $region53: #{tpu_custom_call.1} parent=51 // pred_check
          %p7367 = pneg %p156
        $region54: #{tpu_custom_call.1} parent=51 // pred_check_branch
          %7369 = sbr.rel (%p7367) target = $region56
        $region55: #{tpu_custom_call.1} parent=51 // pred_region
          %s7370 = sand.u32 %s141, 1
          %s7371 = scalar_lea.sflag [#allocation4], %s7370
          %s7372 = sand.u32 %s141, 1
          %s7373 = smul.addr %s7372, 8
          %s7374 = scalar_lea.vmem [#allocation5], %s7373
          %7375 = dma.done %s7371, 128
        $region56: #{tpu_custom_call.1} parent=51 // pred_fallthru
          _
      $region52: #{tpu_custom_call.1} parent=5 // pred_fallthru
        _
    $region6: #{tpu_custom_call.1} parent=1 // loop_footer
      %s21 = sadd.s32 1, %s17
    $region7: #{tpu_custom_call.1} parent=1 // loop_footer_branch
      %16 = sbr.rel target = $region3
    $region8: #{tpu_custom_call.1} parent=1 // loop_exit
      _
    %7376 = vsyncpa [#allocation3], 1
    %s7377 = scalar_lea.sflag [#allocation3], 1
    %7378 = vsyncpa %s7377, 1
    %7379 = vsyncpa [#allocation4], 1
    %s7380 = scalar_lea.sflag [#allocation4], 1
    %7381 = vsyncpa %s7380, 1

</llo_original>
